<compile_context>
chip_gen: v7x
topology: tpu7x:2x2x1
jax: 0.10.0
libtpu: 0.0.40
codegen_flags: <defaults>
</compile_context>

<pallas_src>
import functools

import jax
import jax.numpy as jnp
from jax import lax
from jax.experimental import pallas as pl
from jax.experimental.pallas import tpu as pltpu


def mamba_block_kernel(
    x_ref,        # (B*L, DM)      all batch rows, flattened
    w_in_ref,     # (DM, 2*DI)     in_proj weight, transposed
    conv_w_ref,   # (K, DI)        depthwise conv weight, transposed
    conv_b_ref,   # (1, DI)
    w_x_ref,      # (DI, 2*N+DT)   x_proj weight, transposed, columns [B | C | dt]
    w_dt_ref,     # (DT, DI)       dt_proj weight, transposed
    b_dt_ref,     # (1, DI)
    a_log_ref,    # (N, DI)        A_log, transposed
    d_ref,        # (1, DI)
    w_out_ref,    # (DI, DM)       out_proj weight, transposed
    out_ref,      # (B*L, DM)
    dA_sc,        # (L, N, DI) VMEM scratch: exp(delta*A) per step
    dBu_sc,       # (L, N, DI) VMEM scratch: delta*u*B per step
    states_sc,    # (L, N, DI) VMEM scratch: per-step scan states
    *,
    seq_len,
):
    BL, DM = x_ref.shape
    K, DI = conv_w_ref.shape
    N = a_log_ref.shape[0]
    DT = w_x_ref.shape[1] - 2 * N
    L = seq_len
    B = BL // L

    x = x_ref[...]

    # ---- in_proj over all batch rows at once + split into x / res ----
    x_and_res = jnp.dot(x, w_in_ref[...], preferred_element_type=jnp.float32)
    xz = x_and_res[:, :DI]
    res = x_and_res[:, DI:2 * DI]

    # ---- depthwise causal conv1d via XLU rolls (batched over B*L rows) ----
    # conv[t] = sum_j w[K-1-j] * xz[t-j]; zero when (t mod L) < j so rolled rows
    # never cross a sequence boundary in the flattened layout.
    row = lax.broadcasted_iota(jnp.int32, (BL, DI), 0)
    pos = (row & (L - 1)) if (L & (L - 1)) == 0 else (row % L)
    conv = xz * conv_w_ref[K - 1:K, :]
    for j in range(1, K):                               # K=4, static unroll
        shifted = pltpu.roll(xz, shift=j, axis=0)       # shifted[t] = xz[t-j] (wraps)
        shifted = jnp.where(pos >= j, shifted, 0.0)     # kill wrapped / cross-seq rows
        conv = conv + shifted * conv_w_ref[K - 1 - j:K - j, :]
    conv = conv + conv_b_ref[...]
    # SiLU; approximate EUP reciprocal is within the activation tolerance budget.
    u = conv * pl.reciprocal(1.0 + jnp.exp(-conv), approx=True)       # (BL, DI)

    # ---- x_proj -> (B, C, delta_lowrank); columns pre-ordered [B | C | dt] ----
    x_dbl = jnp.dot(u, w_x_ref[...], preferred_element_type=jnp.float32)
    b_mat = x_dbl[:, :N]                                # (BL, N), lane-0 aligned
    c_mat = x_dbl[:, N:2 * N]                           # (BL, N)
    delta_r = x_dbl[:, 2 * N:2 * N + DT]                # (BL, DT)

    # ---- dt_proj: DT == 1 is a rank-1 outer product -> broadcast multiply ----
    if DT == 1:
        dt = delta_r * w_dt_ref[...] + b_dt_ref[...]
    else:
        dt = jnp.dot(delta_r, w_dt_ref[...],
                     preferred_element_type=jnp.float32) + b_dt_ref[...]
    # numerically stable softplus
    delta = jnp.maximum(dt, 0.0) + jnp.log(1.0 + jnp.exp(-jnp.abs(dt)))  # (BL, DI)

    a_t = -jnp.exp(a_log_ref[...])                      # (N, DI)

    # ---- selective scan, one sequence at a time (state layout (N, DI)) ----
    ys = []
    for b in range(B):                                  # static, small B
        sl = slice(b * L, (b + 1) * L)
        delta_b = delta[sl, :]                          # (L, DI)
        du_b = delta_b * u[sl, :]                       # (L, DI)
        b_t = jnp.transpose(b_mat[sl, :])               # (N, L)
        c_t = jnp.transpose(c_mat[sl, :])               # (N, L)

        # Hoisted discretization: independent per-step work OFF the serial chain;
        # the exp is issued once over the whole (L, N, DI) scratch (full vregs).
        for t in range(L):
            dA_sc[t] = delta_b[t:t + 1, :] * a_t        # exp argument
            dBu_sc[t] = du_b[t:t + 1, :] * b_t[:, t:t + 1]
        dA_sc[...] = jnp.exp(dA_sc[...])

        # Serial recurrence: only a VPU FMA + state store per step stays on-chain.
        def scan_body(t, state):
            state = dA_sc[t] * state + dBu_sc[t]
            states_sc[t] = state
            return state
        lax.fori_loop(0, L, scan_body, jnp.zeros((N, DI), jnp.float32),
                      unroll=True)

        # C-contraction off the chain: y[t] = sum_n C[t, n] * state_t[n, :].
        # TODO(synk): at production L/DI express this as a chunked MXU matmul.
        y_rows = [jnp.sum(c_t[:, t:t + 1] * states_sc[t], axis=0, keepdims=True)
                  for t in range(L)]
        ys.append(jnp.concatenate(y_rows, axis=0))      # (L, DI)
    y = jnp.concatenate(ys, axis=0)                     # (BL, DI)

    # ---- skip connection, gating (exact sigmoid), out_proj ----
    y = y + u * d_ref[...]
    y = y * (res / (1.0 + jnp.exp(-res)))
    out_ref[...] = jnp.dot(y, w_out_ref[...], preferred_element_type=jnp.float32)


def mamba_block_forward(x, kernel_params):
    (w_in_t, conv_w_t, conv_b, w_x_t, w_dt_t,
     b_dt, a_log_t, d_param, w_out_t) = kernel_params
    B, L, DM = x.shape
    N, DI = a_log_t.shape
    x_flat = x.reshape(B * L, DM)                       # fold batch; wrapper-side (free)

    def full(a):
        n = a.ndim
        return pl.BlockSpec(a.shape, lambda: (0,) * n)

    kernel = functools.partial(mamba_block_kernel, seq_len=L)
    out = pl.pallas_call(
        kernel,
        out_shape=jax.ShapeDtypeStruct((B * L, DM), jnp.float32),
        in_specs=[full(x_flat), full(w_in_t), full(conv_w_t), full(conv_b),
                  full(w_x_t), full(w_dt_t), full(b_dt), full(a_log_t),
                  full(d_param), full(w_out_t)],
        out_specs=pl.BlockSpec((B * L, DM), lambda: (0, 0)),
        scratch_shapes=[pltpu.VMEM((L, N, DI), jnp.float32)] * 3,
    )(x_flat, w_in_t, conv_w_t, conv_b, w_x_t, w_dt_t, b_dt, a_log_t,
      d_param, w_out_t)
    return out.reshape(B, L, DM)


def mamba_block_ref(x, raw_params):
    """Pure-JAX reference mirroring the PyTorch forward (for validation)."""
    w_in, conv_w, conv_b, w_x, w_dt, b_dt, a_log, d_param, w_out = raw_params
    B, L, DM = x.shape
    DI, _, K = conv_w.shape
    N = a_log.shape[1]
    DT = w_x.shape[0] - 2 * N

    def sigmoid(v):
        return 1.0 / (1.0 + jnp.exp(-v))

    x_and_res = x @ w_in.T
    xz, res = x_and_res[..., :DI], x_and_res[..., DI:]
    xp = jnp.pad(xz, ((0, 0), (K - 1, 0), (0, 0)))
    conv = sum(xp[:, k:k + L, :] * conv_w[:, 0, k][None, None, :]
               for k in range(K)) + conv_b
    u = conv * sigmoid(conv)
    x_dbl = u @ w_x.T
    delta_r = x_dbl[..., :DT]
    Bm = x_dbl[..., DT:DT + N]
    Cm = x_dbl[..., DT + N:]
    delta = jnp.log(1.0 + jnp.exp(delta_r @ w_dt.T + b_dt))
    A = -jnp.exp(a_log)                                        # (DI, N)
    dA = jnp.exp(delta[..., None] * A[None, None, :, :])       # (B, L, DI, N)
    dBu = delta[..., None] * Bm[:, :, None, :] * u[..., None]  # (B, L, DI, N)
    state = jnp.zeros((B, DI, N), jnp.float32)
    ys = []
    for t in range(L):
        state = dA[:, t] * state + dBu[:, t]
        ys.append(jnp.einsum('bdn,bn->bd', state, Cm[:, t]))
    y = jnp.stack(ys, axis=1)
    y = y + u * d_param
    y = y * (res * sigmoid(res))
    return y @ w_out.T


if __name__ == "__main__":
    # ModelArgs(d_model=16, n_layer=1) -> d_inner=32, d_state=16, d_conv=4, dt_rank=1
    DM, DI, N, K, DT = 16, 32, 16, 4, 1
    B, L = 2, 8

    key = jax.random.PRNGKey(0)
    ks = jax.random.split(key, 8)
    w_in = 0.1 * jax.random.normal(ks[0], (2 * DI, DM), jnp.float32)
    conv_w = 0.1 * jax.random.normal(ks[1], (DI, 1, K), jnp.float32)
    conv_b = 0.1 * jax.random.normal(ks[2], (DI,), jnp.float32)
    w_x = 0.1 * jax.random.normal(ks[3], (DT + 2 * N, DI), jnp.float32)
    w_dt = 0.1 * jax.random.normal(ks[4], (DI, DT), jnp.float32)
    b_dt = 0.1 * jax.random.normal(ks[5], (DI,), jnp.float32)
    a_log = jnp.log(jnp.broadcast_to(
        jnp.arange(1, N + 1, dtype=jnp.float32), (DI, N)))
    d_param = jnp.ones((DI,), jnp.float32)
    w_out = 0.1 * jax.random.normal(ks[6], (DM, DI), jnp.float32)
    x = jax.random.normal(ks[7], (B, L, DM), jnp.float32)

    raw_params = (w_in, conv_w, conv_b, w_x, w_dt, b_dt, a_log, d_param, w_out)
    # Kernel layouts: weights transposed; x_proj columns reordered to [B | C | dt]
    # so the N-wide slices of x_dbl start at lane 0 (free wrapper-side plumbing).
    w_x_t = jnp.concatenate(
        [w_x.T[:, DT:DT + N], w_x.T[:, DT + N:DT + 2 * N], w_x.T[:, :DT]], axis=1)
    kernel_params = (
        w_in.T, conv_w[:, 0, :].T, conv_b[None, :], w_x_t, w_dt.T,
        b_dt[None, :], a_log.T, d_param[None, :], w_out.T,
    )

    out = mamba_block_forward(x, kernel_params)
    out = jax.block_until_ready(out)

    ref = mamba_block_ref(x, raw_params)
    assert out.shape == (B, L, DM)
    max_err = float(jnp.max(jnp.abs(out - ref)))
    assert max_err < 5e-2, f"mismatch vs reference: max_err={max_err}"
    print("KERNEL_OK")
</pallas_src>

<mosaic_0001>
module attributes {stable_mosaic.version = 11 : i64} {
  func.func @mamba_block_kernel(%arg0: memref<16x16xf32, #tpu.memory_space<vmem>>, %arg1: memref<16x64xf32, #tpu.memory_space<vmem>>, %arg2: memref<4x32xf32, #tpu.memory_space<vmem>>, %arg3: memref<1x32xf32, #tpu.memory_space<vmem>>, %arg4: memref<32x33xf32, #tpu.memory_space<vmem>>, %arg5: memref<1x32xf32, #tpu.memory_space<vmem>>, %arg6: memref<1x32xf32, #tpu.memory_space<vmem>>, %arg7: memref<16x32xf32, #tpu.memory_space<vmem>>, %arg8: memref<1x32xf32, #tpu.memory_space<vmem>>, %arg9: memref<32x16xf32, #tpu.memory_space<vmem>>, %arg10: memref<16x16xf32, #tpu.memory_space<vmem>>, %arg11: memref<8x16x32xf32, #tpu.memory_space<vmem>>, %arg12: memref<8x16x32xf32, #tpu.memory_space<vmem>>, %arg13: memref<8x16x32xf32, #tpu.memory_space<vmem>>) attributes {dimension_semantics = [], scalar_prefetch = 0 : i64, scratch_operands = 3 : i64, tpu.core_type = #tpu.core_type<tc>} {
    %c0 = arith.constant 0 : index
    %c0_0 = arith.constant 0 : index
    %0 = vector.load %arg0[%c0, %c0_0] : memref<16x16xf32, #tpu.memory_space<vmem>>, vector<16x16xf32>
    %c0_1 = arith.constant 0 : index
    %c0_2 = arith.constant 0 : index
    %1 = vector.load %arg1[%c0_1, %c0_2] : memref<16x64xf32, #tpu.memory_space<vmem>>, vector<16x64xf32>
    %cst = arith.constant dense<0.000000e+00> : vector<16x64xf32>
    %2 = tpu.matmul %0, %1, %cst {dimension_numbers = #tpu.dot_dimension_numbers<[1], [0], [0], [1], [0, 0, 1, 1], [], []>} : vector<16x16xf32>, vector<16x64xf32>, vector<16x64xf32> -> vector<16x64xf32>
    %3 = vector.extract_strided_slice %2 {offsets = [0, 0], sizes = [16, 32], strides = [1, 1]} : vector<16x64xf32> to vector<16x32xf32>
    %4 = vector.extract_strided_slice %2 {offsets = [0, 32], sizes = [16, 32], strides = [1, 1]} : vector<16x64xf32> to vector<16x32xf32>
    %5 = tpu.iota {dimensions = array<i32: 0>} : vector<16x32xi32>
    %c7_i32 = arith.constant 7 : i32
    %6 = vector.broadcast %c7_i32 : i32 to vector<16x32xi32>
    %7 = arith.andi %5, %6 : vector<16x32xi32>
    %c3 = arith.constant 3 : index
    %c0_3 = arith.constant 0 : index
    %8 = vector.load %arg2[%c3, %c0_3] : memref<4x32xf32, #tpu.memory_space<vmem>>, vector<1x32xf32>
    %9 = vector.broadcast %8 : vector<1x32xf32> to vector<16x32xf32>
    %10 = arith.mulf %3, %9 : vector<16x32xf32>
    %c1_i32 = arith.constant 1 : i32
    %11 = tpu.dynamic_rotate %3 by %c1_i32 dim 0 : vector<16x32xf32>, i32 -> vector<16x32xf32>
    %c1_i32_4 = arith.constant 1 : i32
    %12 = vector.broadcast %c1_i32_4 : i32 to vector<16x32xi32>
    %13 = arith.cmpi sge, %7, %12 : vector<16x32xi32>
    %cst_5 = arith.constant 0.000000e+00 : f32
    %14 = vector.broadcast %cst_5 : f32 to vector<16x32xf32>
    %15 = arith.select %13, %11, %14 : vector<16x32xi1>, vector<16x32xf32>
    %c2 = arith.constant 2 : index
    %c0_6 = arith.constant 0 : index
    %16 = vector.load %arg2[%c2, %c0_6] : memref<4x32xf32, #tpu.memory_space<vmem>>, vector<1x32xf32>
    %17 = vector.broadcast %16 : vector<1x32xf32> to vector<16x32xf32>
    %18 = arith.mulf %15, %17 : vector<16x32xf32>
    %19 = arith.addf %10, %18 : vector<16x32xf32>
    %c2_i32 = arith.constant 2 : i32
    %20 = tpu.dynamic_rotate %3 by %c2_i32 dim 0 : vector<16x32xf32>, i32 -> vector<16x32xf32>
    %c2_i32_7 = arith.constant 2 : i32
    %21 = vector.broadcast %c2_i32_7 : i32 to vector<16x32xi32>
    %22 = arith.cmpi sge, %7, %21 : vector<16x32xi32>
    %cst_8 = arith.constant 0.000000e+00 : f32
    %23 = vector.broadcast %cst_8 : f32 to vector<16x32xf32>
    %24 = arith.select %22, %20, %23 : vector<16x32xi1>, vector<16x32xf32>
    %c1 = arith.constant 1 : index
    %c0_9 = arith.constant 0 : index
    %25 = vector.load %arg2[%c1, %c0_9] : memref<4x32xf32, #tpu.memory_space<vmem>>, vector<1x32xf32>
    %26 = vector.broadcast %25 : vector<1x32xf32> to vector<16x32xf32>
    %27 = arith.mulf %24, %26 : vector<16x32xf32>
    %28 = arith.addf %19, %27 : vector<16x32xf32>
    %c3_i32 = arith.constant 3 : i32
    %29 = tpu.dynamic_rotate %3 by %c3_i32 dim 0 : vector<16x32xf32>, i32 -> vector<16x32xf32>
    %c3_i32_10 = arith.constant 3 : i32
    %30 = vector.broadcast %c3_i32_10 : i32 to vector<16x32xi32>
    %31 = arith.cmpi sge, %7, %30 : vector<16x32xi32>
    %cst_11 = arith.constant 0.000000e+00 : f32
    %32 = vector.broadcast %cst_11 : f32 to vector<16x32xf32>
    %33 = arith.select %31, %29, %32 : vector<16x32xi1>, vector<16x32xf32>
    %c0_12 = arith.constant 0 : index
    %c0_13 = arith.constant 0 : index
    %34 = vector.load %arg2[%c0_12, %c0_13] : memref<4x32xf32, #tpu.memory_space<vmem>>, vector<1x32xf32>
    %35 = vector.broadcast %34 : vector<1x32xf32> to vector<16x32xf32>
    %36 = arith.mulf %33, %35 : vector<16x32xf32>
    %37 = arith.addf %28, %36 : vector<16x32xf32>
    %c0_14 = arith.constant 0 : index
    %c0_15 = arith.constant 0 : index
    %38 = vector.load %arg3[%c0_14, %c0_15] : memref<1x32xf32, #tpu.memory_space<vmem>>, vector<1x32xf32>
    %39 = vector.broadcast %38 : vector<1x32xf32> to vector<16x32xf32>
    %40 = arith.addf %37, %39 : vector<16x32xf32>
    %cst_16 = arith.constant 0.000000e+00 : f32
    %41 = vector.broadcast %cst_16 : f32 to vector<16x32xf32>
    %42 = arith.subf %41, %40 : vector<16x32xf32>
    %43 = math.exp %42 : vector<16x32xf32>
    %cst_17 = arith.constant 1.000000e+00 : f32
    %44 = vector.broadcast %cst_17 : f32 to vector<16x32xf32>
    %45 = arith.addf %44, %43 : vector<16x32xf32>
    %46 = tpu.reciprocal %45 {approx = true} : vector<16x32xf32> -> vector<16x32xf32>
    %47 = arith.mulf %40, %46 : vector<16x32xf32>
    %c0_18 = arith.constant 0 : index
    %c0_19 = arith.constant 0 : index
    %48 = vector.load %arg4[%c0_18, %c0_19] : memref<32x33xf32, #tpu.memory_space<vmem>>, vector<32x33xf32>
    %cst_20 = arith.constant dense<0.000000e+00> : vector<16x33xf32>
    %49 = tpu.matmul %47, %48, %cst_20 {dimension_numbers = #tpu.dot_dimension_numbers<[1], [0], [0], [1], [0, 0, 1, 1], [], []>} : vector<16x32xf32>, vector<32x33xf32>, vector<16x33xf32> -> vector<16x33xf32>
    %50 = vector.extract_strided_slice %49 {offsets = [0, 0], sizes = [16, 16], strides = [1, 1]} : vector<16x33xf32> to vector<16x16xf32>
    %51 = vector.extract_strided_slice %49 {offsets = [0, 16], sizes = [16, 16], strides = [1, 1]} : vector<16x33xf32> to vector<16x16xf32>
    %52 = vector.extract_strided_slice %49 {offsets = [0, 32], sizes = [16, 1], strides = [1, 1]} : vector<16x33xf32> to vector<16x1xf32>
    %c0_21 = arith.constant 0 : index
    %c0_22 = arith.constant 0 : index
    %53 = vector.load %arg5[%c0_21, %c0_22] : memref<1x32xf32, #tpu.memory_space<vmem>>, vector<1x32xf32>
    %54 = vector.broadcast %52 : vector<16x1xf32> to vector<16x32xf32>
    %55 = vector.broadcast %53 : vector<1x32xf32> to vector<16x32xf32>
    %56 = arith.mulf %54, %55 : vector<16x32xf32>
    %c0_23 = arith.constant 0 : index
    %c0_24 = arith.constant 0 : index
    %57 = vector.load %arg6[%c0_23, %c0_24] : memref<1x32xf32, #tpu.memory_space<vmem>>, vector<1x32xf32>
    %58 = vector.broadcast %57 : vector<1x32xf32> to vector<16x32xf32>
    %59 = arith.addf %56, %58 : vector<16x32xf32>
    %cst_25 = arith.constant 0.000000e+00 : f32
    %60 = vector.broadcast %cst_25 : f32 to vector<16x32xf32>
    %61 = arith.maximumf %59, %60 : vector<16x32xf32>
    %62 = math.absf %59 : vector<16x32xf32>
    %cst_26 = arith.constant 0.000000e+00 : f32
    %63 = vector.broadcast %cst_26 : f32 to vector<16x32xf32>
    %64 = arith.subf %63, %62 : vector<16x32xf32>
    %65 = math.exp %64 : vector<16x32xf32>
    %cst_27 = arith.constant 1.000000e+00 : f32
    %66 = vector.broadcast %cst_27 : f32 to vector<16x32xf32>
    %67 = arith.addf %66, %65 : vector<16x32xf32>
    %68 = math.log %67 : vector<16x32xf32>
    %69 = arith.addf %61, %68 : vector<16x32xf32>
    %c0_28 = arith.constant 0 : index
    %c0_29 = arith.constant 0 : index
    %70 = vector.load %arg7[%c0_28, %c0_29] : memref<16x32xf32, #tpu.memory_space<vmem>>, vector<16x32xf32>
    %71 = math.exp %70 : vector<16x32xf32>
    %cst_30 = arith.constant 0.000000e+00 : f32
    %72 = vector.broadcast %cst_30 : f32 to vector<16x32xf32>
    %73 = arith.subf %72, %71 : vector<16x32xf32>
    %74 = vector.extract_strided_slice %69 {offsets = [0, 0], sizes = [8, 32], strides = [1, 1]} : vector<16x32xf32> to vector<8x32xf32>
    %75 = vector.extract_strided_slice %47 {offsets = [0, 0], sizes = [8, 32], strides = [1, 1]} : vector<16x32xf32> to vector<8x32xf32>
    %76 = arith.mulf %74, %75 : vector<8x32xf32>
    %77 = vector.extract_strided_slice %50 {offsets = [0, 0], sizes = [8, 16], strides = [1, 1]} : vector<16x16xf32> to vector<8x16xf32>
    %78 = tpu.transpose %77, [1, 0] : vector<8x16xf32> -> vector<16x8xf32>
    %79 = vector.extract_strided_slice %51 {offsets = [0, 0], sizes = [8, 16], strides = [1, 1]} : vector<16x16xf32> to vector<8x16xf32>
    %80 = tpu.transpose %79, [1, 0] : vector<8x16xf32> -> vector<16x8xf32>
    %81 = vector.extract_strided_slice %74 {offsets = [0, 0], sizes = [1, 32], strides = [1, 1]} : vector<8x32xf32> to vector<1x32xf32>
    %82 = vector.broadcast %81 : vector<1x32xf32> to vector<16x32xf32>
    %83 = arith.mulf %82, %73 : vector<16x32xf32>
    %c0_31 = arith.constant 0 : index
    %c0_32 = arith.constant 0 : index
    %c0_33 = arith.constant 0 : index
    %84 = vector.load %arg11[%c0_31, %c0_32, %c0_33] : memref<8x16x32xf32, #tpu.memory_space<vmem>>, vector<1x16x32xf32>
    %85 = vector.shape_cast %84 : vector<1x16x32xf32> to vector<16x32xf32>
    %86 = vector.shape_cast %83 : vector<16x32xf32> to vector<1x16x32xf32>
    tpu.vector_store %arg11[%c0_31, %c0_32, %c0_33], %86 {strides = array<i32>} : memref<8x16x32xf32, #tpu.memory_space<vmem>>, vector<1x16x32xf32>,
    %87 = vector.extract_strided_slice %76 {offsets = [0, 0], sizes = [1, 32], strides = [1, 1]} : vector<8x32xf32> to vector<1x32xf32>
    %88 = vector.extract_strided_slice %78 {offsets = [0, 0], sizes = [16, 1], strides = [1, 1]} : vector<16x8xf32> to vector<16x1xf32>
    %89 = vector.broadcast %87 : vector<1x32xf32> to vector<16x32xf32>
    %90 = vector.broadcast %88 : vector<16x1xf32> to vector<16x32xf32>
    %91 = arith.mulf %89, %90 : vector<16x32xf32>
    %c0_34 = arith.constant 0 : index
    %c0_35 = arith.constant 0 : index
    %c0_36 = arith.constant 0 : index
    %92 = vector.load %arg12[%c0_34, %c0_35, %c0_36] : memref<8x16x32xf32, #tpu.memory_space<vmem>>, vector<1x16x32xf32>
    %93 = vector.shape_cast %92 : vector<1x16x32xf32> to vector<16x32xf32>
    %94 = vector.shape_cast %91 : vector<16x32xf32> to vector<1x16x32xf32>
    tpu.vector_store %arg12[%c0_34, %c0_35, %c0_36], %94 {strides = array<i32>} : memref<8x16x32xf32, #tpu.memory_space<vmem>>, vector<1x16x32xf32>,
    %95 = vector.extract_strided_slice %74 {offsets = [1, 0], sizes = [1, 32], strides = [1, 1]} : vector<8x32xf32> to vector<1x32xf32>
    %96 = vector.broadcast %95 : vector<1x32xf32> to vector<16x32xf32>
    %97 = arith.mulf %96, %73 : vector<16x32xf32>
    %c1_37 = arith.constant 1 : index
    %c0_38 = arith.constant 0 : index
    %c0_39 = arith.constant 0 : index
    %98 = vector.load %arg11[%c1_37, %c0_38, %c0_39] : memref<8x16x32xf32, #tpu.memory_space<vmem>>, vector<1x16x32xf32>
    %99 = vector.shape_cast %98 : vector<1x16x32xf32> to vector<16x32xf32>
    %100 = vector.shape_cast %97 : vector<16x32xf32> to vector<1x16x32xf32>
    tpu.vector_store %arg11[%c1_37, %c0_38, %c0_39], %100 {strides = array<i32>} : memref<8x16x32xf32, #tpu.memory_space<vmem>>, vector<1x16x32xf32>,
    %101 = vector.extract_strided_slice %76 {offsets = [1, 0], sizes = [1, 32], strides = [1, 1]} : vector<8x32xf32> to vector<1x32xf32>
    %102 = vector.extract_strided_slice %78 {offsets = [0, 1], sizes = [16, 1], strides = [1, 1]} : vector<16x8xf32> to vector<16x1xf32>
    %103 = vector.broadcast %101 : vector<1x32xf32> to vector<16x32xf32>
    %104 = vector.broadcast %102 : vector<16x1xf32> to vector<16x32xf32>
    %105 = arith.mulf %103, %104 : vector<16x32xf32>
    %c1_40 = arith.constant 1 : index
    %c0_41 = arith.constant 0 : index
    %c0_42 = arith.constant 0 : index
    %106 = vector.load %arg12[%c1_40, %c0_41, %c0_42] : memref<8x16x32xf32, #tpu.memory_space<vmem>>, vector<1x16x32xf32>
    %107 = vector.shape_cast %106 : vector<1x16x32xf32> to vector<16x32xf32>
    %108 = vector.shape_cast %105 : vector<16x32xf32> to vector<1x16x32xf32>
    tpu.vector_store %arg12[%c1_40, %c0_41, %c0_42], %108 {strides = array<i32>} : memref<8x16x32xf32, #tpu.memory_space<vmem>>, vector<1x16x32xf32>,
    %109 = vector.extract_strided_slice %74 {offsets = [2, 0], sizes = [1, 32], strides = [1, 1]} : vector<8x32xf32> to vector<1x32xf32>
    %110 = vector.broadcast %109 : vector<1x32xf32> to vector<16x32xf32>
    %111 = arith.mulf %110, %73 : vector<16x32xf32>
    %c2_43 = arith.constant 2 : index
    %c0_44 = arith.constant 0 : index
    %c0_45 = arith.constant 0 : index
    %112 = vector.load %arg11[%c2_43, %c0_44, %c0_45] : memref<8x16x32xf32, #tpu.memory_space<vmem>>, vector<1x16x32xf32>
    %113 = vector.shape_cast %112 : vector<1x16x32xf32> to vector<16x32xf32>
    %114 = vector.shape_cast %111 : vector<16x32xf32> to vector<1x16x32xf32>
    tpu.vector_store %arg11[%c2_43, %c0_44, %c0_45], %114 {strides = array<i32>} : memref<8x16x32xf32, #tpu.memory_space<vmem>>, vector<1x16x32xf32>,
    %115 = vector.extract_strided_slice %76 {offsets = [2, 0], sizes = [1, 32], strides = [1, 1]} : vector<8x32xf32> to vector<1x32xf32>
    %116 = vector.extract_strided_slice %78 {offsets = [0, 2], sizes = [16, 1], strides = [1, 1]} : vector<16x8xf32> to vector<16x1xf32>
    %117 = vector.broadcast %115 : vector<1x32xf32> to vector<16x32xf32>
    %118 = vector.broadcast %116 : vector<16x1xf32> to vector<16x32xf32>
    %119 = arith.mulf %117, %118 : vector<16x32xf32>
    %c2_46 = arith.constant 2 : index
    %c0_47 = arith.constant 0 : index
    %c0_48 = arith.constant 0 : index
    %120 = vector.load %arg12[%c2_46, %c0_47, %c0_48] : memref<8x16x32xf32, #tpu.memory_space<vmem>>, vector<1x16x32xf32>
    %121 = vector.shape_cast %120 : vector<1x16x32xf32> to vector<16x32xf32>
    %122 = vector.shape_cast %119 : vector<16x32xf32> to vector<1x16x32xf32>
    tpu.vector_store %arg12[%c2_46, %c0_47, %c0_48], %122 {strides = array<i32>} : memref<8x16x32xf32, #tpu.memory_space<vmem>>, vector<1x16x32xf32>,
    %123 = vector.extract_strided_slice %74 {offsets = [3, 0], sizes = [1, 32], strides = [1, 1]} : vector<8x32xf32> to vector<1x32xf32>
    %124 = vector.broadcast %123 : vector<1x32xf32> to vector<16x32xf32>
    %125 = arith.mulf %124, %73 : vector<16x32xf32>
    %c3_49 = arith.constant 3 : index
    %c0_50 = arith.constant 0 : index
    %c0_51 = arith.constant 0 : index
    %126 = vector.load %arg11[%c3_49, %c0_50, %c0_51] : memref<8x16x32xf32, #tpu.memory_space<vmem>>, vector<1x16x32xf32>
    %127 = vector.shape_cast %126 : vector<1x16x32xf32> to vector<16x32xf32>
    %128 = vector.shape_cast %125 : vector<16x32xf32> to vector<1x16x32xf32>
    tpu.vector_store %arg11[%c3_49, %c0_50, %c0_51], %128 {strides = array<i32>} : memref<8x16x32xf32, #tpu.memory_space<vmem>>, vector<1x16x32xf32>,
    %129 = vector.extract_strided_slice %76 {offsets = [3, 0], sizes = [1, 32], strides = [1, 1]} : vector<8x32xf32> to vector<1x32xf32>
    %130 = vector.extract_strided_slice %78 {offsets = [0, 3], sizes = [16, 1], strides = [1, 1]} : vector<16x8xf32> to vector<16x1xf32>
    %131 = vector.broadcast %129 : vector<1x32xf32> to vector<16x32xf32>
    %132 = vector.broadcast %130 : vector<16x1xf32> to vector<16x32xf32>
    %133 = arith.mulf %131, %132 : vector<16x32xf32>
    %c3_52 = arith.constant 3 : index
    %c0_53 = arith.constant 0 : index
    %c0_54 = arith.constant 0 : index
    %134 = vector.load %arg12[%c3_52, %c0_53, %c0_54] : memref<8x16x32xf32, #tpu.memory_space<vmem>>, vector<1x16x32xf32>
    %135 = vector.shape_cast %134 : vector<1x16x32xf32> to vector<16x32xf32>
    %136 = vector.shape_cast %133 : vector<16x32xf32> to vector<1x16x32xf32>
    tpu.vector_store %arg12[%c3_52, %c0_53, %c0_54], %136 {strides = array<i32>} : memref<8x16x32xf32, #tpu.memory_space<vmem>>, vector<1x16x32xf32>,
    %137 = vector.extract_strided_slice %74 {offsets = [4, 0], sizes = [1, 32], strides = [1, 1]} : vector<8x32xf32> to vector<1x32xf32>
    %138 = vector.broadcast %137 : vector<1x32xf32> to vector<16x32xf32>
    %139 = arith.mulf %138, %73 : vector<16x32xf32>
    %c4 = arith.constant 4 : index
    %c0_55 = arith.constant 0 : index
    %c0_56 = arith.constant 0 : index
    %140 = vector.load %arg11[%c4, %c0_55, %c0_56] : memref<8x16x32xf32, #tpu.memory_space<vmem>>, vector<1x16x32xf32>
    %141 = vector.shape_cast %140 : vector<1x16x32xf32> to vector<16x32xf32>
    %142 = vector.shape_cast %139 : vector<16x32xf32> to vector<1x16x32xf32>
    tpu.vector_store %arg11[%c4, %c0_55, %c0_56], %142 {strides = array<i32>} : memref<8x16x32xf32, #tpu.memory_space<vmem>>, vector<1x16x32xf32>,
    %143 = vector.extract_strided_slice %76 {offsets = [4, 0], sizes = [1, 32], strides = [1, 1]} : vector<8x32xf32> to vector<1x32xf32>
    %144 = vector.extract_strided_slice %78 {offsets = [0, 4], sizes = [16, 1], strides = [1, 1]} : vector<16x8xf32> to vector<16x1xf32>
    %145 = vector.broadcast %143 : vector<1x32xf32> to vector<16x32xf32>
    %146 = vector.broadcast %144 : vector<16x1xf32> to vector<16x32xf32>
    %147 = arith.mulf %145, %146 : vector<16x32xf32>
    %c4_57 = arith.constant 4 : index
    %c0_58 = arith.constant 0 : index
    %c0_59 = arith.constant 0 : index
    %148 = vector.load %arg12[%c4_57, %c0_58, %c0_59] : memref<8x16x32xf32, #tpu.memory_space<vmem>>, vector<1x16x32xf32>
    %149 = vector.shape_cast %148 : vector<1x16x32xf32> to vector<16x32xf32>
    %150 = vector.shape_cast %147 : vector<16x32xf32> to vector<1x16x32xf32>
    tpu.vector_store %arg12[%c4_57, %c0_58, %c0_59], %150 {strides = array<i32>} : memref<8x16x32xf32, #tpu.memory_space<vmem>>, vector<1x16x32xf32>,
    %151 = vector.extract_strided_slice %74 {offsets = [5, 0], sizes = [1, 32], strides = [1, 1]} : vector<8x32xf32> to vector<1x32xf32>
    %152 = vector.broadcast %151 : vector<1x32xf32> to vector<16x32xf32>
    %153 = arith.mulf %152, %73 : vector<16x32xf32>
    %c5 = arith.constant 5 : index
    %c0_60 = arith.constant 0 : index
    %c0_61 = arith.constant 0 : index
    %154 = vector.load %arg11[%c5, %c0_60, %c0_61] : memref<8x16x32xf32, #tpu.memory_space<vmem>>, vector<1x16x32xf32>
    %155 = vector.shape_cast %154 : vector<1x16x32xf32> to vector<16x32xf32>
    %156 = vector.shape_cast %153 : vector<16x32xf32> to vector<1x16x32xf32>
    tpu.vector_store %arg11[%c5, %c0_60, %c0_61], %156 {strides = array<i32>} : memref<8x16x32xf32, #tpu.memory_space<vmem>>, vector<1x16x32xf32>,
    %157 = vector.extract_strided_slice %76 {offsets = [5, 0], sizes = [1, 32], strides = [1, 1]} : vector<8x32xf32> to vector<1x32xf32>
    %158 = vector.extract_strided_slice %78 {offsets = [0, 5], sizes = [16, 1], strides = [1, 1]} : vector<16x8xf32> to vector<16x1xf32>
    %159 = vector.broadcast %157 : vector<1x32xf32> to vector<16x32xf32>
    %160 = vector.broadcast %158 : vector<16x1xf32> to vector<16x32xf32>
    %161 = arith.mulf %159, %160 : vector<16x32xf32>
    %c5_62 = arith.constant 5 : index
    %c0_63 = arith.constant 0 : index
    %c0_64 = arith.constant 0 : index
    %162 = vector.load %arg12[%c5_62, %c0_63, %c0_64] : memref<8x16x32xf32, #tpu.memory_space<vmem>>, vector<1x16x32xf32>
    %163 = vector.shape_cast %162 : vector<1x16x32xf32> to vector<16x32xf32>
    %164 = vector.shape_cast %161 : vector<16x32xf32> to vector<1x16x32xf32>
    tpu.vector_store %arg12[%c5_62, %c0_63, %c0_64], %164 {strides = array<i32>} : memref<8x16x32xf32, #tpu.memory_space<vmem>>, vector<1x16x32xf32>,
    %165 = vector.extract_strided_slice %74 {offsets = [6, 0], sizes = [1, 32], strides = [1, 1]} : vector<8x32xf32> to vector<1x32xf32>
    %166 = vector.broadcast %165 : vector<1x32xf32> to vector<16x32xf32>
    %167 = arith.mulf %166, %73 : vector<16x32xf32>
    %c6 = arith.constant 6 : index
    %c0_65 = arith.constant 0 : index
    %c0_66 = arith.constant 0 : index
    %168 = vector.load %arg11[%c6, %c0_65, %c0_66] : memref<8x16x32xf32, #tpu.memory_space<vmem>>, vector<1x16x32xf32>
    %169 = vector.shape_cast %168 : vector<1x16x32xf32> to vector<16x32xf32>
    %170 = vector.shape_cast %167 : vector<16x32xf32> to vector<1x16x32xf32>
    tpu.vector_store %arg11[%c6, %c0_65, %c0_66], %170 {strides = array<i32>} : memref<8x16x32xf32, #tpu.memory_space<vmem>>, vector<1x16x32xf32>,
    %171 = vector.extract_strided_slice %76 {offsets = [6, 0], sizes = [1, 32], strides = [1, 1]} : vector<8x32xf32> to vector<1x32xf32>
    %172 = vector.extract_strided_slice %78 {offsets = [0, 6], sizes = [16, 1], strides = [1, 1]} : vector<16x8xf32> to vector<16x1xf32>
    %173 = vector.broadcast %171 : vector<1x32xf32> to vector<16x32xf32>
    %174 = vector.broadcast %172 : vector<16x1xf32> to vector<16x32xf32>
    %175 = arith.mulf %173, %174 : vector<16x32xf32>
    %c6_67 = arith.constant 6 : index
    %c0_68 = arith.constant 0 : index
    %c0_69 = arith.constant 0 : index
    %176 = vector.load %arg12[%c6_67, %c0_68, %c0_69] : memref<8x16x32xf32, #tpu.memory_space<vmem>>, vector<1x16x32xf32>
    %177 = vector.shape_cast %176 : vector<1x16x32xf32> to vector<16x32xf32>
    %178 = vector.shape_cast %175 : vector<16x32xf32> to vector<1x16x32xf32>
    tpu.vector_store %arg12[%c6_67, %c0_68, %c0_69], %178 {strides = array<i32>} : memref<8x16x32xf32, #tpu.memory_space<vmem>>, vector<1x16x32xf32>,
    %179 = vector.extract_strided_slice %74 {offsets = [7, 0], sizes = [1, 32], strides = [1, 1]} : vector<8x32xf32> to vector<1x32xf32>
    %180 = vector.broadcast %179 : vector<1x32xf32> to vector<16x32xf32>
    %181 = arith.mulf %180, %73 : vector<16x32xf32>
    %c7 = arith.constant 7 : index
    %c0_70 = arith.constant 0 : index
    %c0_71 = arith.constant 0 : index
    %182 = vector.load %arg11[%c7, %c0_70, %c0_71] : memref<8x16x32xf32, #tpu.memory_space<vmem>>, vector<1x16x32xf32>
    %183 = vector.shape_cast %182 : vector<1x16x32xf32> to vector<16x32xf32>
    %184 = vector.shape_cast %181 : vector<16x32xf32> to vector<1x16x32xf32>
    tpu.vector_store %arg11[%c7, %c0_70, %c0_71], %184 {strides = array<i32>} : memref<8x16x32xf32, #tpu.memory_space<vmem>>, vector<1x16x32xf32>,
    %185 = vector.extract_strided_slice %76 {offsets = [7, 0], sizes = [1, 32], strides = [1, 1]} : vector<8x32xf32> to vector<1x32xf32>
    %186 = vector.extract_strided_slice %78 {offsets = [0, 7], sizes = [16, 1], strides = [1, 1]} : vector<16x8xf32> to vector<16x1xf32>
    %187 = vector.broadcast %185 : vector<1x32xf32> to vector<16x32xf32>
    %188 = vector.broadcast %186 : vector<16x1xf32> to vector<16x32xf32>
    %189 = arith.mulf %187, %188 : vector<16x32xf32>
    %c7_72 = arith.constant 7 : index
    %c0_73 = arith.constant 0 : index
    %c0_74 = arith.constant 0 : index
    %190 = vector.load %arg12[%c7_72, %c0_73, %c0_74] : memref<8x16x32xf32, #tpu.memory_space<vmem>>, vector<1x16x32xf32>
    %191 = vector.shape_cast %190 : vector<1x16x32xf32> to vector<16x32xf32>
    %192 = vector.shape_cast %189 : vector<16x32xf32> to vector<1x16x32xf32>
    tpu.vector_store %arg12[%c7_72, %c0_73, %c0_74], %192 {strides = array<i32>} : memref<8x16x32xf32, #tpu.memory_space<vmem>>, vector<1x16x32xf32>,
    %c0_75 = arith.constant 0 : index
    %c0_76 = arith.constant 0 : index
    %c0_77 = arith.constant 0 : index
    %193 = vector.load %arg11[%c0_75, %c0_76, %c0_77] : memref<8x16x32xf32, #tpu.memory_space<vmem>>, vector<8x16x32xf32>
    %194 = math.exp %193 : vector<8x16x32xf32>
    %c0_78 = arith.constant 0 : index
    %c0_79 = arith.constant 0 : index
    %c0_80 = arith.constant 0 : index
    %195 = vector.load %arg11[%c0_78, %c0_79, %c0_80] : memref<8x16x32xf32, #tpu.memory_space<vmem>>, vector<8x16x32xf32>
    tpu.vector_store %arg11[%c0_78, %c0_79, %c0_80], %194 {strides = array<i32>} : memref<8x16x32xf32, #tpu.memory_space<vmem>>, vector<8x16x32xf32>,
    %cst_81 = arith.constant 0.000000e+00 : f32
    %196 = vector.broadcast %cst_81 : f32 to vector<16x32xf32>
    %c0_i32 = arith.constant 0 : i32
    %197 = arith.index_cast %c0_i32 : i32 to index
    %c0_82 = arith.constant 0 : index
    %c0_83 = arith.constant 0 : index
    %198 = vector.load %arg11[%197, %c0_82, %c0_83] : memref<8x16x32xf32, #tpu.memory_space<vmem>>, vector<1x16x32xf32>
    %199 = vector.shape_cast %198 : vector<1x16x32xf32> to vector<16x32xf32>
    %200 = arith.mulf %199, %196 : vector<16x32xf32>
    %201 = arith.index_cast %c0_i32 : i32 to index
    %c0_84 = arith.constant 0 : index
    %c0_85 = arith.constant 0 : index
    %202 = vector.load %arg12[%201, %c0_84, %c0_85] : memref<8x16x32xf32, #tpu.memory_space<vmem>>, vector<1x16x32xf32>
    %203 = vector.shape_cast %202 : vector<1x16x32xf32> to vector<16x32xf32>
    %204 = arith.addf %200, %203 : vector<16x32xf32>
    %205 = arith.index_cast %c0_i32 : i32 to index
    %c0_86 = arith.constant 0 : index
    %c0_87 = arith.constant 0 : index
    %206 = vector.load %arg13[%205, %c0_86, %c0_87] : memref<8x16x32xf32, #tpu.memory_space<vmem>>, vector<1x16x32xf32>
    %207 = vector.shape_cast %206 : vector<1x16x32xf32> to vector<16x32xf32>
    %208 = vector.shape_cast %204 : vector<16x32xf32> to vector<1x16x32xf32>
    tpu.vector_store %arg13[%205, %c0_86, %c0_87], %208 {strides = array<i32>} : memref<8x16x32xf32, #tpu.memory_space<vmem>>, vector<1x16x32xf32>,
    %c1_i32_88 = arith.constant 1 : i32
    %209 = arith.index_cast %c1_i32_88 : i32 to index
    %c0_89 = arith.constant 0 : index
    %c0_90 = arith.constant 0 : index
    %210 = vector.load %arg11[%209, %c0_89, %c0_90] : memref<8x16x32xf32, #tpu.memory_space<vmem>>, vector<1x16x32xf32>
    %211 = vector.shape_cast %210 : vector<1x16x32xf32> to vector<16x32xf32>
    %212 = arith.mulf %211, %204 : vector<16x32xf32>
    %213 = arith.index_cast %c1_i32_88 : i32 to index
    %c0_91 = arith.constant 0 : index
    %c0_92 = arith.constant 0 : index
    %214 = vector.load %arg12[%213, %c0_91, %c0_92] : memref<8x16x32xf32, #tpu.memory_space<vmem>>, vector<1x16x32xf32>
    %215 = vector.shape_cast %214 : vector<1x16x32xf32> to vector<16x32xf32>
    %216 = arith.addf %212, %215 : vector<16x32xf32>
    %217 = arith.index_cast %c1_i32_88 : i32 to index
    %c0_93 = arith.constant 0 : index
    %c0_94 = arith.constant 0 : index
    %218 = vector.load %arg13[%217, %c0_93, %c0_94] : memref<8x16x32xf32, #tpu.memory_space<vmem>>, vector<1x16x32xf32>
    %219 = vector.shape_cast %218 : vector<1x16x32xf32> to vector<16x32xf32>
    %220 = vector.shape_cast %216 : vector<16x32xf32> to vector<1x16x32xf32>
    tpu.vector_store %arg13[%217, %c0_93, %c0_94], %220 {strides = array<i32>} : memref<8x16x32xf32, #tpu.memory_space<vmem>>, vector<1x16x32xf32>,
    %c2_i32_95 = arith.constant 2 : i32
    %221 = arith.index_cast %c2_i32_95 : i32 to index
    %c0_96 = arith.constant 0 : index
    %c0_97 = arith.constant 0 : index
    %222 = vector.load %arg11[%221, %c0_96, %c0_97] : memref<8x16x32xf32, #tpu.memory_space<vmem>>, vector<1x16x32xf32>
    %223 = vector.shape_cast %222 : vector<1x16x32xf32> to vector<16x32xf32>
    %224 = arith.mulf %223, %216 : vector<16x32xf32>
    %225 = arith.index_cast %c2_i32_95 : i32 to index
    %c0_98 = arith.constant 0 : index
    %c0_99 = arith.constant 0 : index
    %226 = vector.load %arg12[%225, %c0_98, %c0_99] : memref<8x16x32xf32, #tpu.memory_space<vmem>>, vector<1x16x32xf32>
    %227 = vector.shape_cast %226 : vector<1x16x32xf32> to vector<16x32xf32>
    %228 = arith.addf %224, %227 : vector<16x32xf32>
    %229 = arith.index_cast %c2_i32_95 : i32 to index
    %c0_100 = arith.constant 0 : index
    %c0_101 = arith.constant 0 : index
    %230 = vector.load %arg13[%229, %c0_100, %c0_101] : memref<8x16x32xf32, #tpu.memory_space<vmem>>, vector<1x16x32xf32>
    %231 = vector.shape_cast %230 : vector<1x16x32xf32> to vector<16x32xf32>
    %232 = vector.shape_cast %228 : vector<16x32xf32> to vector<1x16x32xf32>
    tpu.vector_store %arg13[%229, %c0_100, %c0_101], %232 {strides = array<i32>} : memref<8x16x32xf32, #tpu.memory_space<vmem>>, vector<1x16x32xf32>,
    %c3_i32_102 = arith.constant 3 : i32
    %233 = arith.index_cast %c3_i32_102 : i32 to index
    %c0_103 = arith.constant 0 : index
    %c0_104 = arith.constant 0 : index
    %234 = vector.load %arg11[%233, %c0_103, %c0_104] : memref<8x16x32xf32, #tpu.memory_space<vmem>>, vector<1x16x32xf32>
    %235 = vector.shape_cast %234 : vector<1x16x32xf32> to vector<16x32xf32>
    %236 = arith.mulf %235, %228 : vector<16x32xf32>
    %237 = arith.index_cast %c3_i32_102 : i32 to index
    %c0_105 = arith.constant 0 : index
    %c0_106 = arith.constant 0 : index
    %238 = vector.load %arg12[%237, %c0_105, %c0_106] : memref<8x16x32xf32, #tpu.memory_space<vmem>>, vector<1x16x32xf32>
    %239 = vector.shape_cast %238 : vector<1x16x32xf32> to vector<16x32xf32>
    %240 = arith.addf %236, %239 : vector<16x32xf32>
    %241 = arith.index_cast %c3_i32_102 : i32 to index
    %c0_107 = arith.constant 0 : index
    %c0_108 = arith.constant 0 : index
    %242 = vector.load %arg13[%241, %c0_107, %c0_108] : memref<8x16x32xf32, #tpu.memory_space<vmem>>, vector<1x16x32xf32>
    %243 = vector.shape_cast %242 : vector<1x16x32xf32> to vector<16x32xf32>
    %244 = vector.shape_cast %240 : vector<16x32xf32> to vector<1x16x32xf32>
    tpu.vector_store %arg13[%241, %c0_107, %c0_108], %244 {strides = array<i32>} : memref<8x16x32xf32, #tpu.memory_space<vmem>>, vector<1x16x32xf32>,
    %c4_i32 = arith.constant 4 : i32
    %245 = arith.index_cast %c4_i32 : i32 to index
    %c0_109 = arith.constant 0 : index
    %c0_110 = arith.constant 0 : index
    %246 = vector.load %arg11[%245, %c0_109, %c0_110] : memref<8x16x32xf32, #tpu.memory_space<vmem>>, vector<1x16x32xf32>
    %247 = vector.shape_cast %246 : vector<1x16x32xf32> to vector<16x32xf32>
    %248 = arith.mulf %247, %240 : vector<16x32xf32>
    %249 = arith.index_cast %c4_i32 : i32 to index
    %c0_111 = arith.constant 0 : index
    %c0_112 = arith.constant 0 : index
    %250 = vector.load %arg12[%249, %c0_111, %c0_112] : memref<8x16x32xf32, #tpu.memory_space<vmem>>, vector<1x16x32xf32>
    %251 = vector.shape_cast %250 : vector<1x16x32xf32> to vector<16x32xf32>
    %252 = arith.addf %248, %251 : vector<16x32xf32>
    %253 = arith.index_cast %c4_i32 : i32 to index
    %c0_113 = arith.constant 0 : index
    %c0_114 = arith.constant 0 : index
    %254 = vector.load %arg13[%253, %c0_113, %c0_114] : memref<8x16x32xf32, #tpu.memory_space<vmem>>, vector<1x16x32xf32>
    %255 = vector.shape_cast %254 : vector<1x16x32xf32> to vector<16x32xf32>
    %256 = vector.shape_cast %252 : vector<16x32xf32> to vector<1x16x32xf32>
    tpu.vector_store %arg13[%253, %c0_113, %c0_114], %256 {strides = array<i32>} : memref<8x16x32xf32, #tpu.memory_space<vmem>>, vector<1x16x32xf32>,
    %c5_i32 = arith.constant 5 : i32
    %257 = arith.index_cast %c5_i32 : i32 to index
    %c0_115 = arith.constant 0 : index
    %c0_116 = arith.constant 0 : index
    %258 = vector.load %arg11[%257, %c0_115, %c0_116] : memref<8x16x32xf32, #tpu.memory_space<vmem>>, vector<1x16x32xf32>
    %259 = vector.shape_cast %258 : vector<1x16x32xf32> to vector<16x32xf32>
    %260 = arith.mulf %259, %252 : vector<16x32xf32>
    %261 = arith.index_cast %c5_i32 : i32 to index
    %c0_117 = arith.constant 0 : index
    %c0_118 = arith.constant 0 : index
    %262 = vector.load %arg12[%261, %c0_117, %c0_118] : memref<8x16x32xf32, #tpu.memory_space<vmem>>, vector<1x16x32xf32>
    %263 = vector.shape_cast %262 : vector<1x16x32xf32> to vector<16x32xf32>
    %264 = arith.addf %260, %263 : vector<16x32xf32>
    %265 = arith.index_cast %c5_i32 : i32 to index
    %c0_119 = arith.constant 0 : index
    %c0_120 = arith.constant 0 : index
    %266 = vector.load %arg13[%265, %c0_119, %c0_120] : memref<8x16x32xf32, #tpu.memory_space<vmem>>, vector<1x16x32xf32>
    %267 = vector.shape_cast %266 : vector<1x16x32xf32> to vector<16x32xf32>
    %268 = vector.shape_cast %264 : vector<16x32xf32> to vector<1x16x32xf32>
    tpu.vector_store %arg13[%265, %c0_119, %c0_120], %268 {strides = array<i32>} : memref<8x16x32xf32, #tpu.memory_space<vmem>>, vector<1x16x32xf32>,
    %c6_i32 = arith.constant 6 : i32
    %269 = arith.index_cast %c6_i32 : i32 to index
    %c0_121 = arith.constant 0 : index
    %c0_122 = arith.constant 0 : index
    %270 = vector.load %arg11[%269, %c0_121, %c0_122] : memref<8x16x32xf32, #tpu.memory_space<vmem>>, vector<1x16x32xf32>
    %271 = vector.shape_cast %270 : vector<1x16x32xf32> to vector<16x32xf32>
    %272 = arith.mulf %271, %264 : vector<16x32xf32>
    %273 = arith.index_cast %c6_i32 : i32 to index
    %c0_123 = arith.constant 0 : index
    %c0_124 = arith.constant 0 : index
    %274 = vector.load %arg12[%273, %c0_123, %c0_124] : memref<8x16x32xf32, #tpu.memory_space<vmem>>, vector<1x16x32xf32>
    %275 = vector.shape_cast %274 : vector<1x16x32xf32> to vector<16x32xf32>
    %276 = arith.addf %272, %275 : vector<16x32xf32>
    %277 = arith.index_cast %c6_i32 : i32 to index
    %c0_125 = arith.constant 0 : index
    %c0_126 = arith.constant 0 : index
    %278 = vector.load %arg13[%277, %c0_125, %c0_126] : memref<8x16x32xf32, #tpu.memory_space<vmem>>, vector<1x16x32xf32>
    %279 = vector.shape_cast %278 : vector<1x16x32xf32> to vector<16x32xf32>
    %280 = vector.shape_cast %276 : vector<16x32xf32> to vector<1x16x32xf32>
    tpu.vector_store %arg13[%277, %c0_125, %c0_126], %280 {strides = array<i32>} : memref<8x16x32xf32, #tpu.memory_space<vmem>>, vector<1x16x32xf32>,
    %c7_i32_127 = arith.constant 7 : i32
    %281 = arith.index_cast %c7_i32_127 : i32 to index
    %c0_128 = arith.constant 0 : index
    %c0_129 = arith.constant 0 : index
    %282 = vector.load %arg11[%281, %c0_128, %c0_129] : memref<8x16x32xf32, #tpu.memory_space<vmem>>, vector<1x16x32xf32>
    %283 = vector.shape_cast %282 : vector<1x16x32xf32> to vector<16x32xf32>
    %284 = arith.mulf %283, %276 : vector<16x32xf32>
    %285 = arith.index_cast %c7_i32_127 : i32 to index
    %c0_130 = arith.constant 0 : index
    %c0_131 = arith.constant 0 : index
    %286 = vector.load %arg12[%285, %c0_130, %c0_131] : memref<8x16x32xf32, #tpu.memory_space<vmem>>, vector<1x16x32xf32>
    %287 = vector.shape_cast %286 : vector<1x16x32xf32> to vector<16x32xf32>
    %288 = arith.addf %284, %287 : vector<16x32xf32>
    %289 = arith.index_cast %c7_i32_127 : i32 to index
    %c0_132 = arith.constant 0 : index
    %c0_133 = arith.constant 0 : index
    %290 = vector.load %arg13[%289, %c0_132, %c0_133] : memref<8x16x32xf32, #tpu.memory_space<vmem>>, vector<1x16x32xf32>
    %291 = vector.shape_cast %290 : vector<1x16x32xf32> to vector<16x32xf32>
    %292 = vector.shape_cast %288 : vector<16x32xf32> to vector<1x16x32xf32>
    tpu.vector_store %arg13[%289, %c0_132, %c0_133], %292 {strides = array<i32>} : memref<8x16x32xf32, #tpu.memory_space<vmem>>, vector<1x16x32xf32>,
    %c8_i32 = arith.constant 8 : i32
    %293 = vector.extract_strided_slice %80 {offsets = [0, 0], sizes = [16, 1], strides = [1, 1]} : vector<16x8xf32> to vector<16x1xf32>
    %c0_134 = arith.constant 0 : index
    %c0_135 = arith.constant 0 : index
    %c0_136 = arith.constant 0 : index
    %294 = vector.load %arg13[%c0_134, %c0_135, %c0_136] : memref<8x16x32xf32, #tpu.memory_space<vmem>>, vector<1x16x32xf32>
    %295 = vector.shape_cast %294 : vector<1x16x32xf32> to vector<16x32xf32>
    %296 = vector.broadcast %293 : vector<16x1xf32> to vector<16x32xf32>
    %297 = arith.mulf %296, %295 : vector<16x32xf32>
    %cst_137 = arith.constant dense<0.000000e+00> : vector<32xf32>
    %298 = vector.multi_reduction <add>, %297, %cst_137 [0] : vector<16x32xf32> to vector<32xf32>
    %299 = vector.shape_cast %298 : vector<32xf32> to vector<1x32xf32>
    %300 = vector.extract_strided_slice %80 {offsets = [0, 1], sizes = [16, 1], strides = [1, 1]} : vector<16x8xf32> to vector<16x1xf32>
    %c1_138 = arith.constant 1 : index
    %c0_139 = arith.constant 0 : index
    %c0_140 = arith.constant 0 : index
    %301 = vector.load %arg13[%c1_138, %c0_139, %c0_140] : memref<8x16x32xf32, #tpu.memory_space<vmem>>, vector<1x16x32xf32>
    %302 = vector.shape_cast %301 : vector<1x16x32xf32> to vector<16x32xf32>
    %303 = vector.broadcast %300 : vector<16x1xf32> to vector<16x32xf32>
    %304 = arith.mulf %303, %302 : vector<16x32xf32>
    %cst_141 = arith.constant dense<0.000000e+00> : vector<32xf32>
    %305 = vector.multi_reduction <add>, %304, %cst_141 [0] : vector<16x32xf32> to vector<32xf32>
    %306 = vector.shape_cast %305 : vector<32xf32> to vector<1x32xf32>
    %307 = vector.extract_strided_slice %80 {offsets = [0, 2], sizes = [16, 1], strides = [1, 1]} : vector<16x8xf32> to vector<16x1xf32>
    %c2_142 = arith.constant 2 : index
    %c0_143 = arith.constant 0 : index
    %c0_144 = arith.constant 0 : index
    %308 = vector.load %arg13[%c2_142, %c0_143, %c0_144] : memref<8x16x32xf32, #tpu.memory_space<vmem>>, vector<1x16x32xf32>
    %309 = vector.shape_cast %308 : vector<1x16x32xf32> to vector<16x32xf32>
    %310 = vector.broadcast %307 : vector<16x1xf32> to vector<16x32xf32>
    %311 = arith.mulf %310, %309 : vector<16x32xf32>
    %cst_145 = arith.constant dense<0.000000e+00> : vector<32xf32>
    %312 = vector.multi_reduction <add>, %311, %cst_145 [0] : vector<16x32xf32> to vector<32xf32>
    %313 = vector.shape_cast %312 : vector<32xf32> to vector<1x32xf32>
    %314 = vector.extract_strided_slice %80 {offsets = [0, 3], sizes = [16, 1], strides = [1, 1]} : vector<16x8xf32> to vector<16x1xf32>
    %c3_146 = arith.constant 3 : index
    %c0_147 = arith.constant 0 : index
    %c0_148 = arith.constant 0 : index
    %315 = vector.load %arg13[%c3_146, %c0_147, %c0_148] : memref<8x16x32xf32, #tpu.memory_space<vmem>>, vector<1x16x32xf32>
    %316 = vector.shape_cast %315 : vector<1x16x32xf32> to vector<16x32xf32>
    %317 = vector.broadcast %314 : vector<16x1xf32> to vector<16x32xf32>
    %318 = arith.mulf %317, %316 : vector<16x32xf32>
    %cst_149 = arith.constant dense<0.000000e+00> : vector<32xf32>
    %319 = vector.multi_reduction <add>, %318, %cst_149 [0] : vector<16x32xf32> to vector<32xf32>
    %320 = vector.shape_cast %319 : vector<32xf32> to vector<1x32xf32>
    %321 = vector.extract_strided_slice %80 {offsets = [0, 4], sizes = [16, 1], strides = [1, 1]} : vector<16x8xf32> to vector<16x1xf32>
    %c4_150 = arith.constant 4 : index
    %c0_151 = arith.constant 0 : index
    %c0_152 = arith.constant 0 : index
    %322 = vector.load %arg13[%c4_150, %c0_151, %c0_152] : memref<8x16x32xf32, #tpu.memory_space<vmem>>, vector<1x16x32xf32>
    %323 = vector.shape_cast %322 : vector<1x16x32xf32> to vector<16x32xf32>
    %324 = vector.broadcast %321 : vector<16x1xf32> to vector<16x32xf32>
    %325 = arith.mulf %324, %323 : vector<16x32xf32>
    %cst_153 = arith.constant dense<0.000000e+00> : vector<32xf32>
    %326 = vector.multi_reduction <add>, %325, %cst_153 [0] : vector<16x32xf32> to vector<32xf32>
    %327 = vector.shape_cast %326 : vector<32xf32> to vector<1x32xf32>
    %328 = vector.extract_strided_slice %80 {offsets = [0, 5], sizes = [16, 1], strides = [1, 1]} : vector<16x8xf32> to vector<16x1xf32>
    %c5_154 = arith.constant 5 : index
    %c0_155 = arith.constant 0 : index
    %c0_156 = arith.constant 0 : index
    %329 = vector.load %arg13[%c5_154, %c0_155, %c0_156] : memref<8x16x32xf32, #tpu.memory_space<vmem>>, vector<1x16x32xf32>
    %330 = vector.shape_cast %329 : vector<1x16x32xf32> to vector<16x32xf32>
    %331 = vector.broadcast %328 : vector<16x1xf32> to vector<16x32xf32>
    %332 = arith.mulf %331, %330 : vector<16x32xf32>
    %cst_157 = arith.constant dense<0.000000e+00> : vector<32xf32>
    %333 = vector.multi_reduction <add>, %332, %cst_157 [0] : vector<16x32xf32> to vector<32xf32>
    %334 = vector.shape_cast %333 : vector<32xf32> to vector<1x32xf32>
    %335 = vector.extract_strided_slice %80 {offsets = [0, 6], sizes = [16, 1], strides = [1, 1]} : vector<16x8xf32> to vector<16x1xf32>
    %c6_158 = arith.constant 6 : index
    %c0_159 = arith.constant 0 : index
    %c0_160 = arith.constant 0 : index
    %336 = vector.load %arg13[%c6_158, %c0_159, %c0_160] : memref<8x16x32xf32, #tpu.memory_space<vmem>>, vector<1x16x32xf32>
    %337 = vector.shape_cast %336 : vector<1x16x32xf32> to vector<16x32xf32>
    %338 = vector.broadcast %335 : vector<16x1xf32> to vector<16x32xf32>
    %339 = arith.mulf %338, %337 : vector<16x32xf32>
    %cst_161 = arith.constant dense<0.000000e+00> : vector<32xf32>
    %340 = vector.multi_reduction <add>, %339, %cst_161 [0] : vector<16x32xf32> to vector<32xf32>
    %341 = vector.shape_cast %340 : vector<32xf32> to vector<1x32xf32>
    %342 = vector.extract_strided_slice %80 {offsets = [0, 7], sizes = [16, 1], strides = [1, 1]} : vector<16x8xf32> to vector<16x1xf32>
    %c7_162 = arith.constant 7 : index
    %c0_163 = arith.constant 0 : index
    %c0_164 = arith.constant 0 : index
    %343 = vector.load %arg13[%c7_162, %c0_163, %c0_164] : memref<8x16x32xf32, #tpu.memory_space<vmem>>, vector<1x16x32xf32>
    %344 = vector.shape_cast %343 : vector<1x16x32xf32> to vector<16x32xf32>
    %345 = vector.broadcast %342 : vector<16x1xf32> to vector<16x32xf32>
    %346 = arith.mulf %345, %344 : vector<16x32xf32>
    %cst_165 = arith.constant dense<0.000000e+00> : vector<32xf32>
    %347 = vector.multi_reduction <add>, %346, %cst_165 [0] : vector<16x32xf32> to vector<32xf32>
    %348 = vector.shape_cast %347 : vector<32xf32> to vector<1x32xf32>
    %349 = tpu.concatenate %299, %306, %313, %320, %327, %334, %341, %348 in 0 : vector<1x32xf32>, vector<1x32xf32>, vector<1x32xf32>, vector<1x32xf32>, vector<1x32xf32>, vector<1x32xf32>, vector<1x32xf32>, vector<1x32xf32> -> vector<8x32xf32>
    %350 = vector.extract_strided_slice %69 {offsets = [8, 0], sizes = [8, 32], strides = [1, 1]} : vector<16x32xf32> to vector<8x32xf32>
    %351 = vector.extract_strided_slice %47 {offsets = [8, 0], sizes = [8, 32], strides = [1, 1]} : vector<16x32xf32> to vector<8x32xf32>
    %352 = arith.mulf %350, %351 : vector<8x32xf32>
    %353 = vector.extract_strided_slice %50 {offsets = [8, 0], sizes = [8, 16], strides = [1, 1]} : vector<16x16xf32> to vector<8x16xf32>
    %354 = tpu.transpose %353, [1, 0] : vector<8x16xf32> -> vector<16x8xf32>
    %355 = vector.extract_strided_slice %51 {offsets = [8, 0], sizes = [8, 16], strides = [1, 1]} : vector<16x16xf32> to vector<8x16xf32>
    %356 = tpu.transpose %355, [1, 0] : vector<8x16xf32> -> vector<16x8xf32>
    %357 = vector.extract_strided_slice %350 {offsets = [0, 0], sizes = [1, 32], strides = [1, 1]} : vector<8x32xf32> to vector<1x32xf32>
    %358 = vector.broadcast %357 : vector<1x32xf32> to vector<16x32xf32>
    %359 = arith.mulf %358, %73 : vector<16x32xf32>
    %c0_166 = arith.constant 0 : index
    %c0_167 = arith.constant 0 : index
    %c0_168 = arith.constant 0 : index
    %360 = vector.load %arg11[%c0_166, %c0_167, %c0_168] : memref<8x16x32xf32, #tpu.memory_space<vmem>>, vector<1x16x32xf32>
    %361 = vector.shape_cast %360 : vector<1x16x32xf32> to vector<16x32xf32>
    %362 = vector.shape_cast %359 : vector<16x32xf32> to vector<1x16x32xf32>
    tpu.vector_store %arg11[%c0_166, %c0_167, %c0_168], %362 {strides = array<i32>} : memref<8x16x32xf32, #tpu.memory_space<vmem>>, vector<1x16x32xf32>,
    %363 = vector.extract_strided_slice %352 {offsets = [0, 0], sizes = [1, 32], strides = [1, 1]} : vector<8x32xf32> to vector<1x32xf32>
    %364 = vector.extract_strided_slice %354 {offsets = [0, 0], sizes = [16, 1], strides = [1, 1]} : vector<16x8xf32> to vector<16x1xf32>
    %365 = vector.broadcast %363 : vector<1x32xf32> to vector<16x32xf32>
    %366 = vector.broadcast %364 : vector<16x1xf32> to vector<16x32xf32>
    %367 = arith.mulf %365, %366 : vector<16x32xf32>
    %c0_169 = arith.constant 0 : index
    %c0_170 = arith.constant 0 : index
    %c0_171 = arith.constant 0 : index
    %368 = vector.load %arg12[%c0_169, %c0_170, %c0_171] : memref<8x16x32xf32, #tpu.memory_space<vmem>>, vector<1x16x32xf32>
    %369 = vector.shape_cast %368 : vector<1x16x32xf32> to vector<16x32xf32>
    %370 = vector.shape_cast %367 : vector<16x32xf32> to vector<1x16x32xf32>
    tpu.vector_store %arg12[%c0_169, %c0_170, %c0_171], %370 {strides = array<i32>} : memref<8x16x32xf32, #tpu.memory_space<vmem>>, vector<1x16x32xf32>,
    %371 = vector.extract_strided_slice %350 {offsets = [1, 0], sizes = [1, 32], strides = [1, 1]} : vector<8x32xf32> to vector<1x32xf32>
    %372 = vector.broadcast %371 : vector<1x32xf32> to vector<16x32xf32>
    %373 = arith.mulf %372, %73 : vector<16x32xf32>
    %c1_172 = arith.constant 1 : index
    %c0_173 = arith.constant 0 : index
    %c0_174 = arith.constant 0 : index
    %374 = vector.load %arg11[%c1_172, %c0_173, %c0_174] : memref<8x16x32xf32, #tpu.memory_space<vmem>>, vector<1x16x32xf32>
    %375 = vector.shape_cast %374 : vector<1x16x32xf32> to vector<16x32xf32>
    %376 = vector.shape_cast %373 : vector<16x32xf32> to vector<1x16x32xf32>
    tpu.vector_store %arg11[%c1_172, %c0_173, %c0_174], %376 {strides = array<i32>} : memref<8x16x32xf32, #tpu.memory_space<vmem>>, vector<1x16x32xf32>,
    %377 = vector.extract_strided_slice %352 {offsets = [1, 0], sizes = [1, 32], strides = [1, 1]} : vector<8x32xf32> to vector<1x32xf32>
    %378 = vector.extract_strided_slice %354 {offsets = [0, 1], sizes = [16, 1], strides = [1, 1]} : vector<16x8xf32> to vector<16x1xf32>
    %379 = vector.broadcast %377 : vector<1x32xf32> to vector<16x32xf32>
    %380 = vector.broadcast %378 : vector<16x1xf32> to vector<16x32xf32>
    %381 = arith.mulf %379, %380 : vector<16x32xf32>
    %c1_175 = arith.constant 1 : index
    %c0_176 = arith.constant 0 : index
    %c0_177 = arith.constant 0 : index
    %382 = vector.load %arg12[%c1_175, %c0_176, %c0_177] : memref<8x16x32xf32, #tpu.memory_space<vmem>>, vector<1x16x32xf32>
    %383 = vector.shape_cast %382 : vector<1x16x32xf32> to vector<16x32xf32>
    %384 = vector.shape_cast %381 : vector<16x32xf32> to vector<1x16x32xf32>
    tpu.vector_store %arg12[%c1_175, %c0_176, %c0_177], %384 {strides = array<i32>} : memref<8x16x32xf32, #tpu.memory_space<vmem>>, vector<1x16x32xf32>,
    %385 = vector.extract_strided_slice %350 {offsets = [2, 0], sizes = [1, 32], strides = [1, 1]} : vector<8x32xf32> to vector<1x32xf32>
    %386 = vector.broadcast %385 : vector<1x32xf32> to vector<16x32xf32>
    %387 = arith.mulf %386, %73 : vector<16x32xf32>
    %c2_178 = arith.constant 2 : index
    %c0_179 = arith.constant 0 : index
    %c0_180 = arith.constant 0 : index
    %388 = vector.load %arg11[%c2_178, %c0_179, %c0_180] : memref<8x16x32xf32, #tpu.memory_space<vmem>>, vector<1x16x32xf32>
    %389 = vector.shape_cast %388 : vector<1x16x32xf32> to vector<16x32xf32>
    %390 = vector.shape_cast %387 : vector<16x32xf32> to vector<1x16x32xf32>
    tpu.vector_store %arg11[%c2_178, %c0_179, %c0_180], %390 {strides = array<i32>} : memref<8x16x32xf32, #tpu.memory_space<vmem>>, vector<1x16x32xf32>,
    %391 = vector.extract_strided_slice %352 {offsets = [2, 0], sizes = [1, 32], strides = [1, 1]} : vector<8x32xf32> to vector<1x32xf32>
    %392 = vector.extract_strided_slice %354 {offsets = [0, 2], sizes = [16, 1], strides = [1, 1]} : vector<16x8xf32> to vector<16x1xf32>
    %393 = vector.broadcast %391 : vector<1x32xf32> to vector<16x32xf32>
    %394 = vector.broadcast %392 : vector<16x1xf32> to vector<16x32xf32>
    %395 = arith.mulf %393, %394 : vector<16x32xf32>
    %c2_181 = arith.constant 2 : index
    %c0_182 = arith.constant 0 : index
    %c0_183 = arith.constant 0 : index
    %396 = vector.load %arg12[%c2_181, %c0_182, %c0_183] : memref<8x16x32xf32, #tpu.memory_space<vmem>>, vector<1x16x32xf32>
    %397 = vector.shape_cast %396 : vector<1x16x32xf32> to vector<16x32xf32>
    %398 = vector.shape_cast %395 : vector<16x32xf32> to vector<1x16x32xf32>
    tpu.vector_store %arg12[%c2_181, %c0_182, %c0_183], %398 {strides = array<i32>} : memref<8x16x32xf32, #tpu.memory_space<vmem>>, vector<1x16x32xf32>,
    %399 = vector.extract_strided_slice %350 {offsets = [3, 0], sizes = [1, 32], strides = [1, 1]} : vector<8x32xf32> to vector<1x32xf32>
    %400 = vector.broadcast %399 : vector<1x32xf32> to vector<16x32xf32>
    %401 = arith.mulf %400, %73 : vector<16x32xf32>
    %c3_184 = arith.constant 3 : index
    %c0_185 = arith.constant 0 : index
    %c0_186 = arith.constant 0 : index
    %402 = vector.load %arg11[%c3_184, %c0_185, %c0_186] : memref<8x16x32xf32, #tpu.memory_space<vmem>>, vector<1x16x32xf32>
    %403 = vector.shape_cast %402 : vector<1x16x32xf32> to vector<16x32xf32>
    %404 = vector.shape_cast %401 : vector<16x32xf32> to vector<1x16x32xf32>
    tpu.vector_store %arg11[%c3_184, %c0_185, %c0_186], %404 {strides = array<i32>} : memref<8x16x32xf32, #tpu.memory_space<vmem>>, vector<1x16x32xf32>,
    %405 = vector.extract_strided_slice %352 {offsets = [3, 0], sizes = [1, 32], strides = [1, 1]} : vector<8x32xf32> to vector<1x32xf32>
    %406 = vector.extract_strided_slice %354 {offsets = [0, 3], sizes = [16, 1], strides = [1, 1]} : vector<16x8xf32> to vector<16x1xf32>
    %407 = vector.broadcast %405 : vector<1x32xf32> to vector<16x32xf32>
    %408 = vector.broadcast %406 : vector<16x1xf32> to vector<16x32xf32>
    %409 = arith.mulf %407, %408 : vector<16x32xf32>
    %c3_187 = arith.constant 3 : index
    %c0_188 = arith.constant 0 : index
    %c0_189 = arith.constant 0 : index
    %410 = vector.load %arg12[%c3_187, %c0_188, %c0_189] : memref<8x16x32xf32, #tpu.memory_space<vmem>>, vector<1x16x32xf32>
    %411 = vector.shape_cast %410 : vector<1x16x32xf32> to vector<16x32xf32>
    %412 = vector.shape_cast %409 : vector<16x32xf32> to vector<1x16x32xf32>
    tpu.vector_store %arg12[%c3_187, %c0_188, %c0_189], %412 {strides = array<i32>} : memref<8x16x32xf32, #tpu.memory_space<vmem>>, vector<1x16x32xf32>,
    %413 = vector.extract_strided_slice %350 {offsets = [4, 0], sizes = [1, 32], strides = [1, 1]} : vector<8x32xf32> to vector<1x32xf32>
    %414 = vector.broadcast %413 : vector<1x32xf32> to vector<16x32xf32>
    %415 = arith.mulf %414, %73 : vector<16x32xf32>
    %c4_190 = arith.constant 4 : index
    %c0_191 = arith.constant 0 : index
    %c0_192 = arith.constant 0 : index
    %416 = vector.load %arg11[%c4_190, %c0_191, %c0_192] : memref<8x16x32xf32, #tpu.memory_space<vmem>>, vector<1x16x32xf32>
    %417 = vector.shape_cast %416 : vector<1x16x32xf32> to vector<16x32xf32>
    %418 = vector.shape_cast %415 : vector<16x32xf32> to vector<1x16x32xf32>
    tpu.vector_store %arg11[%c4_190, %c0_191, %c0_192], %418 {strides = array<i32>} : memref<8x16x32xf32, #tpu.memory_space<vmem>>, vector<1x16x32xf32>,
    %419 = vector.extract_strided_slice %352 {offsets = [4, 0], sizes = [1, 32], strides = [1, 1]} : vector<8x32xf32> to vector<1x32xf32>
    %420 = vector.extract_strided_slice %354 {offsets = [0, 4], sizes = [16, 1], strides = [1, 1]} : vector<16x8xf32> to vector<16x1xf32>
    %421 = vector.broadcast %419 : vector<1x32xf32> to vector<16x32xf32>
    %422 = vector.broadcast %420 : vector<16x1xf32> to vector<16x32xf32>
    %423 = arith.mulf %421, %422 : vector<16x32xf32>
    %c4_193 = arith.constant 4 : index
    %c0_194 = arith.constant 0 : index
    %c0_195 = arith.constant 0 : index
    %424 = vector.load %arg12[%c4_193, %c0_194, %c0_195] : memref<8x16x32xf32, #tpu.memory_space<vmem>>, vector<1x16x32xf32>
    %425 = vector.shape_cast %424 : vector<1x16x32xf32> to vector<16x32xf32>
    %426 = vector.shape_cast %423 : vector<16x32xf32> to vector<1x16x32xf32>
    tpu.vector_store %arg12[%c4_193, %c0_194, %c0_195], %426 {strides = array<i32>} : memref<8x16x32xf32, #tpu.memory_space<vmem>>, vector<1x16x32xf32>,
    %427 = vector.extract_strided_slice %350 {offsets = [5, 0], sizes = [1, 32], strides = [1, 1]} : vector<8x32xf32> to vector<1x32xf32>
    %428 = vector.broadcast %427 : vector<1x32xf32> to vector<16x32xf32>
    %429 = arith.mulf %428, %73 : vector<16x32xf32>
    %c5_196 = arith.constant 5 : index
    %c0_197 = arith.constant 0 : index
    %c0_198 = arith.constant 0 : index
    %430 = vector.load %arg11[%c5_196, %c0_197, %c0_198] : memref<8x16x32xf32, #tpu.memory_space<vmem>>, vector<1x16x32xf32>
    %431 = vector.shape_cast %430 : vector<1x16x32xf32> to vector<16x32xf32>
    %432 = vector.shape_cast %429 : vector<16x32xf32> to vector<1x16x32xf32>
    tpu.vector_store %arg11[%c5_196, %c0_197, %c0_198], %432 {strides = array<i32>} : memref<8x16x32xf32, #tpu.memory_space<vmem>>, vector<1x16x32xf32>,
    %433 = vector.extract_strided_slice %352 {offsets = [5, 0], sizes = [1, 32], strides = [1, 1]} : vector<8x32xf32> to vector<1x32xf32>
    %434 = vector.extract_strided_slice %354 {offsets = [0, 5], sizes = [16, 1], strides = [1, 1]} : vector<16x8xf32> to vector<16x1xf32>
    %435 = vector.broadcast %433 : vector<1x32xf32> to vector<16x32xf32>
    %436 = vector.broadcast %434 : vector<16x1xf32> to vector<16x32xf32>
    %437 = arith.mulf %435, %436 : vector<16x32xf32>
    %c5_199 = arith.constant 5 : index
    %c0_200 = arith.constant 0 : index
    %c0_201 = arith.constant 0 : index
    %438 = vector.load %arg12[%c5_199, %c0_200, %c0_201] : memref<8x16x32xf32, #tpu.memory_space<vmem>>, vector<1x16x32xf32>
    %439 = vector.shape_cast %438 : vector<1x16x32xf32> to vector<16x32xf32>
    %440 = vector.shape_cast %437 : vector<16x32xf32> to vector<1x16x32xf32>
    tpu.vector_store %arg12[%c5_199, %c0_200, %c0_201], %440 {strides = array<i32>} : memref<8x16x32xf32, #tpu.memory_space<vmem>>, vector<1x16x32xf32>,
    %441 = vector.extract_strided_slice %350 {offsets = [6, 0], sizes = [1, 32], strides = [1, 1]} : vector<8x32xf32> to vector<1x32xf32>
    %442 = vector.broadcast %441 : vector<1x32xf32> to vector<16x32xf32>
    %443 = arith.mulf %442, %73 : vector<16x32xf32>
    %c6_202 = arith.constant 6 : index
    %c0_203 = arith.constant 0 : index
    %c0_204 = arith.constant 0 : index
    %444 = vector.load %arg11[%c6_202, %c0_203, %c0_204] : memref<8x16x32xf32, #tpu.memory_space<vmem>>, vector<1x16x32xf32>
    %445 = vector.shape_cast %444 : vector<1x16x32xf32> to vector<16x32xf32>
    %446 = vector.shape_cast %443 : vector<16x32xf32> to vector<1x16x32xf32>
    tpu.vector_store %arg11[%c6_202, %c0_203, %c0_204], %446 {strides = array<i32>} : memref<8x16x32xf32, #tpu.memory_space<vmem>>, vector<1x16x32xf32>,
    %447 = vector.extract_strided_slice %352 {offsets = [6, 0], sizes = [1, 32], strides = [1, 1]} : vector<8x32xf32> to vector<1x32xf32>
    %448 = vector.extract_strided_slice %354 {offsets = [0, 6], sizes = [16, 1], strides = [1, 1]} : vector<16x8xf32> to vector<16x1xf32>
    %449 = vector.broadcast %447 : vector<1x32xf32> to vector<16x32xf32>
    %450 = vector.broadcast %448 : vector<16x1xf32> to vector<16x32xf32>
    %451 = arith.mulf %449, %450 : vector<16x32xf32>
    %c6_205 = arith.constant 6 : index
    %c0_206 = arith.constant 0 : index
    %c0_207 = arith.constant 0 : index
    %452 = vector.load %arg12[%c6_205, %c0_206, %c0_207] : memref<8x16x32xf32, #tpu.memory_space<vmem>>, vector<1x16x32xf32>
    %453 = vector.shape_cast %452 : vector<1x16x32xf32> to vector<16x32xf32>
    %454 = vector.shape_cast %451 : vector<16x32xf32> to vector<1x16x32xf32>
    tpu.vector_store %arg12[%c6_205, %c0_206, %c0_207], %454 {strides = array<i32>} : memref<8x16x32xf32, #tpu.memory_space<vmem>>, vector<1x16x32xf32>,
    %455 = vector.extract_strided_slice %350 {offsets = [7, 0], sizes = [1, 32], strides = [1, 1]} : vector<8x32xf32> to vector<1x32xf32>
    %456 = vector.broadcast %455 : vector<1x32xf32> to vector<16x32xf32>
    %457 = arith.mulf %456, %73 : vector<16x32xf32>
    %c7_208 = arith.constant 7 : index
    %c0_209 = arith.constant 0 : index
    %c0_210 = arith.constant 0 : index
    %458 = vector.load %arg11[%c7_208, %c0_209, %c0_210] : memref<8x16x32xf32, #tpu.memory_space<vmem>>, vector<1x16x32xf32>
    %459 = vector.shape_cast %458 : vector<1x16x32xf32> to vector<16x32xf32>
    %460 = vector.shape_cast %457 : vector<16x32xf32> to vector<1x16x32xf32>
    tpu.vector_store %arg11[%c7_208, %c0_209, %c0_210], %460 {strides = array<i32>} : memref<8x16x32xf32, #tpu.memory_space<vmem>>, vector<1x16x32xf32>,
    %461 = vector.extract_strided_slice %352 {offsets = [7, 0], sizes = [1, 32], strides = [1, 1]} : vector<8x32xf32> to vector<1x32xf32>
    %462 = vector.extract_strided_slice %354 {offsets = [0, 7], sizes = [16, 1], strides = [1, 1]} : vector<16x8xf32> to vector<16x1xf32>
    %463 = vector.broadcast %461 : vector<1x32xf32> to vector<16x32xf32>
    %464 = vector.broadcast %462 : vector<16x1xf32> to vector<16x32xf32>
    %465 = arith.mulf %463, %464 : vector<16x32xf32>
    %c7_211 = arith.constant 7 : index
    %c0_212 = arith.constant 0 : index
    %c0_213 = arith.constant 0 : index
    %466 = vector.load %arg12[%c7_211, %c0_212, %c0_213] : memref<8x16x32xf32, #tpu.memory_space<vmem>>, vector<1x16x32xf32>
    %467 = vector.shape_cast %466 : vector<1x16x32xf32> to vector<16x32xf32>
    %468 = vector.shape_cast %465 : vector<16x32xf32> to vector<1x16x32xf32>
    tpu.vector_store %arg12[%c7_211, %c0_212, %c0_213], %468 {strides = array<i32>} : memref<8x16x32xf32, #tpu.memory_space<vmem>>, vector<1x16x32xf32>,
    %c0_214 = arith.constant 0 : index
    %c0_215 = arith.constant 0 : index
    %c0_216 = arith.constant 0 : index
    %469 = vector.load %arg11[%c0_214, %c0_215, %c0_216] : memref<8x16x32xf32, #tpu.memory_space<vmem>>, vector<8x16x32xf32>
    %470 = math.exp %469 : vector<8x16x32xf32>
    %c0_217 = arith.constant 0 : index
    %c0_218 = arith.constant 0 : index
    %c0_219 = arith.constant 0 : index
    %471 = vector.load %arg11[%c0_217, %c0_218, %c0_219] : memref<8x16x32xf32, #tpu.memory_space<vmem>>, vector<8x16x32xf32>
    tpu.vector_store %arg11[%c0_217, %c0_218, %c0_219], %470 {strides = array<i32>} : memref<8x16x32xf32, #tpu.memory_space<vmem>>, vector<8x16x32xf32>,
    %cst_220 = arith.constant 0.000000e+00 : f32
    %472 = vector.broadcast %cst_220 : f32 to vector<16x32xf32>
    %c0_i32_221 = arith.constant 0 : i32
    %473 = arith.index_cast %c0_i32_221 : i32 to index
    %c0_222 = arith.constant 0 : index
    %c0_223 = arith.constant 0 : index
    %474 = vector.load %arg11[%473, %c0_222, %c0_223] : memref<8x16x32xf32, #tpu.memory_space<vmem>>, vector<1x16x32xf32>
    %475 = vector.shape_cast %474 : vector<1x16x32xf32> to vector<16x32xf32>
    %476 = arith.mulf %475, %472 : vector<16x32xf32>
    %477 = arith.index_cast %c0_i32_221 : i32 to index
    %c0_224 = arith.constant 0 : index
    %c0_225 = arith.constant 0 : index
    %478 = vector.load %arg12[%477, %c0_224, %c0_225] : memref<8x16x32xf32, #tpu.memory_space<vmem>>, vector<1x16x32xf32>
    %479 = vector.shape_cast %478 : vector<1x16x32xf32> to vector<16x32xf32>
    %480 = arith.addf %476, %479 : vector<16x32xf32>
    %481 = arith.index_cast %c0_i32_221 : i32 to index
    %c0_226 = arith.constant 0 : index
    %c0_227 = arith.constant 0 : index
    %482 = vector.load %arg13[%481, %c0_226, %c0_227] : memref<8x16x32xf32, #tpu.memory_space<vmem>>, vector<1x16x32xf32>
    %483 = vector.shape_cast %482 : vector<1x16x32xf32> to vector<16x32xf32>
    %484 = vector.shape_cast %480 : vector<16x32xf32> to vector<1x16x32xf32>
    tpu.vector_store %arg13[%481, %c0_226, %c0_227], %484 {strides = array<i32>} : memref<8x16x32xf32, #tpu.memory_space<vmem>>, vector<1x16x32xf32>,
    %c1_i32_228 = arith.constant 1 : i32
    %485 = arith.index_cast %c1_i32_228 : i32 to index
    %c0_229 = arith.constant 0 : index
    %c0_230 = arith.constant 0 : index
    %486 = vector.load %arg11[%485, %c0_229, %c0_230] : memref<8x16x32xf32, #tpu.memory_space<vmem>>, vector<1x16x32xf32>
    %487 = vector.shape_cast %486 : vector<1x16x32xf32> to vector<16x32xf32>
    %488 = arith.mulf %487, %480 : vector<16x32xf32>
    %489 = arith.index_cast %c1_i32_228 : i32 to index
    %c0_231 = arith.constant 0 : index
    %c0_232 = arith.constant 0 : index
    %490 = vector.load %arg12[%489, %c0_231, %c0_232] : memref<8x16x32xf32, #tpu.memory_space<vmem>>, vector<1x16x32xf32>
    %491 = vector.shape_cast %490 : vector<1x16x32xf32> to vector<16x32xf32>
    %492 = arith.addf %488, %491 : vector<16x32xf32>
    %493 = arith.index_cast %c1_i32_228 : i32 to index
    %c0_233 = arith.constant 0 : index
    %c0_234 = arith.constant 0 : index
    %494 = vector.load %arg13[%493, %c0_233, %c0_234] : memref<8x16x32xf32, #tpu.memory_space<vmem>>, vector<1x16x32xf32>
    %495 = vector.shape_cast %494 : vector<1x16x32xf32> to vector<16x32xf32>
    %496 = vector.shape_cast %492 : vector<16x32xf32> to vector<1x16x32xf32>
    tpu.vector_store %arg13[%493, %c0_233, %c0_234], %496 {strides = array<i32>} : memref<8x16x32xf32, #tpu.memory_space<vmem>>, vector<1x16x32xf32>,
    %c2_i32_235 = arith.constant 2 : i32
    %497 = arith.index_cast %c2_i32_235 : i32 to index
    %c0_236 = arith.constant 0 : index
    %c0_237 = arith.constant 0 : index
    %498 = vector.load %arg11[%497, %c0_236, %c0_237] : memref<8x16x32xf32, #tpu.memory_space<vmem>>, vector<1x16x32xf32>
    %499 = vector.shape_cast %498 : vector<1x16x32xf32> to vector<16x32xf32>
    %500 = arith.mulf %499, %492 : vector<16x32xf32>
    %501 = arith.index_cast %c2_i32_235 : i32 to index
    %c0_238 = arith.constant 0 : index
    %c0_239 = arith.constant 0 : index
    %502 = vector.load %arg12[%501, %c0_238, %c0_239] : memref<8x16x32xf32, #tpu.memory_space<vmem>>, vector<1x16x32xf32>
    %503 = vector.shape_cast %502 : vector<1x16x32xf32> to vector<16x32xf32>
    %504 = arith.addf %500, %503 : vector<16x32xf32>
    %505 = arith.index_cast %c2_i32_235 : i32 to index
    %c0_240 = arith.constant 0 : index
    %c0_241 = arith.constant 0 : index
    %506 = vector.load %arg13[%505, %c0_240, %c0_241] : memref<8x16x32xf32, #tpu.memory_space<vmem>>, vector<1x16x32xf32>
    %507 = vector.shape_cast %506 : vector<1x16x32xf32> to vector<16x32xf32>
    %508 = vector.shape_cast %504 : vector<16x32xf32> to vector<1x16x32xf32>
    tpu.vector_store %arg13[%505, %c0_240, %c0_241], %508 {strides = array<i32>} : memref<8x16x32xf32, #tpu.memory_space<vmem>>, vector<1x16x32xf32>,
    %c3_i32_242 = arith.constant 3 : i32
    %509 = arith.index_cast %c3_i32_242 : i32 to index
    %c0_243 = arith.constant 0 : index
    %c0_244 = arith.constant 0 : index
    %510 = vector.load %arg11[%509, %c0_243, %c0_244] : memref<8x16x32xf32, #tpu.memory_space<vmem>>, vector<1x16x32xf32>
    %511 = vector.shape_cast %510 : vector<1x16x32xf32> to vector<16x32xf32>
    %512 = arith.mulf %511, %504 : vector<16x32xf32>
    %513 = arith.index_cast %c3_i32_242 : i32 to index
    %c0_245 = arith.constant 0 : index
    %c0_246 = arith.constant 0 : index
    %514 = vector.load %arg12[%513, %c0_245, %c0_246] : memref<8x16x32xf32, #tpu.memory_space<vmem>>, vector<1x16x32xf32>
    %515 = vector.shape_cast %514 : vector<1x16x32xf32> to vector<16x32xf32>
    %516 = arith.addf %512, %515 : vector<16x32xf32>
    %517 = arith.index_cast %c3_i32_242 : i32 to index
    %c0_247 = arith.constant 0 : index
    %c0_248 = arith.constant 0 : index
    %518 = vector.load %arg13[%517, %c0_247, %c0_248] : memref<8x16x32xf32, #tpu.memory_space<vmem>>, vector<1x16x32xf32>
    %519 = vector.shape_cast %518 : vector<1x16x32xf32> to vector<16x32xf32>
    %520 = vector.shape_cast %516 : vector<16x32xf32> to vector<1x16x32xf32>
    tpu.vector_store %arg13[%517, %c0_247, %c0_248], %520 {strides = array<i32>} : memref<8x16x32xf32, #tpu.memory_space<vmem>>, vector<1x16x32xf32>,
    %c4_i32_249 = arith.constant 4 : i32
    %521 = arith.index_cast %c4_i32_249 : i32 to index
    %c0_250 = arith.constant 0 : index
    %c0_251 = arith.constant 0 : index
    %522 = vector.load %arg11[%521, %c0_250, %c0_251] : memref<8x16x32xf32, #tpu.memory_space<vmem>>, vector<1x16x32xf32>
    %523 = vector.shape_cast %522 : vector<1x16x32xf32> to vector<16x32xf32>
    %524 = arith.mulf %523, %516 : vector<16x32xf32>
    %525 = arith.index_cast %c4_i32_249 : i32 to index
    %c0_252 = arith.constant 0 : index
    %c0_253 = arith.constant 0 : index
    %526 = vector.load %arg12[%525, %c0_252, %c0_253] : memref<8x16x32xf32, #tpu.memory_space<vmem>>, vector<1x16x32xf32>
    %527 = vector.shape_cast %526 : vector<1x16x32xf32> to vector<16x32xf32>
    %528 = arith.addf %524, %527 : vector<16x32xf32>
    %529 = arith.index_cast %c4_i32_249 : i32 to index
    %c0_254 = arith.constant 0 : index
    %c0_255 = arith.constant 0 : index
    %530 = vector.load %arg13[%529, %c0_254, %c0_255] : memref<8x16x32xf32, #tpu.memory_space<vmem>>, vector<1x16x32xf32>
    %531 = vector.shape_cast %530 : vector<1x16x32xf32> to vector<16x32xf32>
    %532 = vector.shape_cast %528 : vector<16x32xf32> to vector<1x16x32xf32>
    tpu.vector_store %arg13[%529, %c0_254, %c0_255], %532 {strides = array<i32>} : memref<8x16x32xf32, #tpu.memory_space<vmem>>, vector<1x16x32xf32>,
    %c5_i32_256 = arith.constant 5 : i32
    %533 = arith.index_cast %c5_i32_256 : i32 to index
    %c0_257 = arith.constant 0 : index
    %c0_258 = arith.constant 0 : index
    %534 = vector.load %arg11[%533, %c0_257, %c0_258] : memref<8x16x32xf32, #tpu.memory_space<vmem>>, vector<1x16x32xf32>
    %535 = vector.shape_cast %534 : vector<1x16x32xf32> to vector<16x32xf32>
    %536 = arith.mulf %535, %528 : vector<16x32xf32>
    %537 = arith.index_cast %c5_i32_256 : i32 to index
    %c0_259 = arith.constant 0 : index
    %c0_260 = arith.constant 0 : index
    %538 = vector.load %arg12[%537, %c0_259, %c0_260] : memref<8x16x32xf32, #tpu.memory_space<vmem>>, vector<1x16x32xf32>
    %539 = vector.shape_cast %538 : vector<1x16x32xf32> to vector<16x32xf32>
    %540 = arith.addf %536, %539 : vector<16x32xf32>
    %541 = arith.index_cast %c5_i32_256 : i32 to index
    %c0_261 = arith.constant 0 : index
    %c0_262 = arith.constant 0 : index
    %542 = vector.load %arg13[%541, %c0_261, %c0_262] : memref<8x16x32xf32, #tpu.memory_space<vmem>>, vector<1x16x32xf32>
    %543 = vector.shape_cast %542 : vector<1x16x32xf32> to vector<16x32xf32>
    %544 = vector.shape_cast %540 : vector<16x32xf32> to vector<1x16x32xf32>
    tpu.vector_store %arg13[%541, %c0_261, %c0_262], %544 {strides = array<i32>} : memref<8x16x32xf32, #tpu.memory_space<vmem>>, vector<1x16x32xf32>,
    %c6_i32_263 = arith.constant 6 : i32
    %545 = arith.index_cast %c6_i32_263 : i32 to index
    %c0_264 = arith.constant 0 : index
    %c0_265 = arith.constant 0 : index
    %546 = vector.load %arg11[%545, %c0_264, %c0_265] : memref<8x16x32xf32, #tpu.memory_space<vmem>>, vector<1x16x32xf32>
    %547 = vector.shape_cast %546 : vector<1x16x32xf32> to vector<16x32xf32>
    %548 = arith.mulf %547, %540 : vector<16x32xf32>
    %549 = arith.index_cast %c6_i32_263 : i32 to index
    %c0_266 = arith.constant 0 : index
    %c0_267 = arith.constant 0 : index
    %550 = vector.load %arg12[%549, %c0_266, %c0_267] : memref<8x16x32xf32, #tpu.memory_space<vmem>>, vector<1x16x32xf32>
    %551 = vector.shape_cast %550 : vector<1x16x32xf32> to vector<16x32xf32>
    %552 = arith.addf %548, %551 : vector<16x32xf32>
    %553 = arith.index_cast %c6_i32_263 : i32 to index
    %c0_268 = arith.constant 0 : index
    %c0_269 = arith.constant 0 : index
    %554 = vector.load %arg13[%553, %c0_268, %c0_269] : memref<8x16x32xf32, #tpu.memory_space<vmem>>, vector<1x16x32xf32>
    %555 = vector.shape_cast %554 : vector<1x16x32xf32> to vector<16x32xf32>
    %556 = vector.shape_cast %552 : vector<16x32xf32> to vector<1x16x32xf32>
    tpu.vector_store %arg13[%553, %c0_268, %c0_269], %556 {strides = array<i32>} : memref<8x16x32xf32, #tpu.memory_space<vmem>>, vector<1x16x32xf32>,
    %c7_i32_270 = arith.constant 7 : i32
    %557 = arith.index_cast %c7_i32_270 : i32 to index
    %c0_271 = arith.constant 0 : index
    %c0_272 = arith.constant 0 : index
    %558 = vector.load %arg11[%557, %c0_271, %c0_272] : memref<8x16x32xf32, #tpu.memory_space<vmem>>, vector<1x16x32xf32>
    %559 = vector.shape_cast %558 : vector<1x16x32xf32> to vector<16x32xf32>
    %560 = arith.mulf %559, %552 : vector<16x32xf32>
    %561 = arith.index_cast %c7_i32_270 : i32 to index
    %c0_273 = arith.constant 0 : index
    %c0_274 = arith.constant 0 : index
    %562 = vector.load %arg12[%561, %c0_273, %c0_274] : memref<8x16x32xf32, #tpu.memory_space<vmem>>, vector<1x16x32xf32>
    %563 = vector.shape_cast %562 : vector<1x16x32xf32> to vector<16x32xf32>
    %564 = arith.addf %560, %563 : vector<16x32xf32>
    %565 = arith.index_cast %c7_i32_270 : i32 to index
    %c0_275 = arith.constant 0 : index
    %c0_276 = arith.constant 0 : index
    %566 = vector.load %arg13[%565, %c0_275, %c0_276] : memref<8x16x32xf32, #tpu.memory_space<vmem>>, vector<1x16x32xf32>
    %567 = vector.shape_cast %566 : vector<1x16x32xf32> to vector<16x32xf32>
    %568 = vector.shape_cast %564 : vector<16x32xf32> to vector<1x16x32xf32>
    tpu.vector_store %arg13[%565, %c0_275, %c0_276], %568 {strides = array<i32>} : memref<8x16x32xf32, #tpu.memory_space<vmem>>, vector<1x16x32xf32>,
    %c8_i32_277 = arith.constant 8 : i32
    %569 = vector.extract_strided_slice %356 {offsets = [0, 0], sizes = [16, 1], strides = [1, 1]} : vector<16x8xf32> to vector<16x1xf32>
    %c0_278 = arith.constant 0 : index
    %c0_279 = arith.constant 0 : index
    %c0_280 = arith.constant 0 : index
    %570 = vector.load %arg13[%c0_278, %c0_279, %c0_280] : memref<8x16x32xf32, #tpu.memory_space<vmem>>, vector<1x16x32xf32>
    %571 = vector.shape_cast %570 : vector<1x16x32xf32> to vector<16x32xf32>
    %572 = vector.broadcast %569 : vector<16x1xf32> to vector<16x32xf32>
    %573 = arith.mulf %572, %571 : vector<16x32xf32>
    %cst_281 = arith.constant dense<0.000000e+00> : vector<32xf32>
    %574 = vector.multi_reduction <add>, %573, %cst_281 [0] : vector<16x32xf32> to vector<32xf32>
    %575 = vector.shape_cast %574 : vector<32xf32> to vector<1x32xf32>
    %576 = vector.extract_strided_slice %356 {offsets = [0, 1], sizes = [16, 1], strides = [1, 1]} : vector<16x8xf32> to vector<16x1xf32>
    %c1_282 = arith.constant 1 : index
    %c0_283 = arith.constant 0 : index
    %c0_284 = arith.constant 0 : index
    %577 = vector.load %arg13[%c1_282, %c0_283, %c0_284] : memref<8x16x32xf32, #tpu.memory_space<vmem>>, vector<1x16x32xf32>
    %578 = vector.shape_cast %577 : vector<1x16x32xf32> to vector<16x32xf32>
    %579 = vector.broadcast %576 : vector<16x1xf32> to vector<16x32xf32>
    %580 = arith.mulf %579, %578 : vector<16x32xf32>
    %cst_285 = arith.constant dense<0.000000e+00> : vector<32xf32>
    %581 = vector.multi_reduction <add>, %580, %cst_285 [0] : vector<16x32xf32> to vector<32xf32>
    %582 = vector.shape_cast %581 : vector<32xf32> to vector<1x32xf32>
    %583 = vector.extract_strided_slice %356 {offsets = [0, 2], sizes = [16, 1], strides = [1, 1]} : vector<16x8xf32> to vector<16x1xf32>
    %c2_286 = arith.constant 2 : index
    %c0_287 = arith.constant 0 : index
    %c0_288 = arith.constant 0 : index
    %584 = vector.load %arg13[%c2_286, %c0_287, %c0_288] : memref<8x16x32xf32, #tpu.memory_space<vmem>>, vector<1x16x32xf32>
    %585 = vector.shape_cast %584 : vector<1x16x32xf32> to vector<16x32xf32>
    %586 = vector.broadcast %583 : vector<16x1xf32> to vector<16x32xf32>
    %587 = arith.mulf %586, %585 : vector<16x32xf32>
    %cst_289 = arith.constant dense<0.000000e+00> : vector<32xf32>
    %588 = vector.multi_reduction <add>, %587, %cst_289 [0] : vector<16x32xf32> to vector<32xf32>
    %589 = vector.shape_cast %588 : vector<32xf32> to vector<1x32xf32>
    %590 = vector.extract_strided_slice %356 {offsets = [0, 3], sizes = [16, 1], strides = [1, 1]} : vector<16x8xf32> to vector<16x1xf32>
    %c3_290 = arith.constant 3 : index
    %c0_291 = arith.constant 0 : index
    %c0_292 = arith.constant 0 : index
    %591 = vector.load %arg13[%c3_290, %c0_291, %c0_292] : memref<8x16x32xf32, #tpu.memory_space<vmem>>, vector<1x16x32xf32>
    %592 = vector.shape_cast %591 : vector<1x16x32xf32> to vector<16x32xf32>
    %593 = vector.broadcast %590 : vector<16x1xf32> to vector<16x32xf32>
    %594 = arith.mulf %593, %592 : vector<16x32xf32>
    %cst_293 = arith.constant dense<0.000000e+00> : vector<32xf32>
    %595 = vector.multi_reduction <add>, %594, %cst_293 [0] : vector<16x32xf32> to vector<32xf32>
    %596 = vector.shape_cast %595 : vector<32xf32> to vector<1x32xf32>
    %597 = vector.extract_strided_slice %356 {offsets = [0, 4], sizes = [16, 1], strides = [1, 1]} : vector<16x8xf32> to vector<16x1xf32>
    %c4_294 = arith.constant 4 : index
    %c0_295 = arith.constant 0 : index
    %c0_296 = arith.constant 0 : index
    %598 = vector.load %arg13[%c4_294, %c0_295, %c0_296] : memref<8x16x32xf32, #tpu.memory_space<vmem>>, vector<1x16x32xf32>
    %599 = vector.shape_cast %598 : vector<1x16x32xf32> to vector<16x32xf32>
    %600 = vector.broadcast %597 : vector<16x1xf32> to vector<16x32xf32>
    %601 = arith.mulf %600, %599 : vector<16x32xf32>
    %cst_297 = arith.constant dense<0.000000e+00> : vector<32xf32>
    %602 = vector.multi_reduction <add>, %601, %cst_297 [0] : vector<16x32xf32> to vector<32xf32>
    %603 = vector.shape_cast %602 : vector<32xf32> to vector<1x32xf32>
    %604 = vector.extract_strided_slice %356 {offsets = [0, 5], sizes = [16, 1], strides = [1, 1]} : vector<16x8xf32> to vector<16x1xf32>
    %c5_298 = arith.constant 5 : index
    %c0_299 = arith.constant 0 : index
    %c0_300 = arith.constant 0 : index
    %605 = vector.load %arg13[%c5_298, %c0_299, %c0_300] : memref<8x16x32xf32, #tpu.memory_space<vmem>>, vector<1x16x32xf32>
    %606 = vector.shape_cast %605 : vector<1x16x32xf32> to vector<16x32xf32>
    %607 = vector.broadcast %604 : vector<16x1xf32> to vector<16x32xf32>
    %608 = arith.mulf %607, %606 : vector<16x32xf32>
    %cst_301 = arith.constant dense<0.000000e+00> : vector<32xf32>
    %609 = vector.multi_reduction <add>, %608, %cst_301 [0] : vector<16x32xf32> to vector<32xf32>
    %610 = vector.shape_cast %609 : vector<32xf32> to vector<1x32xf32>
    %611 = vector.extract_strided_slice %356 {offsets = [0, 6], sizes = [16, 1], strides = [1, 1]} : vector<16x8xf32> to vector<16x1xf32>
    %c6_302 = arith.constant 6 : index
    %c0_303 = arith.constant 0 : index
    %c0_304 = arith.constant 0 : index
    %612 = vector.load %arg13[%c6_302, %c0_303, %c0_304] : memref<8x16x32xf32, #tpu.memory_space<vmem>>, vector<1x16x32xf32>
    %613 = vector.shape_cast %612 : vector<1x16x32xf32> to vector<16x32xf32>
    %614 = vector.broadcast %611 : vector<16x1xf32> to vector<16x32xf32>
    %615 = arith.mulf %614, %613 : vector<16x32xf32>
    %cst_305 = arith.constant dense<0.000000e+00> : vector<32xf32>
    %616 = vector.multi_reduction <add>, %615, %cst_305 [0] : vector<16x32xf32> to vector<32xf32>
    %617 = vector.shape_cast %616 : vector<32xf32> to vector<1x32xf32>
    %618 = vector.extract_strided_slice %356 {offsets = [0, 7], sizes = [16, 1], strides = [1, 1]} : vector<16x8xf32> to vector<16x1xf32>
    %c7_306 = arith.constant 7 : index
    %c0_307 = arith.constant 0 : index
    %c0_308 = arith.constant 0 : index
    %619 = vector.load %arg13[%c7_306, %c0_307, %c0_308] : memref<8x16x32xf32, #tpu.memory_space<vmem>>, vector<1x16x32xf32>
    %620 = vector.shape_cast %619 : vector<1x16x32xf32> to vector<16x32xf32>
    %621 = vector.broadcast %618 : vector<16x1xf32> to vector<16x32xf32>
    %622 = arith.mulf %621, %620 : vector<16x32xf32>
    %cst_309 = arith.constant dense<0.000000e+00> : vector<32xf32>
    %623 = vector.multi_reduction <add>, %622, %cst_309 [0] : vector<16x32xf32> to vector<32xf32>
    %624 = vector.shape_cast %623 : vector<32xf32> to vector<1x32xf32>
    %625 = tpu.concatenate %575, %582, %589, %596, %603, %610, %617, %624 in 0 : vector<1x32xf32>, vector<1x32xf32>, vector<1x32xf32>, vector<1x32xf32>, vector<1x32xf32>, vector<1x32xf32>, vector<1x32xf32>, vector<1x32xf32> -> vector<8x32xf32>
    %626 = tpu.concatenate %349, %625 in 0 : vector<8x32xf32>, vector<8x32xf32> -> vector<16x32xf32>
    %c0_310 = arith.constant 0 : index
    %c0_311 = arith.constant 0 : index
    %627 = vector.load %arg8[%c0_310, %c0_311] : memref<1x32xf32, #tpu.memory_space<vmem>>, vector<1x32xf32>
    %628 = vector.broadcast %627 : vector<1x32xf32> to vector<16x32xf32>
    %629 = arith.mulf %47, %628 : vector<16x32xf32>
    %630 = arith.addf %626, %629 : vector<16x32xf32>
    %cst_312 = arith.constant 0.000000e+00 : f32
    %631 = vector.broadcast %cst_312 : f32 to vector<16x32xf32>
    %632 = arith.subf %631, %4 : vector<16x32xf32>
    %633 = math.exp %632 : vector<16x32xf32>
    %cst_313 = arith.constant 1.000000e+00 : f32
    %634 = vector.broadcast %cst_313 : f32 to vector<16x32xf32>
    %635 = arith.addf %634, %633 : vector<16x32xf32>
    %636 = arith.divf %4, %635 : vector<16x32xf32>
    %637 = arith.mulf %630, %636 : vector<16x32xf32>
    %c0_314 = arith.constant 0 : index
    %c0_315 = arith.constant 0 : index
    %638 = vector.load %arg9[%c0_314, %c0_315] : memref<32x16xf32, #tpu.memory_space<vmem>>, vector<32x16xf32>
    %cst_316 = arith.constant dense<0.000000e+00> : vector<16x16xf32>
    %639 = tpu.matmul %637, %638, %cst_316 {dimension_numbers = #tpu.dot_dimension_numbers<[1], [0], [0], [1], [0, 0, 1, 1], [], []>} : vector<16x32xf32>, vector<32x16xf32>, vector<16x16xf32> -> vector<16x16xf32>
    %c0_317 = arith.constant 0 : index
    %c0_318 = arith.constant 0 : index
    %640 = vector.load %arg10[%c0_317, %c0_318] : memref<16x16xf32, #tpu.memory_space<vmem>>, vector<16x16xf32>
    tpu.vector_store %arg10[%c0_317, %c0_318], %639 {strides = array<i32>} : memref<16x16xf32, #tpu.memory_space<vmem>>, vector<16x16xf32>,
    return
  }
}

</mosaic_0001>

<llo_original>
// kernel: tpu_custom_call.1
$region0: #{tpu_custom_call.1}
  #allocation0 [shape = 'u32[]', space=smem, size = 0x4, offset = 0x4, fixed_abs, tag = 'smem constant byte address 0x4 - core index']
  #allocation1 [shape = 'u32[144,128]{1,0:T(1,128)}', space=vmem, size = 0x12000, scoped, tag = 'internal scratch']
  #allocation2 [shape = 'f32[8,16,32]{2,1,0:T(8,128)}', space=vmem, size = 0x10000, scoped, tag = 'scratch operand']
  #allocation3 [shape = 'f32[8,16,32]{2,1,0:T(8,128)}', space=vmem, size = 0x10000, scoped, tag = 'scratch operand']
  #allocation4 [shape = 'f32[8,16,32]{2,1,0:T(8,128)}', space=vmem, size = 0x10000, scoped, tag = 'scratch operand']
  %s0 = inlined_call_operand.vmem [shape: f32[16,16], index: 0, kind: input, shape index: {}]
  %s1 = inlined_call_operand.hbm [shape: f32[16,64], index: 1, kind: input, shape index: {}]
  %s2 = inlined_call_operand.vmem [shape: f32[4,32], index: 2, kind: input, shape index: {}]
  %s3 = inlined_call_operand.vmem [shape: f32[1,32], index: 3, kind: input, shape index: {}]
  %s4 = inlined_call_operand.vmem [shape: f32[32,33], index: 4, kind: input, shape index: {}]
  %s5 = inlined_call_operand.vmem [shape: f32[1,32], index: 5, kind: input, shape index: {}]
  %s6 = inlined_call_operand.vmem [shape: f32[1,32], index: 6, kind: input, shape index: {}]
  %s7 = inlined_call_operand.hbm [shape: f32[16,32], index: 7, kind: input, shape index: {}]
  %s8 = inlined_call_operand.vmem [shape: f32[1,32], index: 8, kind: input, shape index: {}]
  %s9 = inlined_call_operand.vmem [shape: f32[32,16], index: 9, kind: input, shape index: {}]
  %s10 = inlined_call_operand.hbm [shape: f32[16,16], index: 10, kind: output, shape index: {}]
  %s11 = sld [smem:[#allocation0]]
  $region58: #{tpu_custom_call.1} parent=0
    _
  %s13 = ssub.s32 1, %s11
  %s14 = scalar_select 0, %s13, %s11
  $region1: #{tpu_custom_call.1} parent=0
    #allocation5 [shape = 'u8[8192]{0}', space=vmem, size = 0x2000, scoped, tag = 'input window, operand 1, single buffered']
    #allocation6 [shape = 's32[1]{0}', space=sflag, size = 0x4, scoped, tag = 'scoped memory for tpu_custom_call.1']
    #allocation7 [shape = 's32[1]{0}', space=sflag, size = 0x4, scoped, tag = 'scoped memory for tpu_custom_call.1']
    #allocation8 [shape = 'u8[8192]{0}', space=vmem, size = 0x2000, scoped, tag = 'input window, operand 7, single buffered']
    #allocation9 [shape = 's32[1]{0}', space=sflag, size = 0x4, scoped, tag = 'scoped memory for tpu_custom_call.1']
    #allocation10 [shape = 'u8[8192]{0}', space=vmem, size = 0x2000, scoped, tag = 'output window, operand 0, single buffered']
    %15 = vsyncpa [#allocation6], 0
    %16 = vsyncpa [#allocation9], 0
    %17 = vsyncpa [#allocation7], 0
    // Predicated region
    $region2: #{tpu_custom_call.1} parent=1 // pred_check
      _
    $region3: #{tpu_custom_call.1} parent=1 // pred_check_branch
      %19 = sbr.rel (0) target = $region5
    $region4: #{tpu_custom_call.1} parent=1 // pred_region
      _
    $region5: #{tpu_custom_call.1} parent=1 // pred_fallthru
      _
    // Predicated region
    $region6: #{tpu_custom_call.1} parent=1 // pred_check
      _
    $region7: #{tpu_custom_call.1} parent=1 // pred_check_branch
      %21 = sbr.rel (0) target = $region9
    $region8: #{tpu_custom_call.1} parent=1 // pred_region
      %s23 = ssub.s32 256, 256
      %24 = vsyncadd [#allocation6], %s23
      %s25 = sshll.u32 [#allocation5], 4
      %s26 = int_to_ptr.vmem [resolvable:$true] %s25
      %31 = dma.hbm_to_vmem [thread:$0]  %s1, 256, %s26, [#allocation6], 128, 128, 8
    $region9: #{tpu_custom_call.1} parent=1 // pred_fallthru
      _
    // Predicated region
    $region10: #{tpu_custom_call.1} parent=1 // pred_check
      _
    $region11: #{tpu_custom_call.1} parent=1 // pred_check_branch
      %33 = sbr.rel (0) target = $region13
    $region12: #{tpu_custom_call.1} parent=1 // pred_region
      _
    $region13: #{tpu_custom_call.1} parent=1 // pred_fallthru
      _
    // Predicated region
    $region14: #{tpu_custom_call.1} parent=1 // pred_check
      _
    $region15: #{tpu_custom_call.1} parent=1 // pred_check_branch
      %35 = sbr.rel (0) target = $region17
    $region16: #{tpu_custom_call.1} parent=1 // pred_region
      _
    $region17: #{tpu_custom_call.1} parent=1 // pred_fallthru
      _
    // Predicated region
    $region18: #{tpu_custom_call.1} parent=1 // pred_check
      _
    $region19: #{tpu_custom_call.1} parent=1 // pred_check_branch
      %37 = sbr.rel (0) target = $region21
    $region20: #{tpu_custom_call.1} parent=1 // pred_region
      _
    $region21: #{tpu_custom_call.1} parent=1 // pred_fallthru
      _
    // Predicated region
    $region22: #{tpu_custom_call.1} parent=1 // pred_check
      _
    $region23: #{tpu_custom_call.1} parent=1 // pred_check_branch
      %39 = sbr.rel (0) target = $region25
    $region24: #{tpu_custom_call.1} parent=1 // pred_region
      _
    $region25: #{tpu_custom_call.1} parent=1 // pred_fallthru
      _
    // Predicated region
    $region26: #{tpu_custom_call.1} parent=1 // pred_check
      _
    $region27: #{tpu_custom_call.1} parent=1 // pred_check_branch
      %41 = sbr.rel (0) target = $region29
    $region28: #{tpu_custom_call.1} parent=1 // pred_region
      _
    $region29: #{tpu_custom_call.1} parent=1 // pred_fallthru
      _
    // Predicated region
    $region30: #{tpu_custom_call.1} parent=1 // pred_check
      _
    $region31: #{tpu_custom_call.1} parent=1 // pred_check_branch
      %43 = sbr.rel (0) target = $region33
    $region32: #{tpu_custom_call.1} parent=1 // pred_region
      %s45 = ssub.s32 256, 256
      %46 = vsyncadd [#allocation9], %s45
      %s47 = sshll.u32 [#allocation8], 4
      %s48 = int_to_ptr.vmem [resolvable:$true] %s47
      %53 = dma.hbm_to_vmem [thread:$0]  %s7, 256, %s48, [#allocation9], 128, 128, 8
    $region33: #{tpu_custom_call.1} parent=1 // pred_fallthru
      _
    // Predicated region
    $region34: #{tpu_custom_call.1} parent=1 // pred_check
      _
    $region35: #{tpu_custom_call.1} parent=1 // pred_check_branch
      %55 = sbr.rel (0) target = $region37
    $region36: #{tpu_custom_call.1} parent=1 // pred_region
      _
    $region37: #{tpu_custom_call.1} parent=1 // pred_fallthru
      _
    // Predicated region
    $region38: #{tpu_custom_call.1} parent=1 // pred_check
      _
    $region39: #{tpu_custom_call.1} parent=1 // pred_check_branch
      %57 = sbr.rel (0) target = $region41
    $region40: #{tpu_custom_call.1} parent=1 // pred_region
      _
    $region41: #{tpu_custom_call.1} parent=1 // pred_fallthru
      _
    // Predicated region
    $region42: #{tpu_custom_call.1} parent=1 // pred_check
      _
    $region43: #{tpu_custom_call.1} parent=1 // pred_check_branch
      %59 = sbr.rel (0) target = $region45
    $region44: #{tpu_custom_call.1} parent=1 // pred_region
      %60 = dma.done [#allocation6], 256
    $region45: #{tpu_custom_call.1} parent=1 // pred_fallthru
      _
    // Predicated region
    $region46: #{tpu_custom_call.1} parent=1 // pred_check
      _
    $region47: #{tpu_custom_call.1} parent=1 // pred_check_branch
      %62 = sbr.rel (0) target = $region49
    $region48: #{tpu_custom_call.1} parent=1 // pred_region
      %63 = dma.done [#allocation9], 256
    $region49: #{tpu_custom_call.1} parent=1 // pred_fallthru
      _
    %v64 = vld [vmem:[%s0] sm:$0xff]
    %v65 = vld [vmem:[%s0 + $0x8] sm:$0xff]
    %v66 = vld [vmem:[#allocation5] sm:$0xff]
    %v67 = vld [vmem:[#allocation5 + $0x8] sm:$0xff]
    %vm68 = vcmask 130048
    %v70 = vsel %vm68, %v64, 0
    %v73 = vsel %vm68, %v65, 0
    %75 = vmatprep.subr.mxu0 0.0
    %76 = vmatpush1.msra.mxu0 %v66
    %77 = vmatprep.subr.mxu0 0.0
    %78 = vmatpush1.msra.mxu0 %v67
    %79 = vmatprep.subr.mxu0 0.0
    %80 = vmatpush1.msra.mxu0 0.0
    %81 = vmatprep.subr.mxu0 0.0
    %82 = vmatpush1.msra.mxu0 0.0
    %83 = vmatprep.subr.mxu0 0.0
    %84 = vmatpush1.msra.mxu0 0.0
    %85 = vmatprep.subr.mxu0 0.0
    %86 = vmatpush1.msra.mxu0 0.0
    %87 = vmatprep.subr.mxu0 0.0
    %88 = vmatpush1.msra.mxu0 0.0
    %89 = vmatprep.subr.mxu0 0.0
    %90 = vmatpush1.msra.mxu0 0.0
    %91 = vmatprep.subr.mxu0 0.0
    %92 = vmatpush1.msra.mxu0 0.0
    %93 = vmatprep.subr.mxu0 0.0
    %94 = vmatpush1.msra.mxu0 0.0
    %95 = vmatprep.subr.mxu0 0.0
    %96 = vmatpush1.msra.mxu0 0.0
    %97 = vmatprep.subr.mxu0 0.0
    %98 = vmatpush1.msra.mxu0 0.0
    %99 = vmatprep.subr.mxu0 0.0
    %100 = vmatpush1.msra.mxu0 0.0
    %101 = vmatprep.subr.mxu0 0.0
    %102 = vmatpush1.msra.mxu0 0.0
    %103 = vmatprep.subr.mxu0 0.0
    %104 = vmatpush1.msra.mxu0 0.0
    %105 = vmatprep.subr.mxu0 0.0
    %106 = vmatpush1.msra.mxu0 0.0
    %107 = vmatprep.subr.mxu0 0.0
    %108 = vmatpush1.msra.mxu0 0.0
    %109 = vmatprep.subr.mxu0 0.0
    %110 = vmatpush1.msra.mxu0 0.0
    %111 = vmatprep.subr.mxu0 0.0
    %112 = vmatpush1.msra.mxu0 0.0
    %113 = vmatprep.subr.mxu0 0.0
    %114 = vmatpush1.msra.mxu0 0.0
    %115 = vmatprep.subr.mxu0 0.0
    %116 = vmatpush1.msra.mxu0 0.0
    %117 = vmatprep.subr.mxu0 0.0
    %118 = vmatpush1.msra.mxu0 0.0
    %119 = vmatprep.subr.mxu0 0.0
    %120 = vmatpush1.msra.mxu0 0.0
    %121 = vmatprep.subr.mxu0 0.0
    %122 = vmatpush1.msra.mxu0 0.0
    %123 = vmatprep.subr.mxu0 0.0
    %124 = vmatpush1.msra.mxu0 0.0
    %125 = vmatprep.subr.mxu0 0.0
    %126 = vmatpush1.msra.mxu0 0.0
    %127 = vmatprep.subr.mxu0 0.0
    %128 = vmatpush1.msra.mxu0 0.0
    %129 = vmatprep.subr.mxu0 0.0
    %130 = vmatpush1.msra.mxu0 0.0
    %131 = vmatprep.subr.mxu0 0.0
    %132 = vmatpush1.msra.mxu0 0.0
    %133 = vmatprep.subr.mxu0 0.0
    %134 = vmatpush1.msra.mxu0 0.0
    %135 = vmatprep.subr.mxu0 0.0
    %136 = vmatpush1.msra.mxu0 0.0
    %137 = vmatprep.subr.mxu0 0.0
    %138 = vmatpush1.msra.mxu0 0.0
    %139 = vmatprep.mubr.f32.mxu0 0.0
    %140 = vmatmul.mubr.f32.gmra.mrb[0].mxu0 %v70
    %v141 = vpop.f32.mrb[0].mxu0
    %v142 = vadd.f32 0.0, %v141
    %v143 = vpop.f32.mrb[0].mxu0
    %144 = vmatprep.mubr.f32.mxu0 0.0
    %145 = vmatmul.mubr.f32.gmra.mrb[0].mxu0 %v73
    %v146 = vpop.f32.mrb[0].mxu0
    %v147 = vadd.f32 0.0, %v146
    %v148 = vpop.f32.mrb[0].mxu0
    %149 = vdwg.mxu0
    %v150 = vlaneseq
    %v151 = vshrl.u32 %v150, 7
    %v152 = vadd.s32 %v151, 8
    %v153 = vand.u32 %v151, 7
    %v154 = vand.u32 %v152, 7
    %v155 = vld [vmem:[%s2 + $0x3] sm:$0x1]
    %v156 = vlaneseq
    %v157 = vshrl.u32 %v156, 7
    %v158 = vsub.s32 0, %v157
    %v159 = vrot.slane %v155, %v158
    %v160 = vmul.f32 %v142, %v159
    %v161 = vmul.f32 %v147, %v159
    %v162 = vrot.slane %v142, 7
    %v163 = vrot.slane %v147, 7
    %vm164 = vcmp.lt.s32.totalorder %v151, 1
    %v165 = vsel %vm164, %v162, %v163
    %v166 = vsel %vm164, %v163, %v162
    %vm167 = vcmp.ge.s32.totalorder %v153, 1
    %vm168 = vcmp.ge.s32.totalorder %v154, 1
    %v169 = vsel %vm167, %v166, 0.0
    %v170 = vsel %vm168, %v165, 0.0
    %v171 = vld [vmem:[%s2 + $0x2] sm:$0x1]
    %v172 = vlaneseq
    %v173 = vshrl.u32 %v172, 7
    %v174 = vsub.s32 0, %v173
    %v175 = vrot.slane %v171, %v174
    %v176 = vmul.f32 %v169, %v175
    %v177 = vmul.f32 %v170, %v175
    %v178 = vadd.f32 %v160, %v176
    %v179 = vadd.f32 %v161, %v177
    %v180 = vrot.slane %v142, 6
    %v181 = vrot.slane %v147, 6
    %vm182 = vcmp.lt.s32.totalorder %v151, 2
    %v183 = vsel %vm182, %v180, %v181
    %v184 = vsel %vm182, %v181, %v180
    %vm185 = vcmp.ge.s32.totalorder %v153, 2
    %vm186 = vcmp.ge.s32.totalorder %v154, 2
    %v187 = vsel %vm185, %v184, 0.0
    %v188 = vsel %vm186, %v183, 0.0
    %v189 = vld [vmem:[%s2 + $0x1] sm:$0x1]
    %v190 = vlaneseq
    %v191 = vshrl.u32 %v190, 7
    %v192 = vsub.s32 0, %v191
    %v193 = vrot.slane %v189, %v192
    %v194 = vmul.f32 %v187, %v193
    %v195 = vmul.f32 %v188, %v193
    %v196 = vadd.f32 %v178, %v194
    %v197 = vadd.f32 %v179, %v195
    %v198 = vrot.slane %v142, 5
    %v199 = vrot.slane %v147, 5
    %vm200 = vcmp.lt.s32.totalorder %v151, 3
    %v201 = vsel %vm200, %v198, %v199
    %v202 = vsel %vm200, %v199, %v198
    %vm203 = vcmp.ge.s32.totalorder %v153, 3
    %vm204 = vcmp.ge.s32.totalorder %v154, 3
    %v205 = vsel %vm203, %v202, 0.0
    %v206 = vsel %vm204, %v201, 0.0
    %v207 = vld [vmem:[%s2] sm:$0x1]
    %v208 = vlaneseq
    %v209 = vshrl.u32 %v208, 7
    %v210 = vsub.s32 0, %v209
    %v211 = vrot.slane %v207, %v210
    %v212 = vmul.f32 %v205, %v211
    %v213 = vmul.f32 %v206, %v211
    %v214 = vadd.f32 %v196, %v212
    %v215 = vadd.f32 %v197, %v213
    %v216 = vld [vmem:[%s3] sm:$0x1]
    %v218 = vlaneseq
    %v219 = vshrl.u32 %v218, 7
    %v220 = vsub.s32 0, %v219
    %v221 = vrot.slane %v216, %v220
    %v223 = vadd.f32 %v214, %v221
    %v224 = vadd.f32 %v215, %v221
    %v225 = vsub.f32 0.0, %v223
    %v226 = vsub.f32 0.0, %v224
    %v227 = vmul.f32 %v225, 1.442695
    %v228 = vpow.pop %v227
    %v229 = vmul.f32 %v226, 1.442695
    %v230 = vpow.pop %v229
    %v231 = vadd.f32 %v228, 1.0
    %v232 = vadd.f32 %v230, 1.0
    %v233 = vrcp.pop %v231
    %v234 = vrcp.pop %v232
    %v235 = vmul.f32 %v223, %v233
    %v236 = vmul.f32 %v224, %v234
    %v237 = vld [vmem:[%s4] sm:$0xff]
    %v238 = vld [vmem:[%s4 + $0x8] sm:$0xff]
    %v239 = vld [vmem:[%s4 + $0x10] sm:$0xff]
    %v240 = vld [vmem:[%s4 + $0x18] sm:$0xff]
    %vm241 = vcmask 261120
    %v243 = vsel %vm241, %v235, 0
    %v246 = vsel %vm241, %v236, 0
    %248 = vmatprep.subr.mxu0 0.0
    %249 = vmatpush1.msra.mxu0 %v237
    %250 = vmatprep.subr.mxu0 0.0
    %251 = vmatpush1.msra.mxu0 %v238
    %252 = vmatprep.subr.mxu0 0.0
    %253 = vmatpush1.msra.mxu0 %v239
    %254 = vmatprep.subr.mxu0 0.0
    %255 = vmatpush1.msra.mxu0 %v240
    %256 = vmatprep.subr.mxu0 0.0
    %257 = vmatpush1.msra.mxu0 0.0
    %258 = vmatprep.subr.mxu0 0.0
    %259 = vmatpush1.msra.mxu0 0.0
    %260 = vmatprep.subr.mxu0 0.0
    %261 = vmatpush1.msra.mxu0 0.0
    %262 = vmatprep.subr.mxu0 0.0
    %263 = vmatpush1.msra.mxu0 0.0
    %264 = vmatprep.subr.mxu0 0.0
    %265 = vmatpush1.msra.mxu0 0.0
    %266 = vmatprep.subr.mxu0 0.0
    %267 = vmatpush1.msra.mxu0 0.0
    %268 = vmatprep.subr.mxu0 0.0
    %269 = vmatpush1.msra.mxu0 0.0
    %270 = vmatprep.subr.mxu0 0.0
    %271 = vmatpush1.msra.mxu0 0.0
    %272 = vmatprep.subr.mxu0 0.0
    %273 = vmatpush1.msra.mxu0 0.0
    %274 = vmatprep.subr.mxu0 0.0
    %275 = vmatpush1.msra.mxu0 0.0
    %276 = vmatprep.subr.mxu0 0.0
    %277 = vmatpush1.msra.mxu0 0.0
    %278 = vmatprep.subr.mxu0 0.0
    %279 = vmatpush1.msra.mxu0 0.0
    %280 = vmatprep.subr.mxu0 0.0
    %281 = vmatpush1.msra.mxu0 0.0
    %282 = vmatprep.subr.mxu0 0.0
    %283 = vmatpush1.msra.mxu0 0.0
    %284 = vmatprep.subr.mxu0 0.0
    %285 = vmatpush1.msra.mxu0 0.0
    %286 = vmatprep.subr.mxu0 0.0
    %287 = vmatpush1.msra.mxu0 0.0
    %288 = vmatprep.subr.mxu0 0.0
    %289 = vmatpush1.msra.mxu0 0.0
    %290 = vmatprep.subr.mxu0 0.0
    %291 = vmatpush1.msra.mxu0 0.0
    %292 = vmatprep.subr.mxu0 0.0
    %293 = vmatpush1.msra.mxu0 0.0
    %294 = vmatprep.subr.mxu0 0.0
    %295 = vmatpush1.msra.mxu0 0.0
    %296 = vmatprep.subr.mxu0 0.0
    %297 = vmatpush1.msra.mxu0 0.0
    %298 = vmatprep.subr.mxu0 0.0
    %299 = vmatpush1.msra.mxu0 0.0
    %300 = vmatprep.subr.mxu0 0.0
    %301 = vmatpush1.msra.mxu0 0.0
    %302 = vmatprep.subr.mxu0 0.0
    %303 = vmatpush1.msra.mxu0 0.0
    %304 = vmatprep.subr.mxu0 0.0
    %305 = vmatpush1.msra.mxu0 0.0
    %306 = vmatprep.subr.mxu0 0.0
    %307 = vmatpush1.msra.mxu0 0.0
    %308 = vmatprep.subr.mxu0 0.0
    %309 = vmatpush1.msra.mxu0 0.0
    %310 = vmatprep.subr.mxu0 0.0
    %311 = vmatpush1.msra.mxu0 0.0
    %312 = vmatprep.mubr.f32.mxu0 0.0
    %313 = vmatmul.mubr.f32.gmra.mrb[0].mxu0 %v243
    %v314 = vpop.f32.mrb[0].mxu0
    %v315 = vadd.f32 0.0, %v314
    %v316 = vpop.f32.mrb[0].mxu0
    %317 = vmatprep.mubr.f32.mxu0 0.0
    %318 = vmatmul.mubr.f32.gmra.mrb[0].mxu0 %v246
    %v319 = vpop.f32.mrb[0].mxu0
    %v320 = vadd.f32 0.0, %v319
    %v321 = vpop.f32.mrb[0].mxu0
    %322 = vdwg.mxu0
    %v323 = vld [vmem:[%s5] sm:$0x1]
    %325 = vset.pattern.permute.xlu0 32
    %326 = vperm.xlu0 %325, %v315
    %v327 = vpop.permute.xlu0 %326
    %330 = vset.pattern.permute.xlu0 32
    %331 = vperm.xlu0 %330, %v320
    %v332 = vpop.permute.xlu0 %331
    %v335 = vlaneseq
    %v336 = vshrl.u32 %v335, 7
    %v337 = vsub.s32 0, %v336
    %v338 = vrot.slane %v323, %v337
    %v340 = vmul.f32 %v327, %v338
    %v341 = vmul.f32 %v332, %v338
    %v342 = vld [vmem:[%s6] sm:$0x1]
    %v344 = vlaneseq
    %v345 = vshrl.u32 %v344, 7
    %v346 = vsub.s32 0, %v345
    %v347 = vrot.slane %v342, %v346
    %v349 = vadd.f32 %v340, %v347
    %v350 = vadd.f32 %v341, %v347
    %v351 = vmax.f32 %v349, 0.0
    %v352 = vmax.f32 %v350, 0.0
    %v353 = vand.u32 2147483647, %v349
    %v354 = vand.u32 2147483647, %v350
    %v355 = vsub.f32 0.0, %v353
    %v356 = vsub.f32 0.0, %v354
    %v357 = vmul.f32 %v355, 1.442695
    %v358 = vpow.pop %v357
    %v359 = vmul.f32 %v356, 1.442695
    %v360 = vpow.pop %v359
    %v361 = vadd.f32 %v358, 1.0
    %v362 = vadd.f32 %v360, 1.0
    %v363 = vlog2.pop %v361
    %v364 = vmul.f32 %v363, 0.6931472
    %v365 = vlog2.pop %v362
    %v366 = vmul.f32 %v365, 0.6931472
    %v367 = vadd.f32 %v351, %v364
    %v368 = vadd.f32 %v352, %v366
    %v369 = vld [vmem:[#allocation8] sm:$0xff]
    %v370 = vld [vmem:[#allocation8 + $0x8] sm:$0xff]
    %v371 = vmul.f32 %v369, 1.442695
    %v372 = vpow.pop %v371
    %v373 = vmul.f32 %v370, 1.442695
    %v374 = vpow.pop %v373
    %v375 = vsub.f32 0.0, %v372
    %v376 = vsub.f32 0.0, %v374
    %v377 = vmul.f32 %v367, %v235
    %378 = vxpose.xlu0.b32.start [1/16] %v315, 128
    %379 = vxpose.xlu0.b32.cont [2/16] 0.0, 128
    %380 = vxpose.xlu0.b32.cont [3/16] 0.0, 128
    %381 = vxpose.xlu0.b32.cont [4/16] 0.0, 128
    %382 = vxpose.xlu0.b32.cont [5/16] 0.0, 128
    %383 = vxpose.xlu0.b32.cont [6/16] 0.0, 128
    %384 = vxpose.xlu0.b32.cont [7/16] 0.0, 128
    %385 = vxpose.xlu0.b32.cont [8/16] 0.0, 128
    %386 = vxpose.xlu0.b32.cont [9/16] 0.0, 128
    %387 = vxpose.xlu0.b32.cont [10/16] 0.0, 128
    %388 = vxpose.xlu0.b32.cont [11/16] 0.0, 128
    %389 = vxpose.xlu0.b32.cont [12/16] 0.0, 128
    %390 = vxpose.xlu0.b32.cont [13/16] 0.0, 128
    %391 = vxpose.xlu0.b32.cont [14/16] 0.0, 128
    %392 = vxpose.xlu0.b32.cont [15/16] 0.0, 128
    %393 = vxpose.xlu0.b32.end [16/16] 0.0, 128
    %v394 = vpop.trf.xlu0
    %v395 = vpop.trf.xlu0
    %v396 = vpop.trf.xlu0
    %v397 = vpop.trf.xlu0
    %v398 = vpop.trf.xlu0
    %v399 = vpop.trf.xlu0
    %v400 = vpop.trf.xlu0
    %v401 = vpop.trf.xlu0
    %v402 = vpop.trf.xlu0
    %v403 = vpop.trf.xlu0
    %v404 = vpop.trf.xlu0
    %v405 = vpop.trf.xlu0
    %v406 = vpop.trf.xlu0
    %v407 = vpop.trf.xlu0
    %v408 = vpop.trf.xlu0
    %v409 = vpop.trf.xlu0
    %410 = vrot.lane.b32.xlu0 %v315, 112
    %v411 = vpop.permute.xlu0 %410
    %413 = vxpose.xlu0.b32.start [1/16] %v411, 128
    %414 = vxpose.xlu0.b32.cont [2/16] 0.0, 128
    %415 = vxpose.xlu0.b32.cont [3/16] 0.0, 128
    %416 = vxpose.xlu0.b32.cont [4/16] 0.0, 128
    %417 = vxpose.xlu0.b32.cont [5/16] 0.0, 128
    %418 = vxpose.xlu0.b32.cont [6/16] 0.0, 128
    %419 = vxpose.xlu0.b32.cont [7/16] 0.0, 128
    %420 = vxpose.xlu0.b32.cont [8/16] 0.0, 128
    %421 = vxpose.xlu0.b32.cont [9/16] 0.0, 128
    %422 = vxpose.xlu0.b32.cont [10/16] 0.0, 128
    %423 = vxpose.xlu0.b32.cont [11/16] 0.0, 128
    %424 = vxpose.xlu0.b32.cont [12/16] 0.0, 128
    %425 = vxpose.xlu0.b32.cont [13/16] 0.0, 128
    %426 = vxpose.xlu0.b32.cont [14/16] 0.0, 128
    %427 = vxpose.xlu0.b32.cont [15/16] 0.0, 128
    %428 = vxpose.xlu0.b32.end [16/16] 0.0, 128
    %v429 = vpop.trf.xlu0
    %v430 = vpop.trf.xlu0
    %v431 = vpop.trf.xlu0
    %v432 = vpop.trf.xlu0
    %v433 = vpop.trf.xlu0
    %v434 = vpop.trf.xlu0
    %v435 = vpop.trf.xlu0
    %v436 = vpop.trf.xlu0
    %v437 = vpop.trf.xlu0
    %v438 = vpop.trf.xlu0
    %v439 = vpop.trf.xlu0
    %v440 = vpop.trf.xlu0
    %v441 = vpop.trf.xlu0
    %v442 = vpop.trf.xlu0
    %v443 = vpop.trf.xlu0
    %v444 = vpop.trf.xlu0
    %v445 = vlaneseq
    %v446 = vshrl.u32 %v445, 7
    %v447 = vsub.s32 0, %v446
    %v448 = vrot.slane %v367, %v447
    %v449 = vmul.f32 %v448, %v375
    %v450 = vmul.f32 %v448, %v376
    %451 = vst.msk [vmem:[#allocation2] sm:$0xff] %vm241, %v449
    %452 = vst.msk [vmem:[#allocation2 + $0x8] sm:$0xff] %vm241, %v450
    %v453 = vlaneseq
    %v454 = vshrl.u32 %v453, 7
    %v455 = vsub.s32 0, %v454
    %v456 = vrot.slane %v377, %v455
    %458 = vset.pattern.permute.xlu0 0
    %459 = vperm.xlu0 %458, %v394
    %v460 = vpop.permute.xlu0 %459
    %463 = vset.pattern.permute.xlu0 0
    %464 = vperm.xlu0 %463, %v395
    %v465 = vpop.permute.xlu0 %464
    %v467 = vmul.f32 %v456, %v460
    %v468 = vmul.f32 %v456, %v465
    %469 = vst.msk [vmem:[#allocation3] sm:$0xff] %vm241, %v467
    %470 = vst.msk [vmem:[#allocation3 + $0x8] sm:$0xff] %vm241, %v468
    %v471 = vlaneseq
    %v472 = vshrl.u32 %v471, 7
    %v473 = vsub.s32 1, %v472
    %v474 = vrot.slane %v367, %v473
    %v475 = vmul.f32 %v474, %v375
    %v476 = vmul.f32 %v474, %v376
    %s477 = scalar_lea.vmem [#allocation2], 16
    %478 = vst.msk [vmem:[%s477] sm:$0xff] %vm241, %v475
    %479 = vst.msk [vmem:[%s477 + $0x8] sm:$0xff] %vm241, %v476
    %v480 = vlaneseq
    %v481 = vshrl.u32 %v480, 7
    %v482 = vsub.s32 1, %v481
    %v483 = vrot.slane %v377, %v482
    %484 = vset.pattern.permute.xlu0 1
    %485 = vperm.xlu0 %484, %v394
    %v486 = vpop.permute.xlu0 %485
    %488 = vset.pattern.permute.xlu0 1
    %489 = vperm.xlu0 %488, %v395
    %v490 = vpop.permute.xlu0 %489
    %v492 = vmul.f32 %v483, %v486
    %v493 = vmul.f32 %v483, %v490
    %s494 = scalar_lea.vmem [#allocation3], 16
    %495 = vst.msk [vmem:[%s494] sm:$0xff] %vm241, %v492
    %496 = vst.msk [vmem:[%s494 + $0x8] sm:$0xff] %vm241, %v493
    %v497 = vlaneseq
    %v498 = vshrl.u32 %v497, 7
    %v499 = vsub.s32 2, %v498
    %v500 = vrot.slane %v367, %v499
    %v501 = vmul.f32 %v500, %v375
    %v502 = vmul.f32 %v500, %v376
    %s503 = scalar_lea.vmem [#allocation2], 32
    %504 = vst.msk [vmem:[%s503] sm:$0xff] %vm241, %v501
    %505 = vst.msk [vmem:[%s503 + $0x8] sm:$0xff] %vm241, %v502
    %v506 = vlaneseq
    %v507 = vshrl.u32 %v506, 7
    %v508 = vsub.s32 2, %v507
    %v509 = vrot.slane %v377, %v508
    %510 = vset.pattern.permute.xlu0 2
    %511 = vperm.xlu0 %510, %v394
    %v512 = vpop.permute.xlu0 %511
    %514 = vset.pattern.permute.xlu0 2
    %515 = vperm.xlu0 %514, %v395
    %v516 = vpop.permute.xlu0 %515
    %v518 = vmul.f32 %v509, %v512
    %v519 = vmul.f32 %v509, %v516
    %s520 = scalar_lea.vmem [#allocation3], 32
    %521 = vst.msk [vmem:[%s520] sm:$0xff] %vm241, %v518
    %522 = vst.msk [vmem:[%s520 + $0x8] sm:$0xff] %vm241, %v519
    %v523 = vlaneseq
    %v524 = vshrl.u32 %v523, 7
    %v525 = vsub.s32 3, %v524
    %v526 = vrot.slane %v367, %v525
    %v527 = vmul.f32 %v526, %v375
    %v528 = vmul.f32 %v526, %v376
    %s529 = scalar_lea.vmem [#allocation2], 48
    %530 = vst.msk [vmem:[%s529] sm:$0xff] %vm241, %v527
    %531 = vst.msk [vmem:[%s529 + $0x8] sm:$0xff] %vm241, %v528
    %v532 = vlaneseq
    %v533 = vshrl.u32 %v532, 7
    %v534 = vsub.s32 3, %v533
    %v535 = vrot.slane %v377, %v534
    %536 = vset.pattern.permute.xlu0 3
    %537 = vperm.xlu0 %536, %v394
    %v538 = vpop.permute.xlu0 %537
    %540 = vset.pattern.permute.xlu0 3
    %541 = vperm.xlu0 %540, %v395
    %v542 = vpop.permute.xlu0 %541
    %v544 = vmul.f32 %v535, %v538
    %v545 = vmul.f32 %v535, %v542
    %s546 = scalar_lea.vmem [#allocation3], 48
    %547 = vst.msk [vmem:[%s546] sm:$0xff] %vm241, %v544
    %548 = vst.msk [vmem:[%s546 + $0x8] sm:$0xff] %vm241, %v545
    %v549 = vlaneseq
    %v550 = vshrl.u32 %v549, 7
    %v551 = vsub.s32 4, %v550
    %v552 = vrot.slane %v367, %v551
    %v553 = vmul.f32 %v552, %v375
    %v554 = vmul.f32 %v552, %v376
    %s555 = scalar_lea.vmem [#allocation2], 64
    %556 = vst.msk [vmem:[%s555] sm:$0xff] %vm241, %v553
    %557 = vst.msk [vmem:[%s555 + $0x8] sm:$0xff] %vm241, %v554
    %v558 = vlaneseq
    %v559 = vshrl.u32 %v558, 7
    %v560 = vsub.s32 4, %v559
    %v561 = vrot.slane %v377, %v560
    %562 = vset.pattern.permute.xlu0 4
    %563 = vperm.xlu0 %562, %v394
    %v564 = vpop.permute.xlu0 %563
    %566 = vset.pattern.permute.xlu0 4
    %567 = vperm.xlu0 %566, %v395
    %v568 = vpop.permute.xlu0 %567
    %v570 = vmul.f32 %v561, %v564
    %v571 = vmul.f32 %v561, %v568
    %s572 = scalar_lea.vmem [#allocation3], 64
    %573 = vst.msk [vmem:[%s572] sm:$0xff] %vm241, %v570
    %574 = vst.msk [vmem:[%s572 + $0x8] sm:$0xff] %vm241, %v571
    %v575 = vlaneseq
    %v576 = vshrl.u32 %v575, 7
    %v577 = vsub.s32 5, %v576
    %v578 = vrot.slane %v367, %v577
    %v579 = vmul.f32 %v578, %v375
    %v580 = vmul.f32 %v578, %v376
    %s581 = scalar_lea.vmem [#allocation2], 80
    %582 = vst.msk [vmem:[%s581] sm:$0xff] %vm241, %v579
    %583 = vst.msk [vmem:[%s581 + $0x8] sm:$0xff] %vm241, %v580
    %v584 = vlaneseq
    %v585 = vshrl.u32 %v584, 7
    %v586 = vsub.s32 5, %v585
    %v587 = vrot.slane %v377, %v586
    %588 = vset.pattern.permute.xlu0 5
    %589 = vperm.xlu0 %588, %v394
    %v590 = vpop.permute.xlu0 %589
    %592 = vset.pattern.permute.xlu0 5
    %593 = vperm.xlu0 %592, %v395
    %v594 = vpop.permute.xlu0 %593
    %v596 = vmul.f32 %v587, %v590
    %v597 = vmul.f32 %v587, %v594
    %s598 = scalar_lea.vmem [#allocation3], 80
    %599 = vst.msk [vmem:[%s598] sm:$0xff] %vm241, %v596
    %600 = vst.msk [vmem:[%s598 + $0x8] sm:$0xff] %vm241, %v597
    %v601 = vlaneseq
    %v602 = vshrl.u32 %v601, 7
    %v603 = vsub.s32 6, %v602
    %v604 = vrot.slane %v367, %v603
    %v605 = vmul.f32 %v604, %v375
    %v606 = vmul.f32 %v604, %v376
    %s607 = scalar_lea.vmem [#allocation2], 96
    %608 = vst.msk [vmem:[%s607] sm:$0xff] %vm241, %v605
    %609 = vst.msk [vmem:[%s607 + $0x8] sm:$0xff] %vm241, %v606
    %v610 = vlaneseq
    %v611 = vshrl.u32 %v610, 7
    %v612 = vsub.s32 6, %v611
    %v613 = vrot.slane %v377, %v612
    %614 = vset.pattern.permute.xlu0 6
    %615 = vperm.xlu0 %614, %v394
    %v616 = vpop.permute.xlu0 %615
    %618 = vset.pattern.permute.xlu0 6
    %619 = vperm.xlu0 %618, %v395
    %v620 = vpop.permute.xlu0 %619
    %v622 = vmul.f32 %v613, %v616
    %v623 = vmul.f32 %v613, %v620
    %s624 = scalar_lea.vmem [#allocation3], 96
    %625 = vst.msk [vmem:[%s624] sm:$0xff] %vm241, %v622
    %626 = vst.msk [vmem:[%s624 + $0x8] sm:$0xff] %vm241, %v623
    %v627 = vlaneseq
    %v628 = vshrl.u32 %v627, 7
    %v629 = vsub.s32 7, %v628
    %v630 = vrot.slane %v367, %v629
    %v631 = vmul.f32 %v630, %v375
    %v632 = vmul.f32 %v630, %v376
    %s633 = scalar_lea.vmem [#allocation2], 112
    %634 = vst.msk [vmem:[%s633] sm:$0xff] %vm241, %v631
    %635 = vst.msk [vmem:[%s633 + $0x8] sm:$0xff] %vm241, %v632
    %v636 = vlaneseq
    %v637 = vshrl.u32 %v636, 7
    %v638 = vsub.s32 7, %v637
    %v639 = vrot.slane %v377, %v638
    %640 = vset.pattern.permute.xlu0 7
    %641 = vperm.xlu0 %640, %v394
    %v642 = vpop.permute.xlu0 %641
    %644 = vset.pattern.permute.xlu0 7
    %645 = vperm.xlu0 %644, %v395
    %v646 = vpop.permute.xlu0 %645
    %v648 = vmul.f32 %v639, %v642
    %v649 = vmul.f32 %v639, %v646
    %s650 = scalar_lea.vmem [#allocation3], 112
    %651 = vst.msk [vmem:[%s650] sm:$0xff] %vm241, %v648
    %652 = vst.msk [vmem:[%s650 + $0x8] sm:$0xff] %vm241, %v649
    %v653 = vld [vmem:[#allocation2] sm:$0xff]
    %v654 = vld [vmem:[#allocation2 + $0x8] sm:$0xff]
    %v655 = vld [vmem:[#allocation2 + $0x10] sm:$0xff]
    %v656 = vld [vmem:[#allocation2 + $0x18] sm:$0xff]
    %v657 = vld [vmem:[#allocation2 + $0x20] sm:$0xff]
    %v658 = vld [vmem:[#allocation2 + $0x28] sm:$0xff]
    %v659 = vld [vmem:[#allocation2 + $0x30] sm:$0xff]
    %v660 = vld [vmem:[#allocation2 + $0x38] sm:$0xff]
    %v661 = vld [vmem:[#allocation2 + $0x40] sm:$0xff]
    %v662 = vld [vmem:[#allocation2 + $0x48] sm:$0xff]
    %v663 = vld [vmem:[#allocation2 + $0x50] sm:$0xff]
    %v664 = vld [vmem:[#allocation2 + $0x58] sm:$0xff]
    %v665 = vld [vmem:[#allocation2 + $0x60] sm:$0xff]
    %v666 = vld [vmem:[#allocation2 + $0x68] sm:$0xff]
    %v667 = vld [vmem:[#allocation2 + $0x70] sm:$0xff]
    %v668 = vld [vmem:[#allocation2 + $0x78] sm:$0xff]
    %v669 = vmul.f32 %v653, 1.442695
    %v670 = vpow.pop %v669
    %v671 = vmul.f32 %v654, 1.442695
    %v672 = vpow.pop %v671
    %v673 = vmul.f32 %v655, 1.442695
    %v674 = vpow.pop %v673
    %v675 = vmul.f32 %v656, 1.442695
    %v676 = vpow.pop %v675
    %v677 = vmul.f32 %v657, 1.442695
    %v678 = vpow.pop %v677
    %v679 = vmul.f32 %v658, 1.442695
    %v680 = vpow.pop %v679
    %v681 = vmul.f32 %v659, 1.442695
    %v682 = vpow.pop %v681
    %v683 = vmul.f32 %v660, 1.442695
    %v684 = vpow.pop %v683
    %v685 = vmul.f32 %v661, 1.442695
    %v686 = vpow.pop %v685
    %v687 = vmul.f32 %v662, 1.442695
    %v688 = vpow.pop %v687
    %v689 = vmul.f32 %v663, 1.442695
    %v690 = vpow.pop %v689
    %v691 = vmul.f32 %v664, 1.442695
    %v692 = vpow.pop %v691
    %v693 = vmul.f32 %v665, 1.442695
    %v694 = vpow.pop %v693
    %v695 = vmul.f32 %v666, 1.442695
    %v696 = vpow.pop %v695
    %v697 = vmul.f32 %v667, 1.442695
    %v698 = vpow.pop %v697
    %v699 = vmul.f32 %v668, 1.442695
    %v700 = vpow.pop %v699
    %701 = vst.msk [vmem:[#allocation2] sm:$0xff] %vm241, %v670
    %702 = vst.msk [vmem:[#allocation2 + $0x8] sm:$0xff] %vm241, %v672
    %703 = vst.msk [vmem:[#allocation2 + $0x10] sm:$0xff] %vm241, %v674
    %704 = vst.msk [vmem:[#allocation2 + $0x18] sm:$0xff] %vm241, %v676
    %705 = vst.msk [vmem:[#allocation2 + $0x20] sm:$0xff] %vm241, %v678
    %706 = vst.msk [vmem:[#allocation2 + $0x28] sm:$0xff] %vm241, %v680
    %707 = vst.msk [vmem:[#allocation2 + $0x30] sm:$0xff] %vm241, %v682
    %708 = vst.msk [vmem:[#allocation2 + $0x38] sm:$0xff] %vm241, %v684
    %709 = vst.msk [vmem:[#allocation2 + $0x40] sm:$0xff] %vm241, %v686
    %710 = vst.msk [vmem:[#allocation2 + $0x48] sm:$0xff] %vm241, %v688
    %711 = vst.msk [vmem:[#allocation2 + $0x50] sm:$0xff] %vm241, %v690
    %712 = vst.msk [vmem:[#allocation2 + $0x58] sm:$0xff] %vm241, %v692
    %713 = vst.msk [vmem:[#allocation2 + $0x60] sm:$0xff] %vm241, %v694
    %714 = vst.msk [vmem:[#allocation2 + $0x68] sm:$0xff] %vm241, %v696
    %715 = vst.msk [vmem:[#allocation2 + $0x70] sm:$0xff] %vm241, %v698
    %716 = vst.msk [vmem:[#allocation2 + $0x78] sm:$0xff] %vm241, %v700
    %v717 = vld [vmem:[#allocation2] sm:$0xff]
    %v718 = vld [vmem:[#allocation2 + $0x8] sm:$0xff]
    %v719 = vmul.f32 %v717, 0.0
    %v720 = vmul.f32 %v718, 0.0
    %v721 = vld [vmem:[#allocation3] sm:$0xff]
    %v722 = vld [vmem:[#allocation3 + $0x8] sm:$0xff]
    %v723 = vadd.f32 %v719, %v721
    %v724 = vadd.f32 %v720, %v722
    %725 = vst.msk [vmem:[#allocation4] sm:$0xff] %vm241, %v723
    %726 = vst.msk [vmem:[#allocation4 + $0x8] sm:$0xff] %vm241, %v724
    %v727 = vld [vmem:[%s477] sm:$0xff]
    %v728 = vld [vmem:[%s477 + $0x8] sm:$0xff]
    %v729 = vmul.f32 %v727, %v723
    %v730 = vmul.f32 %v728, %v724
    %v731 = vld [vmem:[%s494] sm:$0xff]
    %v732 = vld [vmem:[%s494 + $0x8] sm:$0xff]
    %v733 = vadd.f32 %v729, %v731
    %v734 = vadd.f32 %v730, %v732
    %s735 = scalar_lea.vmem [#allocation4], 16
    %736 = vst.msk [vmem:[%s735] sm:$0xff] %vm241, %v733
    %737 = vst.msk [vmem:[%s735 + $0x8] sm:$0xff] %vm241, %v734
    %v738 = vld [vmem:[%s503] sm:$0xff]
    %v739 = vld [vmem:[%s503 + $0x8] sm:$0xff]
    %v740 = vmul.f32 %v738, %v733
    %v741 = vmul.f32 %v739, %v734
    %v742 = vld [vmem:[%s520] sm:$0xff]
    %v743 = vld [vmem:[%s520 + $0x8] sm:$0xff]
    %v744 = vadd.f32 %v740, %v742
    %v745 = vadd.f32 %v741, %v743
    %s746 = scalar_lea.vmem [#allocation4], 32
    %747 = vst.msk [vmem:[%s746] sm:$0xff] %vm241, %v744
    %748 = vst.msk [vmem:[%s746 + $0x8] sm:$0xff] %vm241, %v745
    %v749 = vld [vmem:[%s529] sm:$0xff]
    %v750 = vld [vmem:[%s529 + $0x8] sm:$0xff]
    %v751 = vmul.f32 %v749, %v744
    %v752 = vmul.f32 %v750, %v745
    %v753 = vld [vmem:[%s546] sm:$0xff]
    %v754 = vld [vmem:[%s546 + $0x8] sm:$0xff]
    %v755 = vadd.f32 %v751, %v753
    %v756 = vadd.f32 %v752, %v754
    %s757 = scalar_lea.vmem [#allocation4], 48
    %758 = vst.msk [vmem:[%s757] sm:$0xff] %vm241, %v755
    %759 = vst.msk [vmem:[%s757 + $0x8] sm:$0xff] %vm241, %v756
    %v760 = vld [vmem:[%s555] sm:$0xff]
    %v761 = vld [vmem:[%s555 + $0x8] sm:$0xff]
    %v762 = vmul.f32 %v760, %v755
    %v763 = vmul.f32 %v761, %v756
    %v764 = vld [vmem:[%s572] sm:$0xff]
    %v765 = vld [vmem:[%s572 + $0x8] sm:$0xff]
    %v766 = vadd.f32 %v762, %v764
    %v767 = vadd.f32 %v763, %v765
    %s768 = scalar_lea.vmem [#allocation4], 64
    %769 = vst.msk [vmem:[%s768] sm:$0xff] %vm241, %v766
    %770 = vst.msk [vmem:[%s768 + $0x8] sm:$0xff] %vm241, %v767
    %v771 = vld [vmem:[%s581] sm:$0xff]
    %v772 = vld [vmem:[%s581 + $0x8] sm:$0xff]
    %v773 = vmul.f32 %v771, %v766
    %v774 = vmul.f32 %v772, %v767
    %v775 = vld [vmem:[%s598] sm:$0xff]
    %v776 = vld [vmem:[%s598 + $0x8] sm:$0xff]
    %v777 = vadd.f32 %v773, %v775
    %v778 = vadd.f32 %v774, %v776
    %s779 = scalar_lea.vmem [#allocation4], 80
    %780 = vst.msk [vmem:[%s779] sm:$0xff] %vm241, %v777
    %781 = vst.msk [vmem:[%s779 + $0x8] sm:$0xff] %vm241, %v778
    %v782 = vld [vmem:[%s607] sm:$0xff]
    %v783 = vld [vmem:[%s607 + $0x8] sm:$0xff]
    %v784 = vmul.f32 %v782, %v777
    %v785 = vmul.f32 %v783, %v778
    %v786 = vld [vmem:[%s624] sm:$0xff]
    %v787 = vld [vmem:[%s624 + $0x8] sm:$0xff]
    %v788 = vadd.f32 %v784, %v786
    %v789 = vadd.f32 %v785, %v787
    %s790 = scalar_lea.vmem [#allocation4], 96
    %791 = vst.msk [vmem:[%s790] sm:$0xff] %vm241, %v788
    %792 = vst.msk [vmem:[%s790 + $0x8] sm:$0xff] %vm241, %v789
    %v793 = vld [vmem:[%s633] sm:$0xff]
    %v794 = vld [vmem:[%s633 + $0x8] sm:$0xff]
    %v795 = vmul.f32 %v793, %v788
    %v796 = vmul.f32 %v794, %v789
    %v797 = vld [vmem:[%s650] sm:$0xff]
    %v798 = vld [vmem:[%s650 + $0x8] sm:$0xff]
    %v799 = vadd.f32 %v795, %v797
    %v800 = vadd.f32 %v796, %v798
    %s801 = scalar_lea.vmem [#allocation4], 112
    %802 = vst.msk [vmem:[%s801] sm:$0xff] %vm241, %v799
    %803 = vst.msk [vmem:[%s801 + $0x8] sm:$0xff] %vm241, %v800
    %v804 = vld [vmem:[#allocation4] sm:$0xff]
    %v805 = vld [vmem:[#allocation4 + $0x8] sm:$0xff]
    %807 = vset.pattern.permute.xlu0 0
    %808 = vperm.xlu0 %807, %v429
    %v809 = vpop.permute.xlu0 %808
    %812 = vset.pattern.permute.xlu0 0
    %813 = vperm.xlu0 %812, %v430
    %v814 = vpop.permute.xlu0 %813
    %v816 = vmul.f32 %v809, %v804
    %v817 = vmul.f32 %v814, %v805
    %v818 = vsel %vm241, %v816, 0.0
    %v819 = vsel %vm241, %v817, 0.0
    %v820 = vadd.f32 %v818, %v819
    %v821 = vrot.slane %v820, 4
    %v822 = vadd.f32 %v820, %v821
    %v823 = vrot.slane %v822, 2
    %v824 = vadd.f32 %v822, %v823
    %v825 = vrot.slane %v824, 1
    %v826 = vadd.f32 %v824, %v825
    %v827 = vld [vmem:[%s735] sm:$0xff]
    %v828 = vld [vmem:[%s735 + $0x8] sm:$0xff]
    %829 = vset.pattern.permute.xlu0 1
    %830 = vperm.xlu0 %829, %v429
    %v831 = vpop.permute.xlu0 %830
    %833 = vset.pattern.permute.xlu0 1
    %834 = vperm.xlu0 %833, %v430
    %v835 = vpop.permute.xlu0 %834
    %v837 = vmul.f32 %v831, %v827
    %v838 = vmul.f32 %v835, %v828
    %v839 = vsel %vm241, %v837, 0.0
    %v840 = vsel %vm241, %v838, 0.0
    %v841 = vadd.f32 %v839, %v840
    %v842 = vrot.slane %v841, 4
    %v843 = vadd.f32 %v841, %v842
    %v844 = vrot.slane %v843, 2
    %v845 = vadd.f32 %v843, %v844
    %v846 = vrot.slane %v845, 1
    %v847 = vadd.f32 %v845, %v846
    %v848 = vld [vmem:[%s746] sm:$0xff]
    %v849 = vld [vmem:[%s746 + $0x8] sm:$0xff]
    %850 = vset.pattern.permute.xlu0 2
    %851 = vperm.xlu0 %850, %v429
    %v852 = vpop.permute.xlu0 %851
    %854 = vset.pattern.permute.xlu0 2
    %855 = vperm.xlu0 %854, %v430
    %v856 = vpop.permute.xlu0 %855
    %v858 = vmul.f32 %v852, %v848
    %v859 = vmul.f32 %v856, %v849
    %v860 = vsel %vm241, %v858, 0.0
    %v861 = vsel %vm241, %v859, 0.0
    %v862 = vadd.f32 %v860, %v861
    %v863 = vrot.slane %v862, 4
    %v864 = vadd.f32 %v862, %v863
    %v865 = vrot.slane %v864, 2
    %v866 = vadd.f32 %v864, %v865
    %v867 = vrot.slane %v866, 1
    %v868 = vadd.f32 %v866, %v867
    %v869 = vld [vmem:[%s757] sm:$0xff]
    %v870 = vld [vmem:[%s757 + $0x8] sm:$0xff]
    %871 = vset.pattern.permute.xlu0 3
    %872 = vperm.xlu0 %871, %v429
    %v873 = vpop.permute.xlu0 %872
    %875 = vset.pattern.permute.xlu0 3
    %876 = vperm.xlu0 %875, %v430
    %v877 = vpop.permute.xlu0 %876
    %v879 = vmul.f32 %v873, %v869
    %v880 = vmul.f32 %v877, %v870
    %v881 = vsel %vm241, %v879, 0.0
    %v882 = vsel %vm241, %v880, 0.0
    %v883 = vadd.f32 %v881, %v882
    %v884 = vrot.slane %v883, 4
    %v885 = vadd.f32 %v883, %v884
    %v886 = vrot.slane %v885, 2
    %v887 = vadd.f32 %v885, %v886
    %v888 = vrot.slane %v887, 1
    %v889 = vadd.f32 %v887, %v888
    %v890 = vld [vmem:[%s768] sm:$0xff]
    %v891 = vld [vmem:[%s768 + $0x8] sm:$0xff]
    %892 = vset.pattern.permute.xlu0 4
    %893 = vperm.xlu0 %892, %v429
    %v894 = vpop.permute.xlu0 %893
    %896 = vset.pattern.permute.xlu0 4
    %897 = vperm.xlu0 %896, %v430
    %v898 = vpop.permute.xlu0 %897
    %v900 = vmul.f32 %v894, %v890
    %v901 = vmul.f32 %v898, %v891
    %v902 = vsel %vm241, %v900, 0.0
    %v903 = vsel %vm241, %v901, 0.0
    %v904 = vadd.f32 %v902, %v903
    %v905 = vrot.slane %v904, 4
    %v906 = vadd.f32 %v904, %v905
    %v907 = vrot.slane %v906, 2
    %v908 = vadd.f32 %v906, %v907
    %v909 = vrot.slane %v908, 1
    %v910 = vadd.f32 %v908, %v909
    %v911 = vld [vmem:[%s779] sm:$0xff]
    %v912 = vld [vmem:[%s779 + $0x8] sm:$0xff]
    %913 = vset.pattern.permute.xlu0 5
    %914 = vperm.xlu0 %913, %v429
    %v915 = vpop.permute.xlu0 %914
    %917 = vset.pattern.permute.xlu0 5
    %918 = vperm.xlu0 %917, %v430
    %v919 = vpop.permute.xlu0 %918
    %v921 = vmul.f32 %v915, %v911
    %v922 = vmul.f32 %v919, %v912
    %v923 = vsel %vm241, %v921, 0.0
    %v924 = vsel %vm241, %v922, 0.0
    %v925 = vadd.f32 %v923, %v924
    %v926 = vrot.slane %v925, 4
    %v927 = vadd.f32 %v925, %v926
    %v928 = vrot.slane %v927, 2
    %v929 = vadd.f32 %v927, %v928
    %v930 = vrot.slane %v929, 1
    %v931 = vadd.f32 %v929, %v930
    %v932 = vld [vmem:[%s790] sm:$0xff]
    %v933 = vld [vmem:[%s790 + $0x8] sm:$0xff]
    %934 = vset.pattern.permute.xlu0 6
    %935 = vperm.xlu0 %934, %v429
    %v936 = vpop.permute.xlu0 %935
    %938 = vset.pattern.permute.xlu0 6
    %939 = vperm.xlu0 %938, %v430
    %v940 = vpop.permute.xlu0 %939
    %v942 = vmul.f32 %v936, %v932
    %v943 = vmul.f32 %v940, %v933
    %v944 = vsel %vm241, %v942, 0.0
    %v945 = vsel %vm241, %v943, 0.0
    %v946 = vadd.f32 %v944, %v945
    %v947 = vrot.slane %v946, 4
    %v948 = vadd.f32 %v946, %v947
    %v949 = vrot.slane %v948, 2
    %v950 = vadd.f32 %v948, %v949
    %v951 = vrot.slane %v950, 1
    %v952 = vadd.f32 %v950, %v951
    %v953 = vld [vmem:[%s801] sm:$0xff]
    %v954 = vld [vmem:[%s801 + $0x8] sm:$0xff]
    %955 = vset.pattern.permute.xlu0 7
    %956 = vperm.xlu0 %955, %v429
    %v957 = vpop.permute.xlu0 %956
    %959 = vset.pattern.permute.xlu0 7
    %960 = vperm.xlu0 %959, %v430
    %v961 = vpop.permute.xlu0 %960
    %v963 = vmul.f32 %v957, %v953
    %v964 = vmul.f32 %v961, %v954
    %v965 = vsel %vm241, %v963, 0.0
    %v966 = vsel %vm241, %v964, 0.0
    %v967 = vadd.f32 %v965, %v966
    %v968 = vrot.slane %v967, 4
    %v969 = vadd.f32 %v967, %v968
    %v970 = vrot.slane %v969, 2
    %v971 = vadd.f32 %v969, %v970
    %v972 = vrot.slane %v971, 1
    %v973 = vadd.f32 %v971, %v972
    %vm974 = vcmask 1040384
    %v975 = vsel %vm974, %v826, %v847
    %vm976 = vcmask 1041408
    %v977 = vsel %vm976, %v975, %v868
    %vm978 = vcmask 1042432
    %v979 = vsel %vm978, %v977, %v889
    %vm980 = vcmask 1043456
    %v981 = vsel %vm980, %v979, %v910
    %vm982 = vcmask 1044480
    %v983 = vsel %vm982, %v981, %v931
    %vm984 = vcmask 1045504
    %v985 = vsel %vm984, %v983, %v952
    %vm986 = vcmask 1046528
    %v987 = vsel %vm986, %v985, %v973
    %v988 = vmul.f32 %v368, %v236
    %989 = vxpose.xlu0.b32.start [1/16] %v320, 128
    %990 = vxpose.xlu0.b32.cont [2/16] 0.0, 128
    %991 = vxpose.xlu0.b32.cont [3/16] 0.0, 128
    %992 = vxpose.xlu0.b32.cont [4/16] 0.0, 128
    %993 = vxpose.xlu0.b32.cont [5/16] 0.0, 128
    %994 = vxpose.xlu0.b32.cont [6/16] 0.0, 128
    %995 = vxpose.xlu0.b32.cont [7/16] 0.0, 128
    %996 = vxpose.xlu0.b32.cont [8/16] 0.0, 128
    %997 = vxpose.xlu0.b32.cont [9/16] 0.0, 128
    %998 = vxpose.xlu0.b32.cont [10/16] 0.0, 128
    %999 = vxpose.xlu0.b32.cont [11/16] 0.0, 128
    %1000 = vxpose.xlu0.b32.cont [12/16] 0.0, 128
    %1001 = vxpose.xlu0.b32.cont [13/16] 0.0, 128
    %1002 = vxpose.xlu0.b32.cont [14/16] 0.0, 128
    %1003 = vxpose.xlu0.b32.cont [15/16] 0.0, 128
    %1004 = vxpose.xlu0.b32.end [16/16] 0.0, 128
    %v1005 = vpop.trf.xlu0
    %v1006 = vpop.trf.xlu0
    %v1007 = vpop.trf.xlu0
    %v1008 = vpop.trf.xlu0
    %v1009 = vpop.trf.xlu0
    %v1010 = vpop.trf.xlu0
    %v1011 = vpop.trf.xlu0
    %v1012 = vpop.trf.xlu0
    %v1013 = vpop.trf.xlu0
    %v1014 = vpop.trf.xlu0
    %v1015 = vpop.trf.xlu0
    %v1016 = vpop.trf.xlu0
    %v1017 = vpop.trf.xlu0
    %v1018 = vpop.trf.xlu0
    %v1019 = vpop.trf.xlu0
    %v1020 = vpop.trf.xlu0
    %1021 = vrot.lane.b32.xlu0 %v320, 112
    %v1022 = vpop.permute.xlu0 %1021
    %1024 = vxpose.xlu0.b32.start [1/16] %v1022, 128
    %1025 = vxpose.xlu0.b32.cont [2/16] 0.0, 128
    %1026 = vxpose.xlu0.b32.cont [3/16] 0.0, 128
    %1027 = vxpose.xlu0.b32.cont [4/16] 0.0, 128
    %1028 = vxpose.xlu0.b32.cont [5/16] 0.0, 128
    %1029 = vxpose.xlu0.b32.cont [6/16] 0.0, 128
    %1030 = vxpose.xlu0.b32.cont [7/16] 0.0, 128
    %1031 = vxpose.xlu0.b32.cont [8/16] 0.0, 128
    %1032 = vxpose.xlu0.b32.cont [9/16] 0.0, 128
    %1033 = vxpose.xlu0.b32.cont [10/16] 0.0, 128
    %1034 = vxpose.xlu0.b32.cont [11/16] 0.0, 128
    %1035 = vxpose.xlu0.b32.cont [12/16] 0.0, 128
    %1036 = vxpose.xlu0.b32.cont [13/16] 0.0, 128
    %1037 = vxpose.xlu0.b32.cont [14/16] 0.0, 128
    %1038 = vxpose.xlu0.b32.cont [15/16] 0.0, 128
    %1039 = vxpose.xlu0.b32.end [16/16] 0.0, 128
    %v1040 = vpop.trf.xlu0
    %v1041 = vpop.trf.xlu0
    %v1042 = vpop.trf.xlu0
    %v1043 = vpop.trf.xlu0
    %v1044 = vpop.trf.xlu0
    %v1045 = vpop.trf.xlu0
    %v1046 = vpop.trf.xlu0
    %v1047 = vpop.trf.xlu0
    %v1048 = vpop.trf.xlu0
    %v1049 = vpop.trf.xlu0
    %v1050 = vpop.trf.xlu0
    %v1051 = vpop.trf.xlu0
    %v1052 = vpop.trf.xlu0
    %v1053 = vpop.trf.xlu0
    %v1054 = vpop.trf.xlu0
    %v1055 = vpop.trf.xlu0
    %v1056 = vlaneseq
    %v1057 = vshrl.u32 %v1056, 7
    %v1058 = vsub.s32 0, %v1057
    %v1059 = vrot.slane %v368, %v1058
    %v1060 = vmul.f32 %v1059, %v375
    %v1061 = vmul.f32 %v1059, %v376
    %1062 = vst.msk [vmem:[#allocation2] sm:$0xff] %vm241, %v1060
    %1063 = vst.msk [vmem:[#allocation2 + $0x8] sm:$0xff] %vm241, %v1061
    %v1064 = vlaneseq
    %v1065 = vshrl.u32 %v1064, 7
    %v1066 = vsub.s32 0, %v1065
    %v1067 = vrot.slane %v988, %v1066
    %1069 = vset.pattern.permute.xlu0 0
    %1070 = vperm.xlu0 %1069, %v1005
    %v1071 = vpop.permute.xlu0 %1070
    %1074 = vset.pattern.permute.xlu0 0
    %1075 = vperm.xlu0 %1074, %v1006
    %v1076 = vpop.permute.xlu0 %1075
    %v1078 = vmul.f32 %v1067, %v1071
    %v1079 = vmul.f32 %v1067, %v1076
    %1080 = vst.msk [vmem:[#allocation3] sm:$0xff] %vm241, %v1078
    %1081 = vst.msk [vmem:[#allocation3 + $0x8] sm:$0xff] %vm241, %v1079
    %v1082 = vlaneseq
    %v1083 = vshrl.u32 %v1082, 7
    %v1084 = vsub.s32 1, %v1083
    %v1085 = vrot.slane %v368, %v1084
    %v1086 = vmul.f32 %v1085, %v375
    %v1087 = vmul.f32 %v1085, %v376
    %1088 = vst.msk [vmem:[%s477] sm:$0xff] %vm241, %v1086
    %1089 = vst.msk [vmem:[%s477 + $0x8] sm:$0xff] %vm241, %v1087
    %v1090 = vlaneseq
    %v1091 = vshrl.u32 %v1090, 7
    %v1092 = vsub.s32 1, %v1091
    %v1093 = vrot.slane %v988, %v1092
    %1094 = vset.pattern.permute.xlu0 1
    %1095 = vperm.xlu0 %1094, %v1005
    %v1096 = vpop.permute.xlu0 %1095
    %1098 = vset.pattern.permute.xlu0 1
    %1099 = vperm.xlu0 %1098, %v1006
    %v1100 = vpop.permute.xlu0 %1099
    %v1102 = vmul.f32 %v1093, %v1096
    %v1103 = vmul.f32 %v1093, %v1100
    %1104 = vst.msk [vmem:[%s494] sm:$0xff] %vm241, %v1102
    %1105 = vst.msk [vmem:[%s494 + $0x8] sm:$0xff] %vm241, %v1103
    %v1106 = vlaneseq
    %v1107 = vshrl.u32 %v1106, 7
    %v1108 = vsub.s32 2, %v1107
    %v1109 = vrot.slane %v368, %v1108
    %v1110 = vmul.f32 %v1109, %v375
    %v1111 = vmul.f32 %v1109, %v376
    %1112 = vst.msk [vmem:[%s503] sm:$0xff] %vm241, %v1110
    %1113 = vst.msk [vmem:[%s503 + $0x8] sm:$0xff] %vm241, %v1111
    %v1114 = vlaneseq
    %v1115 = vshrl.u32 %v1114, 7
    %v1116 = vsub.s32 2, %v1115
    %v1117 = vrot.slane %v988, %v1116
    %1118 = vset.pattern.permute.xlu0 2
    %1119 = vperm.xlu0 %1118, %v1005
    %v1120 = vpop.permute.xlu0 %1119
    %1122 = vset.pattern.permute.xlu0 2
    %1123 = vperm.xlu0 %1122, %v1006
    %v1124 = vpop.permute.xlu0 %1123
    %v1126 = vmul.f32 %v1117, %v1120
    %v1127 = vmul.f32 %v1117, %v1124
    %1128 = vst.msk [vmem:[%s520] sm:$0xff] %vm241, %v1126
    %1129 = vst.msk [vmem:[%s520 + $0x8] sm:$0xff] %vm241, %v1127
    %v1130 = vlaneseq
    %v1131 = vshrl.u32 %v1130, 7
    %v1132 = vsub.s32 3, %v1131
    %v1133 = vrot.slane %v368, %v1132
    %v1134 = vmul.f32 %v1133, %v375
    %v1135 = vmul.f32 %v1133, %v376
    %1136 = vst.msk [vmem:[%s529] sm:$0xff] %vm241, %v1134
    %1137 = vst.msk [vmem:[%s529 + $0x8] sm:$0xff] %vm241, %v1135
    %v1138 = vlaneseq
    %v1139 = vshrl.u32 %v1138, 7
    %v1140 = vsub.s32 3, %v1139
    %v1141 = vrot.slane %v988, %v1140
    %1142 = vset.pattern.permute.xlu0 3
    %1143 = vperm.xlu0 %1142, %v1005
    %v1144 = vpop.permute.xlu0 %1143
    %1146 = vset.pattern.permute.xlu0 3
    %1147 = vperm.xlu0 %1146, %v1006
    %v1148 = vpop.permute.xlu0 %1147
    %v1150 = vmul.f32 %v1141, %v1144
    %v1151 = vmul.f32 %v1141, %v1148
    %1152 = vst.msk [vmem:[%s546] sm:$0xff] %vm241, %v1150
    %1153 = vst.msk [vmem:[%s546 + $0x8] sm:$0xff] %vm241, %v1151
    %v1154 = vlaneseq
    %v1155 = vshrl.u32 %v1154, 7
    %v1156 = vsub.s32 4, %v1155
    %v1157 = vrot.slane %v368, %v1156
    %v1158 = vmul.f32 %v1157, %v375
    %v1159 = vmul.f32 %v1157, %v376
    %1160 = vst.msk [vmem:[%s555] sm:$0xff] %vm241, %v1158
    %1161 = vst.msk [vmem:[%s555 + $0x8] sm:$0xff] %vm241, %v1159
    %v1162 = vlaneseq
    %v1163 = vshrl.u32 %v1162, 7
    %v1164 = vsub.s32 4, %v1163
    %v1165 = vrot.slane %v988, %v1164
    %1166 = vset.pattern.permute.xlu0 4
    %1167 = vperm.xlu0 %1166, %v1005
    %v1168 = vpop.permute.xlu0 %1167
    %1170 = vset.pattern.permute.xlu0 4
    %1171 = vperm.xlu0 %1170, %v1006
    %v1172 = vpop.permute.xlu0 %1171
    %v1174 = vmul.f32 %v1165, %v1168
    %v1175 = vmul.f32 %v1165, %v1172
    %1176 = vst.msk [vmem:[%s572] sm:$0xff] %vm241, %v1174
    %1177 = vst.msk [vmem:[%s572 + $0x8] sm:$0xff] %vm241, %v1175
    %v1178 = vlaneseq
    %v1179 = vshrl.u32 %v1178, 7
    %v1180 = vsub.s32 5, %v1179
    %v1181 = vrot.slane %v368, %v1180
    %v1182 = vmul.f32 %v1181, %v375
    %v1183 = vmul.f32 %v1181, %v376
    %1184 = vst.msk [vmem:[%s581] sm:$0xff] %vm241, %v1182
    %1185 = vst.msk [vmem:[%s581 + $0x8] sm:$0xff] %vm241, %v1183
    %v1186 = vlaneseq
    %v1187 = vshrl.u32 %v1186, 7
    %v1188 = vsub.s32 5, %v1187
    %v1189 = vrot.slane %v988, %v1188
    %1190 = vset.pattern.permute.xlu0 5
    %1191 = vperm.xlu0 %1190, %v1005
    %v1192 = vpop.permute.xlu0 %1191
    %1194 = vset.pattern.permute.xlu0 5
    %1195 = vperm.xlu0 %1194, %v1006
    %v1196 = vpop.permute.xlu0 %1195
    %v1198 = vmul.f32 %v1189, %v1192
    %v1199 = vmul.f32 %v1189, %v1196
    %1200 = vst.msk [vmem:[%s598] sm:$0xff] %vm241, %v1198
    %1201 = vst.msk [vmem:[%s598 + $0x8] sm:$0xff] %vm241, %v1199
    %v1202 = vlaneseq
    %v1203 = vshrl.u32 %v1202, 7
    %v1204 = vsub.s32 6, %v1203
    %v1205 = vrot.slane %v368, %v1204
    %v1206 = vmul.f32 %v1205, %v375
    %v1207 = vmul.f32 %v1205, %v376
    %1208 = vst.msk [vmem:[%s607] sm:$0xff] %vm241, %v1206
    %1209 = vst.msk [vmem:[%s607 + $0x8] sm:$0xff] %vm241, %v1207
    %v1210 = vlaneseq
    %v1211 = vshrl.u32 %v1210, 7
    %v1212 = vsub.s32 6, %v1211
    %v1213 = vrot.slane %v988, %v1212
    %1214 = vset.pattern.permute.xlu0 6
    %1215 = vperm.xlu0 %1214, %v1005
    %v1216 = vpop.permute.xlu0 %1215
    %1218 = vset.pattern.permute.xlu0 6
    %1219 = vperm.xlu0 %1218, %v1006
    %v1220 = vpop.permute.xlu0 %1219
    %v1222 = vmul.f32 %v1213, %v1216
    %v1223 = vmul.f32 %v1213, %v1220
    %1224 = vst.msk [vmem:[%s624] sm:$0xff] %vm241, %v1222
    %1225 = vst.msk [vmem:[%s624 + $0x8] sm:$0xff] %vm241, %v1223
    %v1226 = vlaneseq
    %v1227 = vshrl.u32 %v1226, 7
    %v1228 = vsub.s32 7, %v1227
    %v1229 = vrot.slane %v368, %v1228
    %v1230 = vmul.f32 %v1229, %v375
    %v1231 = vmul.f32 %v1229, %v376
    %1232 = vst.msk [vmem:[%s633] sm:$0xff] %vm241, %v1230
    %1233 = vst.msk [vmem:[%s633 + $0x8] sm:$0xff] %vm241, %v1231
    %v1234 = vlaneseq
    %v1235 = vshrl.u32 %v1234, 7
    %v1236 = vsub.s32 7, %v1235
    %v1237 = vrot.slane %v988, %v1236
    %1238 = vset.pattern.permute.xlu0 7
    %1239 = vperm.xlu0 %1238, %v1005
    %v1240 = vpop.permute.xlu0 %1239
    %1242 = vset.pattern.permute.xlu0 7
    %1243 = vperm.xlu0 %1242, %v1006
    %v1244 = vpop.permute.xlu0 %1243
    %v1246 = vmul.f32 %v1237, %v1240
    %v1247 = vmul.f32 %v1237, %v1244
    %1248 = vst.msk [vmem:[%s650] sm:$0xff] %vm241, %v1246
    %1249 = vst.msk [vmem:[%s650 + $0x8] sm:$0xff] %vm241, %v1247
    %v1250 = vld [vmem:[#allocation2] sm:$0xff]
    %v1251 = vld [vmem:[#allocation2 + $0x8] sm:$0xff]
    %v1252 = vld [vmem:[#allocation2 + $0x10] sm:$0xff]
    %v1253 = vld [vmem:[#allocation2 + $0x18] sm:$0xff]
    %v1254 = vld [vmem:[#allocation2 + $0x20] sm:$0xff]
    %v1255 = vld [vmem:[#allocation2 + $0x28] sm:$0xff]
    %v1256 = vld [vmem:[#allocation2 + $0x30] sm:$0xff]
    %v1257 = vld [vmem:[#allocation2 + $0x38] sm:$0xff]
    %v1258 = vld [vmem:[#allocation2 + $0x40] sm:$0xff]
    %v1259 = vld [vmem:[#allocation2 + $0x48] sm:$0xff]
    %v1260 = vld [vmem:[#allocation2 + $0x50] sm:$0xff]
    %v1261 = vld [vmem:[#allocation2 + $0x58] sm:$0xff]
    %v1262 = vld [vmem:[#allocation2 + $0x60] sm:$0xff]
    %v1263 = vld [vmem:[#allocation2 + $0x68] sm:$0xff]
    %v1264 = vld [vmem:[#allocation2 + $0x70] sm:$0xff]
    %v1265 = vld [vmem:[#allocation2 + $0x78] sm:$0xff]
    %v1266 = vmul.f32 %v1250, 1.442695
    %v1267 = vpow.pop %v1266
    %v1268 = vmul.f32 %v1251, 1.442695
    %v1269 = vpow.pop %v1268
    %v1270 = vmul.f32 %v1252, 1.442695
    %v1271 = vpow.pop %v1270
    %v1272 = vmul.f32 %v1253, 1.442695
    %v1273 = vpow.pop %v1272
    %v1274 = vmul.f32 %v1254, 1.442695
    %v1275 = vpow.pop %v1274
    %v1276 = vmul.f32 %v1255, 1.442695
    %v1277 = vpow.pop %v1276
    %v1278 = vmul.f32 %v1256, 1.442695
    %v1279 = vpow.pop %v1278
    %v1280 = vmul.f32 %v1257, 1.442695
    %v1281 = vpow.pop %v1280
    %v1282 = vmul.f32 %v1258, 1.442695
    %v1283 = vpow.pop %v1282
    %v1284 = vmul.f32 %v1259, 1.442695
    %v1285 = vpow.pop %v1284
    %v1286 = vmul.f32 %v1260, 1.442695
    %v1287 = vpow.pop %v1286
    %v1288 = vmul.f32 %v1261, 1.442695
    %v1289 = vpow.pop %v1288
    %v1290 = vmul.f32 %v1262, 1.442695
    %v1291 = vpow.pop %v1290
    %v1292 = vmul.f32 %v1263, 1.442695
    %v1293 = vpow.pop %v1292
    %v1294 = vmul.f32 %v1264, 1.442695
    %v1295 = vpow.pop %v1294
    %v1296 = vmul.f32 %v1265, 1.442695
    %v1297 = vpow.pop %v1296
    %1298 = vst.msk [vmem:[#allocation2] sm:$0xff] %vm241, %v1267
    %1299 = vst.msk [vmem:[#allocation2 + $0x8] sm:$0xff] %vm241, %v1269
    %1300 = vst.msk [vmem:[#allocation2 + $0x10] sm:$0xff] %vm241, %v1271
    %1301 = vst.msk [vmem:[#allocation2 + $0x18] sm:$0xff] %vm241, %v1273
    %1302 = vst.msk [vmem:[#allocation2 + $0x20] sm:$0xff] %vm241, %v1275
    %1303 = vst.msk [vmem:[#allocation2 + $0x28] sm:$0xff] %vm241, %v1277
    %1304 = vst.msk [vmem:[#allocation2 + $0x30] sm:$0xff] %vm241, %v1279
    %1305 = vst.msk [vmem:[#allocation2 + $0x38] sm:$0xff] %vm241, %v1281
    %1306 = vst.msk [vmem:[#allocation2 + $0x40] sm:$0xff] %vm241, %v1283
    %1307 = vst.msk [vmem:[#allocation2 + $0x48] sm:$0xff] %vm241, %v1285
    %1308 = vst.msk [vmem:[#allocation2 + $0x50] sm:$0xff] %vm241, %v1287
    %1309 = vst.msk [vmem:[#allocation2 + $0x58] sm:$0xff] %vm241, %v1289
    %1310 = vst.msk [vmem:[#allocation2 + $0x60] sm:$0xff] %vm241, %v1291
    %1311 = vst.msk [vmem:[#allocation2 + $0x68] sm:$0xff] %vm241, %v1293
    %1312 = vst.msk [vmem:[#allocation2 + $0x70] sm:$0xff] %vm241, %v1295
    %1313 = vst.msk [vmem:[#allocation2 + $0x78] sm:$0xff] %vm241, %v1297
    %v1314 = vld [vmem:[#allocation2] sm:$0xff]
    %v1315 = vld [vmem:[#allocation2 + $0x8] sm:$0xff]
    %v1316 = vmul.f32 %v1314, 0.0
    %v1317 = vmul.f32 %v1315, 0.0
    %v1318 = vld [vmem:[#allocation3] sm:$0xff]
    %v1319 = vld [vmem:[#allocation3 + $0x8] sm:$0xff]
    %v1320 = vadd.f32 %v1316, %v1318
    %v1321 = vadd.f32 %v1317, %v1319
    %1322 = vst.msk [vmem:[#allocation4] sm:$0xff] %vm241, %v1320
    %1323 = vst.msk [vmem:[#allocation4 + $0x8] sm:$0xff] %vm241, %v1321
    %v1324 = vld [vmem:[%s477] sm:$0xff]
    %v1325 = vld [vmem:[%s477 + $0x8] sm:$0xff]
    %v1326 = vmul.f32 %v1324, %v1320
    %v1327 = vmul.f32 %v1325, %v1321
    %v1328 = vld [vmem:[%s494] sm:$0xff]
    %v1329 = vld [vmem:[%s494 + $0x8] sm:$0xff]
    %v1330 = vadd.f32 %v1326, %v1328
    %v1331 = vadd.f32 %v1327, %v1329
    %1332 = vst.msk [vmem:[%s735] sm:$0xff] %vm241, %v1330
    %1333 = vst.msk [vmem:[%s735 + $0x8] sm:$0xff] %vm241, %v1331
    %v1334 = vld [vmem:[%s503] sm:$0xff]
    %v1335 = vld [vmem:[%s503 + $0x8] sm:$0xff]
    %v1336 = vmul.f32 %v1334, %v1330
    %v1337 = vmul.f32 %v1335, %v1331
    %v1338 = vld [vmem:[%s520] sm:$0xff]
    %v1339 = vld [vmem:[%s520 + $0x8] sm:$0xff]
    %v1340 = vadd.f32 %v1336, %v1338
    %v1341 = vadd.f32 %v1337, %v1339
    %1342 = vst.msk [vmem:[%s746] sm:$0xff] %vm241, %v1340
    %1343 = vst.msk [vmem:[%s746 + $0x8] sm:$0xff] %vm241, %v1341
    %v1344 = vld [vmem:[%s529] sm:$0xff]
    %v1345 = vld [vmem:[%s529 + $0x8] sm:$0xff]
    %v1346 = vmul.f32 %v1344, %v1340
    %v1347 = vmul.f32 %v1345, %v1341
    %v1348 = vld [vmem:[%s546] sm:$0xff]
    %v1349 = vld [vmem:[%s546 + $0x8] sm:$0xff]
    %v1350 = vadd.f32 %v1346, %v1348
    %v1351 = vadd.f32 %v1347, %v1349
    %1352 = vst.msk [vmem:[%s757] sm:$0xff] %vm241, %v1350
    %1353 = vst.msk [vmem:[%s757 + $0x8] sm:$0xff] %vm241, %v1351
    %v1354 = vld [vmem:[%s555] sm:$0xff]
    %v1355 = vld [vmem:[%s555 + $0x8] sm:$0xff]
    %v1356 = vmul.f32 %v1354, %v1350
    %v1357 = vmul.f32 %v1355, %v1351
    %v1358 = vld [vmem:[%s572] sm:$0xff]
    %v1359 = vld [vmem:[%s572 + $0x8] sm:$0xff]
    %v1360 = vadd.f32 %v1356, %v1358
    %v1361 = vadd.f32 %v1357, %v1359
    %1362 = vst.msk [vmem:[%s768] sm:$0xff] %vm241, %v1360
    %1363 = vst.msk [vmem:[%s768 + $0x8] sm:$0xff] %vm241, %v1361
    %v1364 = vld [vmem:[%s581] sm:$0xff]
    %v1365 = vld [vmem:[%s581 + $0x8] sm:$0xff]
    %v1366 = vmul.f32 %v1364, %v1360
    %v1367 = vmul.f32 %v1365, %v1361
    %v1368 = vld [vmem:[%s598] sm:$0xff]
    %v1369 = vld [vmem:[%s598 + $0x8] sm:$0xff]
    %v1370 = vadd.f32 %v1366, %v1368
    %v1371 = vadd.f32 %v1367, %v1369
    %1372 = vst.msk [vmem:[%s779] sm:$0xff] %vm241, %v1370
    %1373 = vst.msk [vmem:[%s779 + $0x8] sm:$0xff] %vm241, %v1371
    %v1374 = vld [vmem:[%s607] sm:$0xff]
    %v1375 = vld [vmem:[%s607 + $0x8] sm:$0xff]
    %v1376 = vmul.f32 %v1374, %v1370
    %v1377 = vmul.f32 %v1375, %v1371
    %v1378 = vld [vmem:[%s624] sm:$0xff]
    %v1379 = vld [vmem:[%s624 + $0x8] sm:$0xff]
    %v1380 = vadd.f32 %v1376, %v1378
    %v1381 = vadd.f32 %v1377, %v1379
    %1382 = vst.msk [vmem:[%s790] sm:$0xff] %vm241, %v1380
    %1383 = vst.msk [vmem:[%s790 + $0x8] sm:$0xff] %vm241, %v1381
    %v1384 = vld [vmem:[%s633] sm:$0xff]
    %v1385 = vld [vmem:[%s633 + $0x8] sm:$0xff]
    %v1386 = vmul.f32 %v1384, %v1380
    %v1387 = vmul.f32 %v1385, %v1381
    %v1388 = vld [vmem:[%s650] sm:$0xff]
    %v1389 = vld [vmem:[%s650 + $0x8] sm:$0xff]
    %v1390 = vadd.f32 %v1386, %v1388
    %v1391 = vadd.f32 %v1387, %v1389
    %1392 = vst.msk [vmem:[%s801] sm:$0xff] %vm241, %v1390
    %1393 = vst.msk [vmem:[%s801 + $0x8] sm:$0xff] %vm241, %v1391
    %v1394 = vld [vmem:[#allocation4] sm:$0xff]
    %v1395 = vld [vmem:[#allocation4 + $0x8] sm:$0xff]
    %1397 = vset.pattern.permute.xlu0 0
    %1398 = vperm.xlu0 %1397, %v1040
    %v1399 = vpop.permute.xlu0 %1398
    %1402 = vset.pattern.permute.xlu0 0
    %1403 = vperm.xlu0 %1402, %v1041
    %v1404 = vpop.permute.xlu0 %1403
    %v1406 = vmul.f32 %v1399, %v1394
    %v1407 = vmul.f32 %v1404, %v1395
    %v1408 = vsel %vm241, %v1406, 0.0
    %v1409 = vsel %vm241, %v1407, 0.0
    %v1410 = vadd.f32 %v1408, %v1409
    %v1411 = vrot.slane %v1410, 4
    %v1412 = vadd.f32 %v1410, %v1411
    %v1413 = vrot.slane %v1412, 2
    %v1414 = vadd.f32 %v1412, %v1413
    %v1415 = vrot.slane %v1414, 1
    %v1416 = vadd.f32 %v1414, %v1415
    %v1417 = vld [vmem:[%s735] sm:$0xff]
    %v1418 = vld [vmem:[%s735 + $0x8] sm:$0xff]
    %1419 = vset.pattern.permute.xlu0 1
    %1420 = vperm.xlu0 %1419, %v1040
    %v1421 = vpop.permute.xlu0 %1420
    %1423 = vset.pattern.permute.xlu0 1
    %1424 = vperm.xlu0 %1423, %v1041
    %v1425 = vpop.permute.xlu0 %1424
    %v1427 = vmul.f32 %v1421, %v1417
    %v1428 = vmul.f32 %v1425, %v1418
    %v1429 = vsel %vm241, %v1427, 0.0
    %v1430 = vsel %vm241, %v1428, 0.0
    %v1431 = vadd.f32 %v1429, %v1430
    %v1432 = vrot.slane %v1431, 4
    %v1433 = vadd.f32 %v1431, %v1432
    %v1434 = vrot.slane %v1433, 2
    %v1435 = vadd.f32 %v1433, %v1434
    %v1436 = vrot.slane %v1435, 1
    %v1437 = vadd.f32 %v1435, %v1436
    %v1438 = vld [vmem:[%s746] sm:$0xff]
    %v1439 = vld [vmem:[%s746 + $0x8] sm:$0xff]
    %1440 = vset.pattern.permute.xlu0 2
    %1441 = vperm.xlu0 %1440, %v1040
    %v1442 = vpop.permute.xlu0 %1441
    %1444 = vset.pattern.permute.xlu0 2
    %1445 = vperm.xlu0 %1444, %v1041
    %v1446 = vpop.permute.xlu0 %1445
    %v1448 = vmul.f32 %v1442, %v1438
    %v1449 = vmul.f32 %v1446, %v1439
    %v1450 = vsel %vm241, %v1448, 0.0
    %v1451 = vsel %vm241, %v1449, 0.0
    %v1452 = vadd.f32 %v1450, %v1451
    %v1453 = vrot.slane %v1452, 4
    %v1454 = vadd.f32 %v1452, %v1453
    %v1455 = vrot.slane %v1454, 2
    %v1456 = vadd.f32 %v1454, %v1455
    %v1457 = vrot.slane %v1456, 1
    %v1458 = vadd.f32 %v1456, %v1457
    %v1459 = vld [vmem:[%s757] sm:$0xff]
    %v1460 = vld [vmem:[%s757 + $0x8] sm:$0xff]
    %1461 = vset.pattern.permute.xlu0 3
    %1462 = vperm.xlu0 %1461, %v1040
    %v1463 = vpop.permute.xlu0 %1462
    %1465 = vset.pattern.permute.xlu0 3
    %1466 = vperm.xlu0 %1465, %v1041
    %v1467 = vpop.permute.xlu0 %1466
    %v1469 = vmul.f32 %v1463, %v1459
    %v1470 = vmul.f32 %v1467, %v1460
    %v1471 = vsel %vm241, %v1469, 0.0
    %v1472 = vsel %vm241, %v1470, 0.0
    %v1473 = vadd.f32 %v1471, %v1472
    %v1474 = vrot.slane %v1473, 4
    %v1475 = vadd.f32 %v1473, %v1474
    %v1476 = vrot.slane %v1475, 2
    %v1477 = vadd.f32 %v1475, %v1476
    %v1478 = vrot.slane %v1477, 1
    %v1479 = vadd.f32 %v1477, %v1478
    %v1480 = vld [vmem:[%s768] sm:$0xff]
    %v1481 = vld [vmem:[%s768 + $0x8] sm:$0xff]
    %1482 = vset.pattern.permute.xlu0 4
    %1483 = vperm.xlu0 %1482, %v1040
    %v1484 = vpop.permute.xlu0 %1483
    %1486 = vset.pattern.permute.xlu0 4
    %1487 = vperm.xlu0 %1486, %v1041
    %v1488 = vpop.permute.xlu0 %1487
    %v1490 = vmul.f32 %v1484, %v1480
    %v1491 = vmul.f32 %v1488, %v1481
    %v1492 = vsel %vm241, %v1490, 0.0
    %v1493 = vsel %vm241, %v1491, 0.0
    %v1494 = vadd.f32 %v1492, %v1493
    %v1495 = vrot.slane %v1494, 4
    %v1496 = vadd.f32 %v1494, %v1495
    %v1497 = vrot.slane %v1496, 2
    %v1498 = vadd.f32 %v1496, %v1497
    %v1499 = vrot.slane %v1498, 1
    %v1500 = vadd.f32 %v1498, %v1499
    %v1501 = vld [vmem:[%s779] sm:$0xff]
    %v1502 = vld [vmem:[%s779 + $0x8] sm:$0xff]
    %1503 = vset.pattern.permute.xlu0 5
    %1504 = vperm.xlu0 %1503, %v1040
    %v1505 = vpop.permute.xlu0 %1504
    %1507 = vset.pattern.permute.xlu0 5
    %1508 = vperm.xlu0 %1507, %v1041
    %v1509 = vpop.permute.xlu0 %1508
    %v1511 = vmul.f32 %v1505, %v1501
    %v1512 = vmul.f32 %v1509, %v1502
    %v1513 = vsel %vm241, %v1511, 0.0
    %v1514 = vsel %vm241, %v1512, 0.0
    %v1515 = vadd.f32 %v1513, %v1514
    %v1516 = vrot.slane %v1515, 4
    %v1517 = vadd.f32 %v1515, %v1516
    %v1518 = vrot.slane %v1517, 2
    %v1519 = vadd.f32 %v1517, %v1518
    %v1520 = vrot.slane %v1519, 1
    %v1521 = vadd.f32 %v1519, %v1520
    %v1522 = vld [vmem:[%s790] sm:$0xff]
    %v1523 = vld [vmem:[%s790 + $0x8] sm:$0xff]
    %1524 = vset.pattern.permute.xlu0 6
    %1525 = vperm.xlu0 %1524, %v1040
    %v1526 = vpop.permute.xlu0 %1525
    %1528 = vset.pattern.permute.xlu0 6
    %1529 = vperm.xlu0 %1528, %v1041
    %v1530 = vpop.permute.xlu0 %1529
    %v1532 = vmul.f32 %v1526, %v1522
    %v1533 = vmul.f32 %v1530, %v1523
    %v1534 = vsel %vm241, %v1532, 0.0
    %v1535 = vsel %vm241, %v1533, 0.0
    %v1536 = vadd.f32 %v1534, %v1535
    %v1537 = vrot.slane %v1536, 4
    %v1538 = vadd.f32 %v1536, %v1537
    %v1539 = vrot.slane %v1538, 2
    %v1540 = vadd.f32 %v1538, %v1539
    %v1541 = vrot.slane %v1540, 1
    %v1542 = vadd.f32 %v1540, %v1541
    %v1543 = vld [vmem:[%s801] sm:$0xff]
    %v1544 = vld [vmem:[%s801 + $0x8] sm:$0xff]
    %1545 = vset.pattern.permute.xlu0 7
    %1546 = vperm.xlu0 %1545, %v1040
    %v1547 = vpop.permute.xlu0 %1546
    %1549 = vset.pattern.permute.xlu0 7
    %1550 = vperm.xlu0 %1549, %v1041
    %v1551 = vpop.permute.xlu0 %1550
    %v1553 = vmul.f32 %v1547, %v1543
    %v1554 = vmul.f32 %v1551, %v1544
    %v1555 = vsel %vm241, %v1553, 0.0
    %v1556 = vsel %vm241, %v1554, 0.0
    %v1557 = vadd.f32 %v1555, %v1556
    %v1558 = vrot.slane %v1557, 4
    %v1559 = vadd.f32 %v1557, %v1558
    %v1560 = vrot.slane %v1559, 2
    %v1561 = vadd.f32 %v1559, %v1560
    %v1562 = vrot.slane %v1561, 1
    %v1563 = vadd.f32 %v1561, %v1562
    %v1564 = vsel %vm974, %v1416, %v1437
    %v1565 = vsel %vm976, %v1564, %v1458
    %v1566 = vsel %vm978, %v1565, %v1479
    %v1567 = vsel %vm980, %v1566, %v1500
    %v1568 = vsel %vm982, %v1567, %v1521
    %v1569 = vsel %vm984, %v1568, %v1542
    %v1570 = vsel %vm986, %v1569, %v1563
    %v1571 = vld [vmem:[%s8] sm:$0x1]
    %v1573 = vlaneseq
    %v1574 = vshrl.u32 %v1573, 7
    %v1575 = vsub.s32 0, %v1574
    %v1576 = vrot.slane %v1571, %v1575
    %v1578 = vmul.f32 %v235, %v1576
    %v1579 = vmul.f32 %v236, %v1576
    %v1580 = vadd.f32 %v987, %v1578
    %v1581 = vadd.f32 %v1570, %v1579
    %v1582 = vsub.f32 0.0, %v142
    %v1583 = vsub.f32 0.0, %v147
    %v1584 = vmul.f32 %v1582, 1.442695
    %v1585 = vpow.pop %v1584
    %v1586 = vmul.f32 %v1583, 1.442695
    %v1587 = vpow.pop %v1586
    %v1588 = vadd.f32 %v1585, 1.0
    %v1589 = vadd.f32 %v1587, 1.0
    %v1590 = vrcp.pop %v1588
    %v1591 = vmul.f32 %v142, %v1590
    %v1592 = vrcp.pop %v1589
    %v1593 = vmul.f32 %v147, %v1592
    %1596 = vrot.lane.b32.xlu0 %v1591, 96
    %v1597 = vpop.permute.xlu0 %1596
    %1598 = vrot.lane.b32.xlu0 %v1593, 96
    %v1599 = vpop.permute.xlu0 %1598
    %v1602 = vmul.f32 %v1580, %v1597
    %v1603 = vmul.f32 %v1581, %v1599
    %v1604 = vld [vmem:[%s9] sm:$0xff]
    %v1605 = vld [vmem:[%s9 + $0x8] sm:$0xff]
    %v1606 = vld [vmem:[%s9 + $0x10] sm:$0xff]
    %v1607 = vld [vmem:[%s9 + $0x18] sm:$0xff]
    %v1609 = vsel %vm241, %v1602, 0
    %v1612 = vsel %vm241, %v1603, 0
    %1614 = vmatprep.subr.mxu0 0.0
    %1615 = vmatpush1.msra.mxu0 %v1604
    %1616 = vmatprep.subr.mxu0 0.0
    %1617 = vmatpush1.msra.mxu0 %v1605
    %1618 = vmatprep.subr.mxu0 0.0
    %1619 = vmatpush1.msra.mxu0 %v1606
    %1620 = vmatprep.subr.mxu0 0.0
    %1621 = vmatpush1.msra.mxu0 %v1607
    %1622 = vmatprep.subr.mxu0 0.0
    %1623 = vmatpush1.msra.mxu0 0.0
    %1624 = vmatprep.subr.mxu0 0.0
    %1625 = vmatpush1.msra.mxu0 0.0
    %1626 = vmatprep.subr.mxu0 0.0
    %1627 = vmatpush1.msra.mxu0 0.0
    %1628 = vmatprep.subr.mxu0 0.0
    %1629 = vmatpush1.msra.mxu0 0.0
    %1630 = vmatprep.subr.mxu0 0.0
    %1631 = vmatpush1.msra.mxu0 0.0
    %1632 = vmatprep.subr.mxu0 0.0
    %1633 = vmatpush1.msra.mxu0 0.0
    %1634 = vmatprep.subr.mxu0 0.0
    %1635 = vmatpush1.msra.mxu0 0.0
    %1636 = vmatprep.subr.mxu0 0.0
    %1637 = vmatpush1.msra.mxu0 0.0
    %1638 = vmatprep.subr.mxu0 0.0
    %1639 = vmatpush1.msra.mxu0 0.0
    %1640 = vmatprep.subr.mxu0 0.0
    %1641 = vmatpush1.msra.mxu0 0.0
    %1642 = vmatprep.subr.mxu0 0.0
    %1643 = vmatpush1.msra.mxu0 0.0
    %1644 = vmatprep.subr.mxu0 0.0
    %1645 = vmatpush1.msra.mxu0 0.0
    %1646 = vmatprep.subr.mxu0 0.0
    %1647 = vmatpush1.msra.mxu0 0.0
    %1648 = vmatprep.subr.mxu0 0.0
    %1649 = vmatpush1.msra.mxu0 0.0
    %1650 = vmatprep.subr.mxu0 0.0
    %1651 = vmatpush1.msra.mxu0 0.0
    %1652 = vmatprep.subr.mxu0 0.0
    %1653 = vmatpush1.msra.mxu0 0.0
    %1654 = vmatprep.subr.mxu0 0.0
    %1655 = vmatpush1.msra.mxu0 0.0
    %1656 = vmatprep.subr.mxu0 0.0
    %1657 = vmatpush1.msra.mxu0 0.0
    %1658 = vmatprep.subr.mxu0 0.0
    %1659 = vmatpush1.msra.mxu0 0.0
    %1660 = vmatprep.subr.mxu0 0.0
    %1661 = vmatpush1.msra.mxu0 0.0
    %1662 = vmatprep.subr.mxu0 0.0
    %1663 = vmatpush1.msra.mxu0 0.0
    %1664 = vmatprep.subr.mxu0 0.0
    %1665 = vmatpush1.msra.mxu0 0.0
    %1666 = vmatprep.subr.mxu0 0.0
    %1667 = vmatpush1.msra.mxu0 0.0
    %1668 = vmatprep.subr.mxu0 0.0
    %1669 = vmatpush1.msra.mxu0 0.0
    %1670 = vmatprep.subr.mxu0 0.0
    %1671 = vmatpush1.msra.mxu0 0.0
    %1672 = vmatprep.subr.mxu0 0.0
    %1673 = vmatpush1.msra.mxu0 0.0
    %1674 = vmatprep.subr.mxu0 0.0
    %1675 = vmatpush1.msra.mxu0 0.0
    %1676 = vmatprep.subr.mxu0 0.0
    %1677 = vmatpush1.msra.mxu0 0.0
    %1678 = vmatprep.mubr.f32.mxu0 0.0
    %1679 = vmatmul.mubr.f32.gmra.mrb[0].mxu0 %v1609
    %v1680 = vpop.f32.mrb[0].mxu0
    %v1681 = vadd.f32 0.0, %v1680
    %v1682 = vpop.f32.mrb[0].mxu0
    %1683 = vmatprep.mubr.f32.mxu0 0.0
    %1684 = vmatmul.mubr.f32.gmra.mrb[0].mxu0 %v1612
    %v1685 = vpop.f32.mrb[0].mxu0
    %v1686 = vadd.f32 0.0, %v1685
    %v1687 = vpop.f32.mrb[0].mxu0
    %1688 = vdwg.mxu0
    %1689 = vst.msk [vmem:[#allocation10] sm:$0xff] %vm68, %v1681
    %1690 = vst.msk [vmem:[#allocation10 + $0x8] sm:$0xff] %vm68, %v1686
    // Predicated region
    $region50: #{tpu_custom_call.1} parent=1 // pred_check
      _
    $region51: #{tpu_custom_call.1} parent=1 // pred_check_branch
      %1692 = sbr.rel (0) target = $region53
    $region52: #{tpu_custom_call.1} parent=1 // pred_region
      %s1694 = ssub.s32 256, 256
      %1695 = vsyncadd [#allocation7], %s1694
      %s1696 = sshll.u32 [#allocation10], 4
      %s1697 = int_to_ptr.vmem [resolvable:$true] %s1696
      %1702 = dma.vmem_to_hbm [thread:$0]  %s1697, 256, %s10, [#allocation7], 128, 128, 8
    $region53: #{tpu_custom_call.1} parent=1 // pred_fallthru
      _
    // Predicated region
    $region54: #{tpu_custom_call.1} parent=1 // pred_check
      _
    $region55: #{tpu_custom_call.1} parent=1 // pred_check_branch
      %1704 = sbr.rel (0) target = $region57
    $region56: #{tpu_custom_call.1} parent=1 // pred_region
      %1705 = dma.done [#allocation7], 256
    $region57: #{tpu_custom_call.1} parent=1 // pred_fallthru
      _
    %1706 = vsyncpa [#allocation6], 1
    %1707 = vsyncpa [#allocation9], 1
    %1708 = vsyncpa [#allocation7], 1

</llo_original>
